<compile_context>
chip_gen: v5e
topology: v5e:2x2
jax: 0.10.0
libtpu: 0.0.40
codegen_flags: <defaults>
</compile_context>

<pallas_src>
import jax
import jax.numpy as jnp
from jax import lax
from jax.experimental import pallas as pl
from jax.experimental.pallas import tpu as pltpu

# ---- GeneGAT default config ---------------------------------------------------
INPUT_DIM = 1
OUTPUT_DIM = 2
NUM_HEADS = 2
HIDDEN = 128
CLUSTER_NUM = 8
POOLING_DIM = 16
NEG_SLOPE_GAT = 0.2    # GATConv LeakyReLU slope
NEG_SLOPE_RED = 0.1    # dim_reduction LeakyReLU slope
LN_EPS = 1e-5
LANES = 128

# ---- f32 small-parameter pack row map (sp: [16, 128]) --------------------------
R_W_IN, R_B_IN, R_LN_IN_G, R_LN_IN_B = 0, 1, 2, 3
R_BIAS0, R_BR0, R_BIAS1, R_BR1 = 4, 5, 6, 7
R_BC1, R_BC2, R_BD, R_LN_D_G, R_LN_D_B, R_BCLS = 8, 9, 10, 11, 12, 13
SP_ROWS = 16

# ---- bf16 small-weight pack row map (ws: [64, 256], 16-row aligned groups) ------
WS_ATT = 0      # rows 0:8  -> att0_src(2) | att0_dst(2) | att1_src(2) | att1_dst(2)
WS_WC2T = 16    # rows 16:24 -> cluster Linear2 weight^T  [K, 64]  (lanes 0:64)
WS_WDT = 32     # rows 32:48 -> dim_reduction weight^T    [P, 2H]
WS_WCLS = 48    # rows 48:64 -> classifier weight, padded [P, 128] (lanes 0:O)
WS_ROWS, WS_LANES = 64, 256

# ---- bf16 big-weight pack column map (wbig: [128, 768]) -------------------------
C_W0, C_WR0, C_W1, C_WR1, C_WC1 = 0, 128, 256, 512, 640
WBIG_COLS = 768

TRANS_B = (((1,), (1,)), ((), ()))   # dot_general: contract last dims of both operands


# ------------------------------ kernel helpers ----------------------------------
def _layernorm(x, gamma, beta):
    mu = jnp.mean(x, axis=-1, keepdims=True)
    var = jnp.mean((x - mu) ** 2, axis=-1, keepdims=True)
    return (x - mu) * lax.rsqrt(var + LN_EPS) * gamma + beta


def _leaky_relu(x, slope):
    return jnp.where(x > 0, x, slope * x)


def _softmax_last(e):
    # e already carries any additive edge bias; off-edge entries underflow to 0.
    m = jnp.max(e, axis=-1, keepdims=True)
    p = jnp.exp(e - m)
    return p * pl.reciprocal(jnp.sum(p, axis=-1, keepdims=True), approx=True)


# ------------------------------ fused kernel ------------------------------------
def gene_gat_kernel(x_ref, adj_ref, bmask_ref, sp_ref, wbig_ref, ws_ref, out_ref):
    f32, bf16 = jnp.float32, jnp.bfloat16
    H, K, P = HIDDEN, CLUSTER_NUM, POOLING_DIM
    C0 = H // NUM_HEADS
    N = x_ref.shape[0]
    B = bmask_ref.shape[0]

    # additive edge bias: 0 on edges (incl. self-loops), -1e30 off-edge
    nbias = (adj_ref[...].astype(f32) - 1.0) * 1e30                       # [N, N]

    # ---- input_proj (input_dim == 1 -> broadcast) + LayerNorm + ReLU ----------
    h = x_ref[...].astype(f32) * sp_ref[R_W_IN:R_W_IN + 1, :] + sp_ref[R_B_IN:R_B_IN + 1, :]
    h = _layernorm(h, sp_ref[R_LN_IN_G:R_LN_IN_G + 1, :], sp_ref[R_LN_IN_B:R_LN_IN_B + 1, :])
    h_bf = jnp.maximum(h, 0.0).astype(bf16)     # dropout (eval) = identity

    attp = ws_ref[WS_ATT:WS_ATT + 8, :]         # [8, 256] bf16: all attention vectors

    # ---- GAT layer 0: heads=2, concat=True -------------------------------------
    xp0 = jnp.dot(h_bf, wbig_ref[:, C_W0:C_W0 + H],
                  preferred_element_type=f32).astype(bf16)                # [N, H]
    dst0 = lax.dot_general(xp0, attp[2:4, :H], TRANS_B, preferred_element_type=f32)  # [N, 2]
    src0 = lax.dot_general(attp[0:2, :H], xp0, TRANS_B, preferred_element_type=f32)  # [2, N]
    outs = []
    for hd in range(NUM_HEADS):
        e = _leaky_relu(dst0[:, hd:hd + 1] + src0[hd:hd + 1, :], NEG_SLOPE_GAT) + nbias
        alpha = _softmax_last(e).astype(bf16)
        outs.append(jnp.dot(alpha, xp0[:, hd * C0:(hd + 1) * C0],
                            preferred_element_type=f32))                 # [N, C0]
    conv0 = jnp.concatenate(outs, axis=1) + sp_ref[R_BIAS0:R_BIAS0 + 1, :]
    res0 = jnp.dot(h_bf, wbig_ref[:, C_WR0:C_WR0 + H],
                   preferred_element_type=f32) + sp_ref[R_BR0:R_BR0 + 1, :]
    x1_bf = jnp.maximum(conv0 + res0, 0.0).astype(bf16)                   # [N, H]

    # ---- GAT layer 1: heads=2, concat=False -> head mean ------------------------
    xp1 = jnp.dot(x1_bf, wbig_ref[:, C_W1:C_W1 + 2 * H],
                  preferred_element_type=f32).astype(bf16)                # [N, 2H]
    # both heads' scores via 256-lane block-diagonal attention rows (2 matmuls)
    dc = lax.dot_general(xp1, attp[6:8, :], TRANS_B, preferred_element_type=f32)   # [N, 2]
    sr = lax.dot_general(attp[4:6, :], xp1, TRANS_B, preferred_element_type=f32)   # [2, N]
    alphas = []
    for hd in range(NUM_HEADS):
        e = _leaky_relu(dc[:, hd:hd + 1] + sr[hd:hd + 1, :], NEG_SLOPE_GAT) + nbias
        alphas.append(_softmax_last(e).astype(bf16))
    # fuse the two per-head aggregation matmuls into one K=2N contraction (head sum)
    alpha_cat = jnp.concatenate(alphas, axis=1)                            # [N, 2N]
    xp1_stack = jnp.concatenate([xp1[:, :H], xp1[:, H:]], axis=0)          # [2N, H]
    conv1 = jnp.dot(alpha_cat, xp1_stack, preferred_element_type=f32) * (1.0 / NUM_HEADS) \
        + sp_ref[R_BIAS1:R_BIAS1 + 1, :]
    res1 = jnp.dot(x1_bf, wbig_ref[:, C_WR1:C_WR1 + H],
                   preferred_element_type=f32) + sp_ref[R_BR1:R_BR1 + 1, :]
    x2_bf = jnp.maximum(conv1 + res1, 0.0).astype(bf16)                    # [N, H]

    # ---- cluster assignment: Linear -> Linear -> softmax over clusters ----------
    # wc1 is zero-padded to 128 output cols; bc1 padding is zero, so c1[:, 64:] == 0.
    c1 = jnp.dot(x2_bf, wbig_ref[:, C_WC1:C_WC1 + H],
                 preferred_element_type=f32) + sp_ref[R_BC1:R_BC1 + 1, :]  # [N, H]
    c2 = lax.dot_general(c1.astype(bf16), ws_ref[WS_WC2T:WS_WC2T + K, :H], TRANS_B,
                         preferred_element_type=f32) \
        + sp_ref[R_BC2:R_BC2 + 1, :][:, :K]                                # [N, K]
    assign = _softmax_last(c2)                                             # [N, K]

    # ---- per-graph cluster pooling fused into one [B*K, N] @ [N, H] matmul ------
    assign_t = jnp.transpose(assign)                                       # [K, N]
    stacked = (bmask_ref[...][:, None, :] * assign_t[None, :, :]).reshape(B * K, N)
    clusters = jnp.dot(stacked.astype(bf16), x2_bf, preferred_element_type=f32)  # [B*K, H]
    cl3 = clusters.reshape(B, K, H)
    rep = jnp.concatenate([jnp.max(cl3, axis=1), jnp.min(cl3, axis=1)], axis=1)   # [B, 2H]

    # ---- dim_reduction: Linear -> LayerNorm -> LeakyReLU(0.1) --------------------
    red = lax.dot_general(rep.astype(bf16), ws_ref[WS_WDT:WS_WDT + P, :], TRANS_B,
                          preferred_element_type=f32) + sp_ref[R_BD:R_BD + 1, :][:, :P]
    red = _layernorm(red, sp_ref[R_LN_D_G:R_LN_D_G + 1, :][:, :P],
                     sp_ref[R_LN_D_B:R_LN_D_B + 1, :][:, :P])
    red = _leaky_relu(red, NEG_SLOPE_RED)                                  # [B, P]

    # ---- classifier (Dropout = identity in eval), lane-dense padded output -------
    logits_pad = jnp.dot(red.astype(bf16), ws_ref[WS_WCLS:WS_WCLS + P, :H],
                         preferred_element_type=f32) + sp_ref[R_BCLS:R_BCLS + 1, :]
    out_ref[...] = logits_pad                                              # [B, 128]


# ------------------------------ wrapper ------------------------------------------
def gene_gat_forward(x, adj, bmask, sp, wbig, wsmall):
    B = bmask.shape[0]
    vmem = pl.BlockSpec(memory_space=pltpu.MemorySpace.VMEM)
    out_pad = pl.pallas_call(
        gene_gat_kernel,
        out_shape=jax.ShapeDtypeStruct((B, LANES), jnp.float32),
        in_specs=[vmem] * 6,
        out_specs=vmem,
    )(x, adj, bmask, sp, wbig, wsmall)
    return out_pad[:, :OUTPUT_DIM]


# ------------------------------ parameter init ------------------------------------
def _kaiming(key, fan_in, shape):
    return jax.random.normal(key, shape, jnp.float32) * jnp.sqrt(2.0 / fan_in)


def init_params(key):
    keys = jax.random.split(key, 16)
    h = HIDDEN
    c0 = h // NUM_HEADS
    f32 = jnp.float32
    return [
        _kaiming(keys[0], INPUT_DIM, (INPUT_DIM, h)),               # input_proj W   [1, H]
        jnp.zeros((1, h), f32),                                     # input_proj b
        jnp.ones((1, h), f32),                                      # input_norm gamma
        jnp.zeros((1, h), f32),                                     # input_norm beta
        _kaiming(keys[1], h, (h, NUM_HEADS * c0)),                  # GAT0 lin W     [H, H]
        jax.random.normal(keys[2], (NUM_HEADS, c0), f32) * 0.1,     # GAT0 att_src
        jax.random.normal(keys[3], (NUM_HEADS, c0), f32) * 0.1,     # GAT0 att_dst
        jnp.zeros((1, NUM_HEADS * c0), f32),                        # GAT0 bias
        _kaiming(keys[4], h, (h, h)),                               # res0 W
        jnp.zeros((1, h), f32),                                     # res0 b
        _kaiming(keys[5], h, (h, NUM_HEADS * h)),                   # GAT1 lin W     [H, 2H]
        jax.random.normal(keys[6], (NUM_HEADS, h), f32) * 0.1,      # GAT1 att_src
        jax.random.normal(keys[7], (NUM_HEADS, h), f32) * 0.1,      # GAT1 att_dst
        jnp.zeros((1, h), f32),                                     # GAT1 bias
        _kaiming(keys[8], h, (h, h)),                               # res1 W
        jnp.zeros((1, h), f32),                                     # res1 b
        _kaiming(keys[9], h, (h, h // 2)),                          # cluster W1  [H, 64]
        jnp.zeros((1, h // 2), f32),                                # cluster b1
        _kaiming(keys[10], h // 2, (h // 2, CLUSTER_NUM)),          # cluster W2  [64, K]
        jnp.zeros((1, CLUSTER_NUM), f32),                           # cluster b2
        _kaiming(keys[11], 2 * h, (2 * h, POOLING_DIM)),            # dim_reduction W [2H, P]
        jnp.zeros((1, POOLING_DIM), f32),                           # dim_reduction b
        jnp.ones((1, POOLING_DIM), f32),                            # dim_reduction LN gamma
        jnp.zeros((1, POOLING_DIM), f32),                           # dim_reduction LN beta
        _kaiming(keys[12], POOLING_DIM, (POOLING_DIM, OUTPUT_DIM)), # classifier W [P, O]
        jnp.zeros((1, OUTPUT_DIM), f32),                            # classifier b
    ]


def pack_params(params):
    (w_in, b_in, g_in, be_in,
     w0, asrc0, adst0, bias0, wr0, br0,
     w1, asrc1, adst1, bias1, wr1, br1,
     wc1, bc1, wc2, bc2,
     wd, bd, g_d, be_d,
     wcls, bcls) = params
    H, C0, K = HIDDEN, HIDDEN // NUM_HEADS, CLUSTER_NUM
    f32, bf16 = jnp.float32, jnp.bfloat16

    def row128(v):
        v = jnp.reshape(v, (1, -1)).astype(f32)
        return jnp.pad(v, ((0, 0), (0, LANES - v.shape[1])))

    # ---- f32 biases / LN params pack [16, 128] ----------------------------------
    sp = jnp.concatenate([
        row128(w_in), row128(b_in), row128(g_in), row128(be_in),          # 0-3
        row128(bias0), row128(br0), row128(bias1), row128(br1),           # 4-7
        row128(bc1), row128(bc2), row128(bd), row128(g_d), row128(be_d),  # 8-12
        row128(bcls),                                                     # 13
        jnp.zeros((SP_ROWS - 14, LANES), f32),                            # 14-15 pad
    ], axis=0)
    assert sp.shape == (SP_ROWS, LANES)

    # ---- bf16 big-weight pack [128, 768] ----------------------------------------
    wc1_pad = jnp.pad(wc1, ((0, 0), (0, H - wc1.shape[1])))               # [H, H]
    wbig = jnp.concatenate([w0, wr0, w1, wr1, wc1_pad], axis=1).astype(bf16)
    assert wbig.shape == (H, WBIG_COLS)

    # ---- bf16 small-weight pack [64, 256] (groups aligned to 16-row tiles) -------
    def blockdiag(vecs, blk):
        heads = vecs.shape[0]
        out = jnp.zeros((heads, heads * blk), f32)
        for hh in range(heads):
            out = out.at[hh, hh * blk:(hh + 1) * blk].set(vecs[hh].astype(f32))
        return out

    def pad_lanes(m):
        m = m.astype(f32)
        return jnp.pad(m, ((0, 0), (0, WS_LANES - m.shape[1])))

    ws = jnp.concatenate([
        pad_lanes(blockdiag(asrc0, C0)),       # rows 0:2   att0_src block-diag
        pad_lanes(blockdiag(adst0, C0)),       # rows 2:4   att0_dst block-diag
        blockdiag(asrc1, H),                   # rows 4:6   att1_src block-diag (256 lanes)
        blockdiag(adst1, H),                   # rows 6:8   att1_dst block-diag (256 lanes)
        jnp.zeros((8, WS_LANES), f32),         # rows 8:16  pad
        pad_lanes(wc2.T),                      # rows 16:24 cluster W2^T [K, 64]
        jnp.zeros((8, WS_LANES), f32),         # rows 24:32 pad
        wd.T.astype(f32),                      # rows 32:48 dim_reduction W^T [P, 2H]
        pad_lanes(wcls),                       # rows 48:64 classifier W padded [P, O->256]
    ], axis=0).astype(bf16)
    assert ws.shape == (WS_ROWS, WS_LANES)
    return sp, wbig, ws


# ------------------------------ main ----------------------------------------------
if __name__ == "__main__":
    key = jax.random.PRNGKey(0)
    kx, kp = jax.random.split(key, 2)

    B = 8               # graphs per call -> N = 128 nodes fills the MXU M dimension
    N_PER_GRAPH = 16
    N = B * N_PER_GRAPH

    # node features x : [N, input_dim]
    x = jax.random.normal(kx, (N, INPUT_DIM), dtype=jnp.float32)

    # edge_index: bidirectional ring inside each graph -> dense adjacency adj[dst, src]
    src_list, dst_list = [], []
    for g in range(B):
        base = g * N_PER_GRAPH
        for i in range(N_PER_GRAPH):
            j = (i + 1) % N_PER_GRAPH
            src_list += [base + i, base + j]
            dst_list += [base + j, base + i]
    src = jnp.array(src_list, dtype=jnp.int32)
    dst = jnp.array(dst_list, dtype=jnp.int32)
    adj = jnp.zeros((N, N), jnp.float32).at[dst, src].set(1.0)
    adj = jnp.maximum(adj, jnp.eye(N, dtype=jnp.float32))   # GATConv add_self_loops=True
    adj = adj.astype(jnp.bfloat16)                          # 0/1 mask, halved DMA bytes

    # batch vector -> one-hot per-graph mask [B, N]
    batch = jnp.repeat(jnp.arange(B, dtype=jnp.int32), N_PER_GRAPH)
    bmask = (batch[None, :] == jnp.arange(B, dtype=jnp.int32)[:, None]).astype(jnp.float32)

    params = init_params(kp)
    sp, wbig, wsmall = pack_params(params)

    logits = gene_gat_forward(x, adj, bmask, sp, wbig, wsmall)
    logits = jax.block_until_ready(logits)

    assert logits.shape == (B, OUTPUT_DIM)
    assert bool(jnp.all(jnp.isfinite(logits)))
    print("KERNEL_OK")
</pallas_src>

<mosaic_0001>
module attributes {stable_mosaic.version = 11 : i64} {
  func.func @gene_gat_kernel(%arg0: memref<128x1xf32, #tpu.memory_space<vmem>>, %arg1: memref<128x128xbf16, #tpu.memory_space<vmem>>, %arg2: memref<8x128xf32, #tpu.memory_space<vmem>>, %arg3: memref<16x128xf32, #tpu.memory_space<vmem>>, %arg4: memref<128x768xbf16, #tpu.memory_space<vmem>>, %arg5: memref<64x256xbf16, #tpu.memory_space<vmem>>, %arg6: memref<8x128xf32, #tpu.memory_space<vmem>>) attributes {dimension_semantics = [], scalar_prefetch = 0 : i64, scratch_operands = 0 : i64, tpu.core_type = #tpu.core_type<tc>} {
    %c0 = arith.constant 0 : index
    %c0_0 = arith.constant 0 : index
    %0 = vector.load %arg1[%c0, %c0_0] : memref<128x128xbf16, #tpu.memory_space<vmem>>, vector<128x128xbf16>
    %1 = arith.extf %0 : vector<128x128xbf16> to vector<128x128xf32>
    %cst = arith.constant 1.000000e+00 : f32
    %2 = vector.broadcast %cst : f32 to vector<128x128xf32>
    %3 = arith.subf %1, %2 : vector<128x128xf32>
    %cst_1 = arith.constant 1.000000e+30 : f32
    %4 = vector.broadcast %cst_1 : f32 to vector<128x128xf32>
    %5 = arith.mulf %3, %4 : vector<128x128xf32>
    %c0_2 = arith.constant 0 : index
    %c0_3 = arith.constant 0 : index
    %6 = vector.load %arg0[%c0_2, %c0_3] : memref<128x1xf32, #tpu.memory_space<vmem>>, vector<128x1xf32>
    %c0_4 = arith.constant 0 : index
    %c0_5 = arith.constant 0 : index
    %7 = vector.load %arg3[%c0_4, %c0_5] : memref<16x128xf32, #tpu.memory_space<vmem>>, vector<1x128xf32>
    %8 = vector.broadcast %6 : vector<128x1xf32> to vector<128x128xf32>
    %9 = vector.broadcast %7 : vector<1x128xf32> to vector<128x128xf32>
    %10 = arith.mulf %8, %9 : vector<128x128xf32>
    %c1 = arith.constant 1 : index
    %c0_6 = arith.constant 0 : index
    %11 = vector.load %arg3[%c1, %c0_6] : memref<16x128xf32, #tpu.memory_space<vmem>>, vector<1x128xf32>
    %12 = vector.broadcast %11 : vector<1x128xf32> to vector<128x128xf32>
    %13 = arith.addf %10, %12 : vector<128x128xf32>
    %c2 = arith.constant 2 : index
    %c0_7 = arith.constant 0 : index
    %14 = vector.load %arg3[%c2, %c0_7] : memref<16x128xf32, #tpu.memory_space<vmem>>, vector<1x128xf32>
    %c3 = arith.constant 3 : index
    %c0_8 = arith.constant 0 : index
    %15 = vector.load %arg3[%c3, %c0_8] : memref<16x128xf32, #tpu.memory_space<vmem>>, vector<1x128xf32>
    %cst_9 = arith.constant dense<0.000000e+00> : vector<128xf32>
    %16 = vector.multi_reduction <add>, %13, %cst_9 [1] : vector<128x128xf32> to vector<128xf32>
    %17 = vector.shape_cast %16 : vector<128xf32> to vector<128x1xf32>
    %cst_10 = arith.constant 1.280000e+02 : f32
    %18 = vector.broadcast %cst_10 : f32 to vector<128x1xf32>
    %19 = arith.divf %17, %18 : vector<128x1xf32>
    %20 = vector.broadcast %19 : vector<128x1xf32> to vector<128x128xf32>
    %21 = arith.subf %13, %20 : vector<128x128xf32>
    %22 = arith.mulf %21, %21 : vector<128x128xf32>
    %cst_11 = arith.constant dense<0.000000e+00> : vector<128xf32>
    %23 = vector.multi_reduction <add>, %22, %cst_11 [1] : vector<128x128xf32> to vector<128xf32>
    %24 = vector.shape_cast %23 : vector<128xf32> to vector<128x1xf32>
    %cst_12 = arith.constant 1.280000e+02 : f32
    %25 = vector.broadcast %cst_12 : f32 to vector<128x1xf32>
    %26 = arith.divf %24, %25 : vector<128x1xf32>
    %27 = vector.broadcast %19 : vector<128x1xf32> to vector<128x128xf32>
    %28 = arith.subf %13, %27 : vector<128x128xf32>
    %cst_13 = arith.constant 9.99999974E-6 : f32
    %29 = vector.broadcast %cst_13 : f32 to vector<128x1xf32>
    %30 = arith.addf %26, %29 : vector<128x1xf32>
    %31 = math.rsqrt %30 : vector<128x1xf32>
    %32 = vector.broadcast %31 : vector<128x1xf32> to vector<128x128xf32>
    %33 = arith.mulf %28, %32 : vector<128x128xf32>
    %34 = vector.broadcast %14 : vector<1x128xf32> to vector<128x128xf32>
    %35 = arith.mulf %33, %34 : vector<128x128xf32>
    %36 = vector.broadcast %15 : vector<1x128xf32> to vector<128x128xf32>
    %37 = arith.addf %35, %36 : vector<128x128xf32>
    %cst_14 = arith.constant 0.000000e+00 : f32
    %38 = vector.broadcast %cst_14 : f32 to vector<128x128xf32>
    %39 = arith.maximumf %37, %38 : vector<128x128xf32>
    %40 = arith.truncf %39 : vector<128x128xf32> to vector<128x128xbf16>
    %c0_15 = arith.constant 0 : index
    %c0_16 = arith.constant 0 : index
    %41 = vector.load %arg5[%c0_15, %c0_16] : memref<64x256xbf16, #tpu.memory_space<vmem>>, vector<8x256xbf16>
    %c0_17 = arith.constant 0 : index
    %c0_18 = arith.constant 0 : index
    %42 = vector.load %arg4[%c0_17, %c0_18] : memref<128x768xbf16, #tpu.memory_space<vmem>>, vector<128x128xbf16>
    %cst_19 = arith.constant dense<0.000000e+00> : vector<128x128xf32>
    %43 = tpu.matmul %40, %42, %cst_19 {dimension_numbers = #tpu.dot_dimension_numbers<[1], [0], [0], [1], [0, 0, 1, 1], [], []>} : vector<128x128xbf16>, vector<128x128xbf16>, vector<128x128xf32> -> vector<128x128xf32>
    %44 = arith.truncf %43 : vector<128x128xf32> to vector<128x128xbf16>
    %45 = vector.extract_strided_slice %41 {offsets = [2, 0], sizes = [2, 128], strides = [1, 1]} : vector<8x256xbf16> to vector<2x128xbf16>
    %cst_20 = arith.constant dense<0.000000e+00> : vector<128x2xf32>
    %46 = tpu.matmul %44, %45, %cst_20 {dimension_numbers = #tpu.dot_dimension_numbers<[1], [1], [0], [0], [0, 0, 1, 0], [], []>} : vector<128x128xbf16>, vector<2x128xbf16>, vector<128x2xf32> -> vector<128x2xf32>
    %47 = vector.extract_strided_slice %41 {offsets = [0, 0], sizes = [2, 128], strides = [1, 1]} : vector<8x256xbf16> to vector<2x128xbf16>
    %cst_21 = arith.constant dense<0.000000e+00> : vector<2x128xf32>
    %48 = tpu.matmul %47, %44, %cst_21 {dimension_numbers = #tpu.dot_dimension_numbers<[1], [1], [0], [0], [0, 0, 1, 0], [], []>} : vector<2x128xbf16>, vector<128x128xbf16>, vector<2x128xf32> -> vector<2x128xf32>
    %49 = vector.extract_strided_slice %46 {offsets = [0, 0], sizes = [128, 1], strides = [1, 1]} : vector<128x2xf32> to vector<128x1xf32>
    %50 = vector.extract_strided_slice %48 {offsets = [0, 0], sizes = [1, 128], strides = [1, 1]} : vector<2x128xf32> to vector<1x128xf32>
    %51 = vector.broadcast %49 : vector<128x1xf32> to vector<128x128xf32>
    %52 = vector.broadcast %50 : vector<1x128xf32> to vector<128x128xf32>
    %53 = arith.addf %51, %52 : vector<128x128xf32>
    %cst_22 = arith.constant 0.000000e+00 : f32
    %54 = vector.broadcast %cst_22 : f32 to vector<128x128xf32>
    %55 = arith.cmpf ogt, %53, %54 : vector<128x128xf32>
    %cst_23 = arith.constant 2.000000e-01 : f32
    %56 = vector.broadcast %cst_23 : f32 to vector<128x128xf32>
    %57 = arith.mulf %56, %53 : vector<128x128xf32>
    %58 = arith.select %55, %53, %57 : vector<128x128xi1>, vector<128x128xf32>
    %59 = arith.addf %58, %5 : vector<128x128xf32>
    %cst_24 = arith.constant dense<0xFF800000> : vector<128xf32>
    %60 = vector.multi_reduction <maximumf>, %59, %cst_24 [1] : vector<128x128xf32> to vector<128xf32>
    %61 = vector.shape_cast %60 : vector<128xf32> to vector<128x1xf32>
    %62 = vector.broadcast %61 : vector<128x1xf32> to vector<128x128xf32>
    %63 = arith.subf %59, %62 : vector<128x128xf32>
    %64 = math.exp %63 : vector<128x128xf32>
    %cst_25 = arith.constant dense<0.000000e+00> : vector<128xf32>
    %65 = vector.multi_reduction <add>, %64, %cst_25 [1] : vector<128x128xf32> to vector<128xf32>
    %66 = vector.shape_cast %65 : vector<128xf32> to vector<128x1xf32>
    %67 = tpu.reciprocal %66 {approx = true} : vector<128x1xf32> -> vector<128x1xf32>
    %68 = vector.broadcast %67 : vector<128x1xf32> to vector<128x128xf32>
    %69 = arith.mulf %64, %68 : vector<128x128xf32>
    %70 = arith.truncf %69 : vector<128x128xf32> to vector<128x128xbf16>
    %71 = vector.extract_strided_slice %44 {offsets = [0, 0], sizes = [128, 64], strides = [1, 1]} : vector<128x128xbf16> to vector<128x64xbf16>
    %cst_26 = arith.constant dense<0.000000e+00> : vector<128x64xf32>
    %72 = tpu.matmul %70, %71, %cst_26 {dimension_numbers = #tpu.dot_dimension_numbers<[1], [0], [0], [1], [0, 0, 1, 1], [], []>} : vector<128x128xbf16>, vector<128x64xbf16>, vector<128x64xf32> -> vector<128x64xf32>
    %73 = vector.extract_strided_slice %46 {offsets = [0, 1], sizes = [128, 1], strides = [1, 1]} : vector<128x2xf32> to vector<128x1xf32>
    %74 = vector.extract_strided_slice %48 {offsets = [1, 0], sizes = [1, 128], strides = [1, 1]} : vector<2x128xf32> to vector<1x128xf32>
    %75 = vector.broadcast %73 : vector<128x1xf32> to vector<128x128xf32>
    %76 = vector.broadcast %74 : vector<1x128xf32> to vector<128x128xf32>
    %77 = arith.addf %75, %76 : vector<128x128xf32>
    %cst_27 = arith.constant 0.000000e+00 : f32
    %78 = vector.broadcast %cst_27 : f32 to vector<128x128xf32>
    %79 = arith.cmpf ogt, %77, %78 : vector<128x128xf32>
    %cst_28 = arith.constant 2.000000e-01 : f32
    %80 = vector.broadcast %cst_28 : f32 to vector<128x128xf32>
    %81 = arith.mulf %80, %77 : vector<128x128xf32>
    %82 = arith.select %79, %77, %81 : vector<128x128xi1>, vector<128x128xf32>
    %83 = arith.addf %82, %5 : vector<128x128xf32>
    %cst_29 = arith.constant dense<0xFF800000> : vector<128xf32>
    %84 = vector.multi_reduction <maximumf>, %83, %cst_29 [1] : vector<128x128xf32> to vector<128xf32>
    %85 = vector.shape_cast %84 : vector<128xf32> to vector<128x1xf32>
    %86 = vector.broadcast %85 : vector<128x1xf32> to vector<128x128xf32>
    %87 = arith.subf %83, %86 : vector<128x128xf32>
    %88 = math.exp %87 : vector<128x128xf32>
    %cst_30 = arith.constant dense<0.000000e+00> : vector<128xf32>
    %89 = vector.multi_reduction <add>, %88, %cst_30 [1] : vector<128x128xf32> to vector<128xf32>
    %90 = vector.shape_cast %89 : vector<128xf32> to vector<128x1xf32>
    %91 = tpu.reciprocal %90 {approx = true} : vector<128x1xf32> -> vector<128x1xf32>
    %92 = vector.broadcast %91 : vector<128x1xf32> to vector<128x128xf32>
    %93 = arith.mulf %88, %92 : vector<128x128xf32>
    %94 = arith.truncf %93 : vector<128x128xf32> to vector<128x128xbf16>
    %95 = vector.extract_strided_slice %44 {offsets = [0, 64], sizes = [128, 64], strides = [1, 1]} : vector<128x128xbf16> to vector<128x64xbf16>
    %cst_31 = arith.constant dense<0.000000e+00> : vector<128x64xf32>
    %96 = tpu.matmul %94, %95, %cst_31 {dimension_numbers = #tpu.dot_dimension_numbers<[1], [0], [0], [1], [0, 0, 1, 1], [], []>} : vector<128x128xbf16>, vector<128x64xbf16>, vector<128x64xf32> -> vector<128x64xf32>
    %97 = tpu.concatenate %72, %96 in 1 : vector<128x64xf32>, vector<128x64xf32> -> vector<128x128xf32>
    %c4 = arith.constant 4 : index
    %c0_32 = arith.constant 0 : index
    %98 = vector.load %arg3[%c4, %c0_32] : memref<16x128xf32, #tpu.memory_space<vmem>>, vector<1x128xf32>
    %99 = vector.broadcast %98 : vector<1x128xf32> to vector<128x128xf32>
    %100 = arith.addf %97, %99 : vector<128x128xf32>
    %c0_33 = arith.constant 0 : index
    %c128 = arith.constant 128 : index
    %101 = vector.load %arg4[%c0_33, %c128] : memref<128x768xbf16, #tpu.memory_space<vmem>>, vector<128x128xbf16>
    %cst_34 = arith.constant dense<0.000000e+00> : vector<128x128xf32>
    %102 = tpu.matmul %40, %101, %cst_34 {dimension_numbers = #tpu.dot_dimension_numbers<[1], [0], [0], [1], [0, 0, 1, 1], [], []>} : vector<128x128xbf16>, vector<128x128xbf16>, vector<128x128xf32> -> vector<128x128xf32>
    %c5 = arith.constant 5 : index
    %c0_35 = arith.constant 0 : index
    %103 = vector.load %arg3[%c5, %c0_35] : memref<16x128xf32, #tpu.memory_space<vmem>>, vector<1x128xf32>
    %104 = vector.broadcast %103 : vector<1x128xf32> to vector<128x128xf32>
    %105 = arith.addf %102, %104 : vector<128x128xf32>
    %106 = arith.addf %100, %105 : vector<128x128xf32>
    %cst_36 = arith.constant 0.000000e+00 : f32
    %107 = vector.broadcast %cst_36 : f32 to vector<128x128xf32>
    %108 = arith.maximumf %106, %107 : vector<128x128xf32>
    %109 = arith.truncf %108 : vector<128x128xf32> to vector<128x128xbf16>
    %c0_37 = arith.constant 0 : index
    %c256 = arith.constant 256 : index
    %110 = vector.load %arg4[%c0_37, %c256] : memref<128x768xbf16, #tpu.memory_space<vmem>>, vector<128x256xbf16>
    %cst_38 = arith.constant dense<0.000000e+00> : vector<128x256xf32>
    %111 = tpu.matmul %109, %110, %cst_38 {dimension_numbers = #tpu.dot_dimension_numbers<[1], [0], [0], [1], [0, 0, 1, 1], [], []>} : vector<128x128xbf16>, vector<128x256xbf16>, vector<128x256xf32> -> vector<128x256xf32>
    %112 = arith.truncf %111 : vector<128x256xf32> to vector<128x256xbf16>
    %113 = vector.extract_strided_slice %41 {offsets = [6, 0], sizes = [2, 256], strides = [1, 1]} : vector<8x256xbf16> to vector<2x256xbf16>
    %cst_39 = arith.constant dense<0.000000e+00> : vector<128x2xf32>
    %114 = tpu.matmul %112, %113, %cst_39 {dimension_numbers = #tpu.dot_dimension_numbers<[1], [1], [0], [0], [0, 0, 1, 0], [], []>} : vector<128x256xbf16>, vector<2x256xbf16>, vector<128x2xf32> -> vector<128x2xf32>
    %115 = vector.extract_strided_slice %41 {offsets = [4, 0], sizes = [2, 256], strides = [1, 1]} : vector<8x256xbf16> to vector<2x256xbf16>
    %cst_40 = arith.constant dense<0.000000e+00> : vector<2x128xf32>
    %116 = tpu.matmul %115, %112, %cst_40 {dimension_numbers = #tpu.dot_dimension_numbers<[1], [1], [0], [0], [0, 0, 1, 0], [], []>} : vector<2x256xbf16>, vector<128x256xbf16>, vector<2x128xf32> -> vector<2x128xf32>
    %117 = vector.extract_strided_slice %114 {offsets = [0, 0], sizes = [128, 1], strides = [1, 1]} : vector<128x2xf32> to vector<128x1xf32>
    %118 = vector.extract_strided_slice %116 {offsets = [0, 0], sizes = [1, 128], strides = [1, 1]} : vector<2x128xf32> to vector<1x128xf32>
    %119 = vector.broadcast %117 : vector<128x1xf32> to vector<128x128xf32>
    %120 = vector.broadcast %118 : vector<1x128xf32> to vector<128x128xf32>
    %121 = arith.addf %119, %120 : vector<128x128xf32>
    %cst_41 = arith.constant 0.000000e+00 : f32
    %122 = vector.broadcast %cst_41 : f32 to vector<128x128xf32>
    %123 = arith.cmpf ogt, %121, %122 : vector<128x128xf32>
    %cst_42 = arith.constant 2.000000e-01 : f32
    %124 = vector.broadcast %cst_42 : f32 to vector<128x128xf32>
    %125 = arith.mulf %124, %121 : vector<128x128xf32>
    %126 = arith.select %123, %121, %125 : vector<128x128xi1>, vector<128x128xf32>
    %127 = arith.addf %126, %5 : vector<128x128xf32>
    %cst_43 = arith.constant dense<0xFF800000> : vector<128xf32>
    %128 = vector.multi_reduction <maximumf>, %127, %cst_43 [1] : vector<128x128xf32> to vector<128xf32>
    %129 = vector.shape_cast %128 : vector<128xf32> to vector<128x1xf32>
    %130 = vector.broadcast %129 : vector<128x1xf32> to vector<128x128xf32>
    %131 = arith.subf %127, %130 : vector<128x128xf32>
    %132 = math.exp %131 : vector<128x128xf32>
    %cst_44 = arith.constant dense<0.000000e+00> : vector<128xf32>
    %133 = vector.multi_reduction <add>, %132, %cst_44 [1] : vector<128x128xf32> to vector<128xf32>
    %134 = vector.shape_cast %133 : vector<128xf32> to vector<128x1xf32>
    %135 = tpu.reciprocal %134 {approx = true} : vector<128x1xf32> -> vector<128x1xf32>
    %136 = vector.broadcast %135 : vector<128x1xf32> to vector<128x128xf32>
    %137 = arith.mulf %132, %136 : vector<128x128xf32>
    %138 = arith.truncf %137 : vector<128x128xf32> to vector<128x128xbf16>
    %139 = vector.extract_strided_slice %114 {offsets = [0, 1], sizes = [128, 1], strides = [1, 1]} : vector<128x2xf32> to vector<128x1xf32>
    %140 = vector.extract_strided_slice %116 {offsets = [1, 0], sizes = [1, 128], strides = [1, 1]} : vector<2x128xf32> to vector<1x128xf32>
    %141 = vector.broadcast %139 : vector<128x1xf32> to vector<128x128xf32>
    %142 = vector.broadcast %140 : vector<1x128xf32> to vector<128x128xf32>
    %143 = arith.addf %141, %142 : vector<128x128xf32>
    %cst_45 = arith.constant 0.000000e+00 : f32
    %144 = vector.broadcast %cst_45 : f32 to vector<128x128xf32>
    %145 = arith.cmpf ogt, %143, %144 : vector<128x128xf32>
    %cst_46 = arith.constant 2.000000e-01 : f32
    %146 = vector.broadcast %cst_46 : f32 to vector<128x128xf32>
    %147 = arith.mulf %146, %143 : vector<128x128xf32>
    %148 = arith.select %145, %143, %147 : vector<128x128xi1>, vector<128x128xf32>
    %149 = arith.addf %148, %5 : vector<128x128xf32>
    %cst_47 = arith.constant dense<0xFF800000> : vector<128xf32>
    %150 = vector.multi_reduction <maximumf>, %149, %cst_47 [1] : vector<128x128xf32> to vector<128xf32>
    %151 = vector.shape_cast %150 : vector<128xf32> to vector<128x1xf32>
    %152 = vector.broadcast %151 : vector<128x1xf32> to vector<128x128xf32>
    %153 = arith.subf %149, %152 : vector<128x128xf32>
    %154 = math.exp %153 : vector<128x128xf32>
    %cst_48 = arith.constant dense<0.000000e+00> : vector<128xf32>
    %155 = vector.multi_reduction <add>, %154, %cst_48 [1] : vector<128x128xf32> to vector<128xf32>
    %156 = vector.shape_cast %155 : vector<128xf32> to vector<128x1xf32>
    %157 = tpu.reciprocal %156 {approx = true} : vector<128x1xf32> -> vector<128x1xf32>
    %158 = vector.broadcast %157 : vector<128x1xf32> to vector<128x128xf32>
    %159 = arith.mulf %154, %158 : vector<128x128xf32>
    %160 = arith.truncf %159 : vector<128x128xf32> to vector<128x128xbf16>
    %161 = tpu.concatenate %138, %160 in 1 : vector<128x128xbf16>, vector<128x128xbf16> -> vector<128x256xbf16>
    %162 = vector.extract_strided_slice %112 {offsets = [0, 0], sizes = [128, 128], strides = [1, 1]} : vector<128x256xbf16> to vector<128x128xbf16>
    %163 = vector.extract_strided_slice %112 {offsets = [0, 128], sizes = [128, 128], strides = [1, 1]} : vector<128x256xbf16> to vector<128x128xbf16>
    %164 = tpu.concatenate %162, %163 in 0 : vector<128x128xbf16>, vector<128x128xbf16> -> vector<256x128xbf16>
    %cst_49 = arith.constant dense<0.000000e+00> : vector<128x128xf32>
    %165 = tpu.matmul %161, %164, %cst_49 {dimension_numbers = #tpu.dot_dimension_numbers<[1], [0], [0], [1], [0, 0, 1, 1], [], []>} : vector<128x256xbf16>, vector<256x128xbf16>, vector<128x128xf32> -> vector<128x128xf32>
    %cst_50 = arith.constant 5.000000e-01 : f32
    %166 = vector.broadcast %cst_50 : f32 to vector<128x128xf32>
    %167 = arith.mulf %165, %166 : vector<128x128xf32>
    %c6 = arith.constant 6 : index
    %c0_51 = arith.constant 0 : index
    %168 = vector.load %arg3[%c6, %c0_51] : memref<16x128xf32, #tpu.memory_space<vmem>>, vector<1x128xf32>
    %169 = vector.broadcast %168 : vector<1x128xf32> to vector<128x128xf32>
    %170 = arith.addf %167, %169 : vector<128x128xf32>
    %c0_52 = arith.constant 0 : index
    %c512 = arith.constant 512 : index
    %171 = vector.load %arg4[%c0_52, %c512] : memref<128x768xbf16, #tpu.memory_space<vmem>>, vector<128x128xbf16>
    %cst_53 = arith.constant dense<0.000000e+00> : vector<128x128xf32>
    %172 = tpu.matmul %109, %171, %cst_53 {dimension_numbers = #tpu.dot_dimension_numbers<[1], [0], [0], [1], [0, 0, 1, 1], [], []>} : vector<128x128xbf16>, vector<128x128xbf16>, vector<128x128xf32> -> vector<128x128xf32>
    %c7 = arith.constant 7 : index
    %c0_54 = arith.constant 0 : index
    %173 = vector.load %arg3[%c7, %c0_54] : memref<16x128xf32, #tpu.memory_space<vmem>>, vector<1x128xf32>
    %174 = vector.broadcast %173 : vector<1x128xf32> to vector<128x128xf32>
    %175 = arith.addf %172, %174 : vector<128x128xf32>
    %176 = arith.addf %170, %175 : vector<128x128xf32>
    %cst_55 = arith.constant 0.000000e+00 : f32
    %177 = vector.broadcast %cst_55 : f32 to vector<128x128xf32>
    %178 = arith.maximumf %176, %177 : vector<128x128xf32>
    %179 = arith.truncf %178 : vector<128x128xf32> to vector<128x128xbf16>
    %c0_56 = arith.constant 0 : index
    %c640 = arith.constant 640 : index
    %180 = vector.load %arg4[%c0_56, %c640] : memref<128x768xbf16, #tpu.memory_space<vmem>>, vector<128x128xbf16>
    %cst_57 = arith.constant dense<0.000000e+00> : vector<128x128xf32>
    %181 = tpu.matmul %179, %180, %cst_57 {dimension_numbers = #tpu.dot_dimension_numbers<[1], [0], [0], [1], [0, 0, 1, 1], [], []>} : vector<128x128xbf16>, vector<128x128xbf16>, vector<128x128xf32> -> vector<128x128xf32>
    %c8 = arith.constant 8 : index
    %c0_58 = arith.constant 0 : index
    %182 = vector.load %arg3[%c8, %c0_58] : memref<16x128xf32, #tpu.memory_space<vmem>>, vector<1x128xf32>
    %183 = vector.broadcast %182 : vector<1x128xf32> to vector<128x128xf32>
    %184 = arith.addf %181, %183 : vector<128x128xf32>
    %185 = arith.truncf %184 : vector<128x128xf32> to vector<128x128xbf16>
    %c16 = arith.constant 16 : index
    %c0_59 = arith.constant 0 : index
    %186 = vector.load %arg5[%c16, %c0_59] : memref<64x256xbf16, #tpu.memory_space<vmem>>, vector<8x128xbf16>
    %cst_60 = arith.constant dense<0.000000e+00> : vector<128x8xf32>
    %187 = tpu.matmul %185, %186, %cst_60 {dimension_numbers = #tpu.dot_dimension_numbers<[1], [1], [0], [0], [0, 0, 1, 0], [], []>} : vector<128x128xbf16>, vector<8x128xbf16>, vector<128x8xf32> -> vector<128x8xf32>
    %c9 = arith.constant 9 : index
    %c0_61 = arith.constant 0 : index
    %188 = vector.load %arg3[%c9, %c0_61] : memref<16x128xf32, #tpu.memory_space<vmem>>, vector<1x128xf32>
    %189 = vector.extract_strided_slice %188 {offsets = [0, 0], sizes = [1, 8], strides = [1, 1]} : vector<1x128xf32> to vector<1x8xf32>
    %190 = vector.broadcast %189 : vector<1x8xf32> to vector<128x8xf32>
    %191 = arith.addf %187, %190 : vector<128x8xf32>
    %cst_62 = arith.constant dense<0xFF800000> : vector<128xf32>
    %192 = vector.multi_reduction <maximumf>, %191, %cst_62 [1] : vector<128x8xf32> to vector<128xf32>
    %193 = vector.shape_cast %192 : vector<128xf32> to vector<128x1xf32>
    %194 = vector.broadcast %193 : vector<128x1xf32> to vector<128x8xf32>
    %195 = arith.subf %191, %194 : vector<128x8xf32>
    %196 = math.exp %195 : vector<128x8xf32>
    %cst_63 = arith.constant dense<0.000000e+00> : vector<128xf32>
    %197 = vector.multi_reduction <add>, %196, %cst_63 [1] : vector<128x8xf32> to vector<128xf32>
    %198 = vector.shape_cast %197 : vector<128xf32> to vector<128x1xf32>
    %199 = tpu.reciprocal %198 {approx = true} : vector<128x1xf32> -> vector<128x1xf32>
    %200 = vector.broadcast %199 : vector<128x1xf32> to vector<128x8xf32>
    %201 = arith.mulf %196, %200 : vector<128x8xf32>
    %202 = tpu.transpose %201, [1, 0] : vector<128x8xf32> -> vector<8x128xf32>
    %c0_64 = arith.constant 0 : index
    %c0_65 = arith.constant 0 : index
    %203 = vector.load %arg2[%c0_64, %c0_65] : memref<8x128xf32, #tpu.memory_space<vmem>>, vector<8x128xf32>
    %204 = vector.shape_cast %203 : vector<8x128xf32> to vector<8x1x128xf32>
    %205 = vector.shape_cast %202 : vector<8x128xf32> to vector<1x8x128xf32>
    %206 = vector.broadcast %204 : vector<8x1x128xf32> to vector<8x8x128xf32>
    %207 = vector.broadcast %205 : vector<1x8x128xf32> to vector<8x8x128xf32>
    %208 = arith.mulf %206, %207 : vector<8x8x128xf32>
    %209 = vector.shape_cast %208 : vector<8x8x128xf32> to vector<64x128xf32>
    %210 = arith.truncf %209 : vector<64x128xf32> to vector<64x128xbf16>
    %cst_66 = arith.constant dense<0.000000e+00> : vector<64x128xf32>
    %211 = tpu.matmul %210, %179, %cst_66 {dimension_numbers = #tpu.dot_dimension_numbers<[1], [0], [0], [1], [0, 0, 1, 1], [], []>} : vector<64x128xbf16>, vector<128x128xbf16>, vector<64x128xf32> -> vector<64x128xf32>
    %212 = vector.shape_cast %211 : vector<64x128xf32> to vector<8x8x128xf32>
    %cst_67 = arith.constant dense<0xFF800000> : vector<8x128xf32>
    %213 = vector.multi_reduction <maximumf>, %212, %cst_67 [1] : vector<8x8x128xf32> to vector<8x128xf32>
    %cst_68 = arith.constant dense<0x7F800000> : vector<8x128xf32>
    %214 = vector.multi_reduction <minimumf>, %212, %cst_68 [1] : vector<8x8x128xf32> to vector<8x128xf32>
    %215 = tpu.concatenate %213, %214 in 1 : vector<8x128xf32>, vector<8x128xf32> -> vector<8x256xf32>
    %216 = arith.truncf %215 : vector<8x256xf32> to vector<8x256xbf16>
    %c32 = arith.constant 32 : index
    %c0_69 = arith.constant 0 : index
    %217 = vector.load %arg5[%c32, %c0_69] : memref<64x256xbf16, #tpu.memory_space<vmem>>, vector<16x256xbf16>
    %cst_70 = arith.constant dense<0.000000e+00> : vector<8x16xf32>
    %218 = tpu.matmul %216, %217, %cst_70 {dimension_numbers = #tpu.dot_dimension_numbers<[1], [1], [0], [0], [0, 0, 1, 0], [], []>} : vector<8x256xbf16>, vector<16x256xbf16>, vector<8x16xf32> -> vector<8x16xf32>
    %c10 = arith.constant 10 : index
    %c0_71 = arith.constant 0 : index
    %219 = vector.load %arg3[%c10, %c0_71] : memref<16x128xf32, #tpu.memory_space<vmem>>, vector<1x128xf32>
    %220 = vector.extract_strided_slice %219 {offsets = [0, 0], sizes = [1, 16], strides = [1, 1]} : vector<1x128xf32> to vector<1x16xf32>
    %221 = vector.broadcast %220 : vector<1x16xf32> to vector<8x16xf32>
    %222 = arith.addf %218, %221 : vector<8x16xf32>
    %c11 = arith.constant 11 : index
    %c0_72 = arith.constant 0 : index
    %223 = vector.load %arg3[%c11, %c0_72] : memref<16x128xf32, #tpu.memory_space<vmem>>, vector<1x128xf32>
    %224 = vector.extract_strided_slice %223 {offsets = [0, 0], sizes = [1, 16], strides = [1, 1]} : vector<1x128xf32> to vector<1x16xf32>
    %c12 = arith.constant 12 : index
    %c0_73 = arith.constant 0 : index
    %225 = vector.load %arg3[%c12, %c0_73] : memref<16x128xf32, #tpu.memory_space<vmem>>, vector<1x128xf32>
    %226 = vector.extract_strided_slice %225 {offsets = [0, 0], sizes = [1, 16], strides = [1, 1]} : vector<1x128xf32> to vector<1x16xf32>
    %cst_74 = arith.constant dense<0.000000e+00> : vector<8xf32>
    %227 = vector.multi_reduction <add>, %222, %cst_74 [1] : vector<8x16xf32> to vector<8xf32>
    %228 = vector.shape_cast %227 : vector<8xf32> to vector<8x1xf32>
    %cst_75 = arith.constant 1.600000e+01 : f32
    %229 = vector.broadcast %cst_75 : f32 to vector<8x1xf32>
    %230 = arith.divf %228, %229 : vector<8x1xf32>
    %231 = vector.broadcast %230 : vector<8x1xf32> to vector<8x16xf32>
    %232 = arith.subf %222, %231 : vector<8x16xf32>
    %233 = arith.mulf %232, %232 : vector<8x16xf32>
    %cst_76 = arith.constant dense<0.000000e+00> : vector<8xf32>
    %234 = vector.multi_reduction <add>, %233, %cst_76 [1] : vector<8x16xf32> to vector<8xf32>
    %235 = vector.shape_cast %234 : vector<8xf32> to vector<8x1xf32>
    %cst_77 = arith.constant 1.600000e+01 : f32
    %236 = vector.broadcast %cst_77 : f32 to vector<8x1xf32>
    %237 = arith.divf %235, %236 : vector<8x1xf32>
    %238 = vector.broadcast %230 : vector<8x1xf32> to vector<8x16xf32>
    %239 = arith.subf %222, %238 : vector<8x16xf32>
    %cst_78 = arith.constant 9.99999974E-6 : f32
    %240 = vector.broadcast %cst_78 : f32 to vector<8x1xf32>
    %241 = arith.addf %237, %240 : vector<8x1xf32>
    %242 = math.rsqrt %241 : vector<8x1xf32>
    %243 = vector.broadcast %242 : vector<8x1xf32> to vector<8x16xf32>
    %244 = arith.mulf %239, %243 : vector<8x16xf32>
    %245 = vector.broadcast %224 : vector<1x16xf32> to vector<8x16xf32>
    %246 = arith.mulf %244, %245 : vector<8x16xf32>
    %247 = vector.broadcast %226 : vector<1x16xf32> to vector<8x16xf32>
    %248 = arith.addf %246, %247 : vector<8x16xf32>
    %cst_79 = arith.constant 0.000000e+00 : f32
    %249 = vector.broadcast %cst_79 : f32 to vector<8x16xf32>
    %250 = arith.cmpf ogt, %248, %249 : vector<8x16xf32>
    %cst_80 = arith.constant 1.000000e-01 : f32
    %251 = vector.broadcast %cst_80 : f32 to vector<8x16xf32>
    %252 = arith.mulf %251, %248 : vector<8x16xf32>
    %253 = arith.select %250, %248, %252 : vector<8x16xi1>, vector<8x16xf32>
    %254 = arith.truncf %253 : vector<8x16xf32> to vector<8x16xbf16>
    %c48 = arith.constant 48 : index
    %c0_81 = arith.constant 0 : index
    %255 = vector.load %arg5[%c48, %c0_81] : memref<64x256xbf16, #tpu.memory_space<vmem>>, vector<16x128xbf16>
    %cst_82 = arith.constant dense<0.000000e+00> : vector<8x128xf32>
    %256 = tpu.matmul %254, %255, %cst_82 {dimension_numbers = #tpu.dot_dimension_numbers<[1], [0], [0], [1], [0, 0, 1, 1], [], []>} : vector<8x16xbf16>, vector<16x128xbf16>, vector<8x128xf32> -> vector<8x128xf32>
    %c13 = arith.constant 13 : index
    %c0_83 = arith.constant 0 : index
    %257 = vector.load %arg3[%c13, %c0_83] : memref<16x128xf32, #tpu.memory_space<vmem>>, vector<1x128xf32>
    %258 = vector.broadcast %257 : vector<1x128xf32> to vector<8x128xf32>
    %259 = arith.addf %256, %258 : vector<8x128xf32>
    %c0_84 = arith.constant 0 : index
    %c0_85 = arith.constant 0 : index
    %260 = vector.load %arg6[%c0_84, %c0_85] : memref<8x128xf32, #tpu.memory_space<vmem>>, vector<8x128xf32>
    tpu.vector_store %arg6[%c0_84, %c0_85], %259 {strides = array<i32>} : memref<8x128xf32, #tpu.memory_space<vmem>>, vector<8x128xf32>,
    return
  }
}

</mosaic_0001>

<llo_original>
// kernel: tpu_custom_call.1
$region0: #{tpu_custom_call.1}
  #allocation0 [shape = 'u32[]', space=smem, size = 0x4, offset = 0x4, fixed_abs, tag = 'smem constant byte address 0x4 - core index']
  #allocation1 [shape = 'u32[72,128]{1,0:T(1,128)}', space=vmem, size = 0x9000, scoped, tag = 'internal scratch']
  %s0 = inlined_call_operand.vmem [shape: f32[128,1], index: 0, kind: input, shape index: {}]
  %s1 = inlined_call_operand.vmem [shape: bf16[128,128], index: 1, kind: input, shape index: {}]
  %s2 = inlined_call_operand.hbm [shape: f32[8,128], index: 2, kind: input, shape index: {}]
  %s3 = inlined_call_operand.hbm [shape: f32[16,128], index: 3, kind: input, shape index: {}]
  %s4 = inlined_call_operand.hbm [shape: bf16[128,768], index: 4, kind: input, shape index: {}]
  %s5 = inlined_call_operand.vmem [shape: bf16[64,256], index: 5, kind: input, shape index: {}]
  %s6 = inlined_call_operand.hbm [shape: f32[8,128], index: 6, kind: output, shape index: {}]
  %s7 = sld [smem:[#allocation0]]
  $region46: #{tpu_custom_call.1} parent=0
    _
  %s9 = ssub.s32 1, %s7
  %s10 = scalar_select 0, %s9, %s7
  $region1: #{tpu_custom_call.1} parent=0
    #allocation2 [shape = 'u8[4096]{0}', space=vmem, size = 0x1000, scoped, tag = 'input window, operand 2, single buffered']
    #allocation3 [shape = 's32[1]{0}', space=sflag, size = 0x4, scoped, tag = 'scoped memory for tpu_custom_call.1']
    #allocation4 [shape = 's32[1]{0}', space=sflag, size = 0x4, scoped, tag = 'scoped memory for tpu_custom_call.1']
    #allocation5 [shape = 'u8[8192]{0}', space=vmem, size = 0x2000, scoped, tag = 'input window, operand 3, single buffered']
    #allocation6 [shape = 's32[1]{0}', space=sflag, size = 0x4, scoped, tag = 'scoped memory for tpu_custom_call.1']
    #allocation7 [shape = 'u8[196608]{0}', space=vmem, size = 0x30000, scoped, tag = 'input window, operand 4, single buffered']
    #allocation8 [shape = 'u8[4096]{0}', space=vmem, size = 0x1000, scoped, tag = 'output window, operand 0, single buffered']
    %11 = vsyncpa [#allocation3], 0
    %12 = vsyncpa [#allocation6], 0
    %13 = vsyncpa [#allocation4], 0
    // Predicated region
    $region2: #{tpu_custom_call.1} parent=1 // pred_check
      _
    $region3: #{tpu_custom_call.1} parent=1 // pred_check_branch
      %15 = sbr.rel (0) target = $region5
    $region4: #{tpu_custom_call.1} parent=1 // pred_region
      _
    $region5: #{tpu_custom_call.1} parent=1 // pred_fallthru
      _
    // Predicated region
    $region6: #{tpu_custom_call.1} parent=1 // pred_check
      _
    $region7: #{tpu_custom_call.1} parent=1 // pred_check_branch
      %17 = sbr.rel (0) target = $region9
    $region8: #{tpu_custom_call.1} parent=1 // pred_region
      _
    $region9: #{tpu_custom_call.1} parent=1 // pred_fallthru
      _
    // Predicated region
    $region10: #{tpu_custom_call.1} parent=1 // pred_check
      _
    $region11: #{tpu_custom_call.1} parent=1 // pred_check_branch
      %19 = sbr.rel (0) target = $region13
    $region12: #{tpu_custom_call.1} parent=1 // pred_region
      %21 = vsyncadd [#allocation3], 0
      %s23 = sshll.u32 %s2, 4
      %s24 = int_to_ptr.hbm [resolvable:$true] %s23
      %s25 = sshll.u32 [#allocation2], 4
      %s26 = int_to_ptr.vmem [resolvable:$true] %s25
      %28 = dma.hbm_to_vmem [thread:$0]  %s24, 128, %s26, [#allocation3]
    $region13: #{tpu_custom_call.1} parent=1 // pred_fallthru
      _
    // Predicated region
    $region14: #{tpu_custom_call.1} parent=1 // pred_check
      _
    $region15: #{tpu_custom_call.1} parent=1 // pred_check_branch
      %30 = sbr.rel (0) target = $region17
    $region16: #{tpu_custom_call.1} parent=1 // pred_region
      %32 = vsyncadd [#allocation6], 0
      %s33 = sshll.u32 %s3, 4
      %s34 = int_to_ptr.hbm [resolvable:$true] %s33
      %s35 = sshll.u32 [#allocation5], 4
      %s36 = int_to_ptr.vmem [resolvable:$true] %s35
      %41 = dma.hbm_to_vmem [thread:$0]  %s34, 256, %s36, [#allocation6], 128, 128, 8
    $region17: #{tpu_custom_call.1} parent=1 // pred_fallthru
      _
    // Predicated region
    $region18: #{tpu_custom_call.1} parent=1 // pred_check
      _
    $region19: #{tpu_custom_call.1} parent=1 // pred_check_branch
      %43 = sbr.rel (0) target = $region21
    $region20: #{tpu_custom_call.1} parent=1 // pred_region
      %45 = vsyncadd [#allocation6], 0
      %s46 = sshll.u32 %s4, 4
      %s47 = int_to_ptr.hbm [resolvable:$true] %s46
      %s48 = sshll.u32 [#allocation7], 4
      %s49 = int_to_ptr.vmem [resolvable:$true] %s48
      %54 = dma.hbm_to_vmem [thread:$0]  %s47, 6144, %s49, [#allocation6], 384, 384, 24
    $region21: #{tpu_custom_call.1} parent=1 // pred_fallthru
      _
    // Predicated region
    $region22: #{tpu_custom_call.1} parent=1 // pred_check
      _
    $region23: #{tpu_custom_call.1} parent=1 // pred_check_branch
      %56 = sbr.rel (0) target = $region25
    $region24: #{tpu_custom_call.1} parent=1 // pred_region
      _
    $region25: #{tpu_custom_call.1} parent=1 // pred_fallthru
      _
    // Predicated region
    $region26: #{tpu_custom_call.1} parent=1 // pred_check
      _
    $region27: #{tpu_custom_call.1} parent=1 // pred_check_branch
      %58 = sbr.rel (0) target = $region29
    $region28: #{tpu_custom_call.1} parent=1 // pred_region
      %60 = dma.done [#allocation3], 128
    $region29: #{tpu_custom_call.1} parent=1 // pred_fallthru
      _
    // Predicated region
    $region30: #{tpu_custom_call.1} parent=1 // pred_check
      _
    $region31: #{tpu_custom_call.1} parent=1 // pred_check_branch
      %62 = sbr.rel (0) target = $region33
    $region32: #{tpu_custom_call.1} parent=1 // pred_region
      %64 = dma.done [#allocation6], 256
    $region33: #{tpu_custom_call.1} parent=1 // pred_fallthru
      _
    // Predicated region
    $region34: #{tpu_custom_call.1} parent=1 // pred_check
      _
    $region35: #{tpu_custom_call.1} parent=1 // pred_check_branch
      %66 = sbr.rel (0) target = $region37
    $region36: #{tpu_custom_call.1} parent=1 // pred_region
      %68 = dma.done [#allocation6], 6144
    $region37: #{tpu_custom_call.1} parent=1 // pred_fallthru
      _
    %v70 = vld [vmem:[%s1] sm:$0xf]
    %v71 = vld [vmem:[%s1 + $0x4] sm:$0xf]
    %v72 = vld [vmem:[%s1 + $0x8] sm:$0xf]
    %v73 = vld [vmem:[%s1 + $0xc] sm:$0xf]
    %v74 = vld [vmem:[%s1 + $0x10] sm:$0xf]
    %v75 = vld [vmem:[%s1 + $0x14] sm:$0xf]
    %v76 = vld [vmem:[%s1 + $0x18] sm:$0xf]
    %v77 = vld [vmem:[%s1 + $0x1c] sm:$0xf]
    %v78 = vld [vmem:[%s1 + $0x20] sm:$0xf]
    %v79 = vld [vmem:[%s1 + $0x24] sm:$0xf]
    %v80 = vld [vmem:[%s1 + $0x28] sm:$0xf]
    %v81 = vld [vmem:[%s1 + $0x2c] sm:$0xf]
    %v82 = vld [vmem:[%s1 + $0x30] sm:$0xf]
    %v83 = vld [vmem:[%s1 + $0x34] sm:$0xf]
    %v84 = vld [vmem:[%s1 + $0x38] sm:$0xf]
    %v85 = vld [vmem:[%s1 + $0x3c] sm:$0xf]
    %v86 = vunpack.c.l.bf16 %v70
    %v87 = vunpack.c.l.bf16 %v71
    %v88 = vunpack.c.l.bf16 %v72
    %v89 = vunpack.c.l.bf16 %v73
    %v90 = vunpack.c.l.bf16 %v74
    %v91 = vunpack.c.l.bf16 %v75
    %v92 = vunpack.c.l.bf16 %v76
    %v93 = vunpack.c.l.bf16 %v77
    %v94 = vunpack.c.l.bf16 %v78
    %v95 = vunpack.c.l.bf16 %v79
    %v96 = vunpack.c.l.bf16 %v80
    %v97 = vunpack.c.l.bf16 %v81
    %v98 = vunpack.c.l.bf16 %v82
    %v99 = vunpack.c.l.bf16 %v83
    %v100 = vunpack.c.l.bf16 %v84
    %v101 = vunpack.c.l.bf16 %v85
    %v102 = vsub.f32 %v86, 1.0
    %v103 = vsub.f32 %v87, 1.0
    %v104 = vsub.f32 %v88, 1.0
    %v105 = vsub.f32 %v89, 1.0
    %v106 = vsub.f32 %v90, 1.0
    %v107 = vsub.f32 %v91, 1.0
    %v108 = vsub.f32 %v92, 1.0
    %v109 = vsub.f32 %v93, 1.0
    %v110 = vsub.f32 %v94, 1.0
    %v111 = vsub.f32 %v95, 1.0
    %v112 = vsub.f32 %v96, 1.0
    %v113 = vsub.f32 %v97, 1.0
    %v114 = vsub.f32 %v98, 1.0
    %v115 = vsub.f32 %v99, 1.0
    %v116 = vsub.f32 %v100, 1.0
    %v117 = vsub.f32 %v101, 1.0
    %v118 = vmul.f32 %v102, 1e+30
    %v119 = vmul.f32 %v103, 1e+30
    %v120 = vmul.f32 %v104, 1e+30
    %v121 = vmul.f32 %v105, 1e+30
    %v122 = vmul.f32 %v106, 1e+30
    %v123 = vmul.f32 %v107, 1e+30
    %v124 = vmul.f32 %v108, 1e+30
    %v125 = vmul.f32 %v109, 1e+30
    %v126 = vmul.f32 %v110, 1e+30
    %v127 = vmul.f32 %v111, 1e+30
    %v128 = vmul.f32 %v112, 1e+30
    %v129 = vmul.f32 %v113, 1e+30
    %v130 = vmul.f32 %v114, 1e+30
    %v131 = vmul.f32 %v115, 1e+30
    %v132 = vmul.f32 %v116, 1e+30
    %v133 = vmul.f32 %v117, 1e+30
    %v134 = vld [vmem:[%s0] sm:$0xff]
    %v135 = vld [vmem:[%s0 + $0x8] sm:$0xff]
    %v136 = vld [vmem:[%s0 + $0x10] sm:$0xff]
    %v137 = vld [vmem:[%s0 + $0x18] sm:$0xff]
    %v138 = vld [vmem:[%s0 + $0x20] sm:$0xff]
    %v139 = vld [vmem:[%s0 + $0x28] sm:$0xff]
    %v140 = vld [vmem:[%s0 + $0x30] sm:$0xff]
    %v141 = vld [vmem:[%s0 + $0x38] sm:$0xff]
    %v142 = vld [vmem:[%s0 + $0x40] sm:$0xff]
    %v143 = vld [vmem:[%s0 + $0x48] sm:$0xff]
    %v144 = vld [vmem:[%s0 + $0x50] sm:$0xff]
    %v145 = vld [vmem:[%s0 + $0x58] sm:$0xff]
    %v146 = vld [vmem:[%s0 + $0x60] sm:$0xff]
    %v147 = vld [vmem:[%s0 + $0x68] sm:$0xff]
    %v148 = vld [vmem:[%s0 + $0x70] sm:$0xff]
    %v149 = vld [vmem:[%s0 + $0x78] sm:$0xff]
    %v150 = vld [vmem:[#allocation5] sm:$0x1]
    %152 = vset.pattern.permute.xlu0 0
    %153 = vperm.xlu0 %152, %v134
    %v154 = vpop.permute.xlu0 %153
    %157 = vset.pattern.permute.xlu0 0
    %158 = vperm.xlu0 %157, %v135
    %v159 = vpop.permute.xlu0 %158
    %162 = vset.pattern.permute.xlu0 0
    %163 = vperm.xlu0 %162, %v136
    %v164 = vpop.permute.xlu0 %163
    %167 = vset.pattern.permute.xlu0 0
    %168 = vperm.xlu0 %167, %v137
    %v169 = vpop.permute.xlu0 %168
    %172 = vset.pattern.permute.xlu0 0
    %173 = vperm.xlu0 %172, %v138
    %v174 = vpop.permute.xlu0 %173
    %177 = vset.pattern.permute.xlu0 0
    %178 = vperm.xlu0 %177, %v139
    %v179 = vpop.permute.xlu0 %178
    %182 = vset.pattern.permute.xlu0 0
    %183 = vperm.xlu0 %182, %v140
    %v184 = vpop.permute.xlu0 %183
    %187 = vset.pattern.permute.xlu0 0
    %188 = vperm.xlu0 %187, %v141
    %v189 = vpop.permute.xlu0 %188
    %192 = vset.pattern.permute.xlu0 0
    %193 = vperm.xlu0 %192, %v142
    %v194 = vpop.permute.xlu0 %193
    %197 = vset.pattern.permute.xlu0 0
    %198 = vperm.xlu0 %197, %v143
    %v199 = vpop.permute.xlu0 %198
    %202 = vset.pattern.permute.xlu0 0
    %203 = vperm.xlu0 %202, %v144
    %v204 = vpop.permute.xlu0 %203
    %207 = vset.pattern.permute.xlu0 0
    %208 = vperm.xlu0 %207, %v145
    %v209 = vpop.permute.xlu0 %208
    %212 = vset.pattern.permute.xlu0 0
    %213 = vperm.xlu0 %212, %v146
    %v214 = vpop.permute.xlu0 %213
    %217 = vset.pattern.permute.xlu0 0
    %218 = vperm.xlu0 %217, %v147
    %v219 = vpop.permute.xlu0 %218
    %222 = vset.pattern.permute.xlu0 0
    %223 = vperm.xlu0 %222, %v148
    %v224 = vpop.permute.xlu0 %223
    %227 = vset.pattern.permute.xlu0 0
    %228 = vperm.xlu0 %227, %v149
    %v229 = vpop.permute.xlu0 %228
    %v231 = vperm.slane %v150, 0
    %v232 = vmul.f32 %v154, %v231
    %v233 = vmul.f32 %v159, %v231
    %v234 = vmul.f32 %v164, %v231
    %v235 = vmul.f32 %v169, %v231
    %v236 = vmul.f32 %v174, %v231
    %v237 = vmul.f32 %v179, %v231
    %v238 = vmul.f32 %v184, %v231
    %v239 = vmul.f32 %v189, %v231
    %v240 = vmul.f32 %v194, %v231
    %v241 = vmul.f32 %v199, %v231
    %v242 = vmul.f32 %v204, %v231
    %v243 = vmul.f32 %v209, %v231
    %v244 = vmul.f32 %v214, %v231
    %v245 = vmul.f32 %v219, %v231
    %v246 = vmul.f32 %v224, %v231
    %v247 = vmul.f32 %v229, %v231
    %v248 = vld [vmem:[#allocation5 + $0x1] sm:$0x1]
    %v249 = vperm.slane %v248, 0
    %v250 = vadd.f32 %v232, %v249
    %v251 = vadd.f32 %v233, %v249
    %v252 = vadd.f32 %v234, %v249
    %v253 = vadd.f32 %v235, %v249
    %v254 = vadd.f32 %v236, %v249
    %v255 = vadd.f32 %v237, %v249
    %v256 = vadd.f32 %v238, %v249
    %v257 = vadd.f32 %v239, %v249
    %v258 = vadd.f32 %v240, %v249
    %v259 = vadd.f32 %v241, %v249
    %v260 = vadd.f32 %v242, %v249
    %v261 = vadd.f32 %v243, %v249
    %v262 = vadd.f32 %v244, %v249
    %v263 = vadd.f32 %v245, %v249
    %v264 = vadd.f32 %v246, %v249
    %v265 = vadd.f32 %v247, %v249
    %v266 = vld [vmem:[#allocation5 + $0x2] sm:$0x1]
    %v267 = vld [vmem:[#allocation5 + $0x3] sm:$0x1]
    %268 = vadd.xlane.f32.xlu0 %v250
    %v269 = vpop.xlane.xlu0 %268
    %270 = vadd.xlane.f32.xlu0 %v251
    %v271 = vpop.xlane.xlu0 %270
    %272 = vadd.xlane.f32.xlu0 %v252
    %v273 = vpop.xlane.xlu0 %272
    %274 = vadd.xlane.f32.xlu0 %v253
    %v275 = vpop.xlane.xlu0 %274
    %276 = vadd.xlane.f32.xlu0 %v254
    %v277 = vpop.xlane.xlu0 %276
    %278 = vadd.xlane.f32.xlu0 %v255
    %v279 = vpop.xlane.xlu0 %278
    %280 = vadd.xlane.f32.xlu0 %v256
    %v281 = vpop.xlane.xlu0 %280
    %282 = vadd.xlane.f32.xlu0 %v257
    %v283 = vpop.xlane.xlu0 %282
    %284 = vadd.xlane.f32.xlu0 %v258
    %v285 = vpop.xlane.xlu0 %284
    %286 = vadd.xlane.f32.xlu0 %v259
    %v287 = vpop.xlane.xlu0 %286
    %288 = vadd.xlane.f32.xlu0 %v260
    %v289 = vpop.xlane.xlu0 %288
    %290 = vadd.xlane.f32.xlu0 %v261
    %v291 = vpop.xlane.xlu0 %290
    %292 = vadd.xlane.f32.xlu0 %v262
    %v293 = vpop.xlane.xlu0 %292
    %294 = vadd.xlane.f32.xlu0 %v263
    %v295 = vpop.xlane.xlu0 %294
    %296 = vadd.xlane.f32.xlu0 %v264
    %v297 = vpop.xlane.xlu0 %296
    %298 = vadd.xlane.f32.xlu0 %v265
    %v299 = vpop.xlane.xlu0 %298
    %v300 = vrcp.pop 128.0
    %v301 = vmul.f32 128.0, %v300
    %v302 = vsub.f32 1.0, %v301
    %v303 = vmul.f32 %v300, %v302
    %v304 = vadd.f32 %v300, %v303
    %vm305 = vweird.f32 %v300
    %v306 = vsel %vm305, %v300, %v304
    %v307 = vmul.f32 %v269, %v306
    %v308 = vmul.f32 %v271, %v306
    %v309 = vmul.f32 %v273, %v306
    %v310 = vmul.f32 %v275, %v306
    %v311 = vmul.f32 %v277, %v306
    %v312 = vmul.f32 %v279, %v306
    %v313 = vmul.f32 %v281, %v306
    %v314 = vmul.f32 %v283, %v306
    %v315 = vmul.f32 %v285, %v306
    %v316 = vmul.f32 %v287, %v306
    %v317 = vmul.f32 %v289, %v306
    %v318 = vmul.f32 %v291, %v306
    %v319 = vmul.f32 %v293, %v306
    %v320 = vmul.f32 %v295, %v306
    %v321 = vmul.f32 %v297, %v306
    %v322 = vmul.f32 %v299, %v306
    %v323 = vsub.f32 %v250, %v307
    %v324 = vsub.f32 %v251, %v308
    %v325 = vsub.f32 %v252, %v309
    %v326 = vsub.f32 %v253, %v310
    %v327 = vsub.f32 %v254, %v311
    %v328 = vsub.f32 %v255, %v312
    %v329 = vsub.f32 %v256, %v313
    %v330 = vsub.f32 %v257, %v314
    %v331 = vsub.f32 %v258, %v315
    %v332 = vsub.f32 %v259, %v316
    %v333 = vsub.f32 %v260, %v317
    %v334 = vsub.f32 %v261, %v318
    %v335 = vsub.f32 %v262, %v319
    %v336 = vsub.f32 %v263, %v320
    %v337 = vsub.f32 %v264, %v321
    %v338 = vsub.f32 %v265, %v322
    %v339 = vmul.f32 %v323, %v323
    %v340 = vmul.f32 %v324, %v324
    %v341 = vmul.f32 %v325, %v325
    %v342 = vmul.f32 %v326, %v326
    %v343 = vmul.f32 %v327, %v327
    %v344 = vmul.f32 %v328, %v328
    %v345 = vmul.f32 %v329, %v329
    %v346 = vmul.f32 %v330, %v330
    %v347 = vmul.f32 %v331, %v331
    %v348 = vmul.f32 %v332, %v332
    %v349 = vmul.f32 %v333, %v333
    %v350 = vmul.f32 %v334, %v334
    %v351 = vmul.f32 %v335, %v335
    %v352 = vmul.f32 %v336, %v336
    %v353 = vmul.f32 %v337, %v337
    %v354 = vmul.f32 %v338, %v338
    %355 = vadd.xlane.f32.xlu0 %v339
    %v356 = vpop.xlane.xlu0 %355
    %357 = vadd.xlane.f32.xlu0 %v340
    %v358 = vpop.xlane.xlu0 %357
    %359 = vadd.xlane.f32.xlu0 %v341
    %v360 = vpop.xlane.xlu0 %359
    %361 = vadd.xlane.f32.xlu0 %v342
    %v362 = vpop.xlane.xlu0 %361
    %363 = vadd.xlane.f32.xlu0 %v343
    %v364 = vpop.xlane.xlu0 %363
    %365 = vadd.xlane.f32.xlu0 %v344
    %v366 = vpop.xlane.xlu0 %365
    %367 = vadd.xlane.f32.xlu0 %v345
    %v368 = vpop.xlane.xlu0 %367
    %369 = vadd.xlane.f32.xlu0 %v346
    %v370 = vpop.xlane.xlu0 %369
    %371 = vadd.xlane.f32.xlu0 %v347
    %v372 = vpop.xlane.xlu0 %371
    %373 = vadd.xlane.f32.xlu0 %v348
    %v374 = vpop.xlane.xlu0 %373
    %375 = vadd.xlane.f32.xlu0 %v349
    %v376 = vpop.xlane.xlu0 %375
    %377 = vadd.xlane.f32.xlu0 %v350
    %v378 = vpop.xlane.xlu0 %377
    %379 = vadd.xlane.f32.xlu0 %v351
    %v380 = vpop.xlane.xlu0 %379
    %381 = vadd.xlane.f32.xlu0 %v352
    %v382 = vpop.xlane.xlu0 %381
    %383 = vadd.xlane.f32.xlu0 %v353
    %v384 = vpop.xlane.xlu0 %383
    %385 = vadd.xlane.f32.xlu0 %v354
    %v386 = vpop.xlane.xlu0 %385
    %v387 = vmul.f32 %v356, %v306
    %v388 = vmul.f32 %v358, %v306
    %v389 = vmul.f32 %v360, %v306
    %v390 = vmul.f32 %v362, %v306
    %v391 = vmul.f32 %v364, %v306
    %v392 = vmul.f32 %v366, %v306
    %v393 = vmul.f32 %v368, %v306
    %v394 = vmul.f32 %v370, %v306
    %v395 = vmul.f32 %v372, %v306
    %v396 = vmul.f32 %v374, %v306
    %v397 = vmul.f32 %v376, %v306
    %v398 = vmul.f32 %v378, %v306
    %v399 = vmul.f32 %v380, %v306
    %v400 = vmul.f32 %v382, %v306
    %v401 = vmul.f32 %v384, %v306
    %v402 = vmul.f32 %v386, %v306
    %v403 = vadd.f32 %v387, 1e-05
    %v404 = vadd.f32 %v388, 1e-05
    %v405 = vadd.f32 %v389, 1e-05
    %v406 = vadd.f32 %v390, 1e-05
    %v407 = vadd.f32 %v391, 1e-05
    %v408 = vadd.f32 %v392, 1e-05
    %v409 = vadd.f32 %v393, 1e-05
    %v410 = vadd.f32 %v394, 1e-05
    %v411 = vadd.f32 %v395, 1e-05
    %v412 = vadd.f32 %v396, 1e-05
    %v413 = vadd.f32 %v397, 1e-05
    %v414 = vadd.f32 %v398, 1e-05
    %v415 = vadd.f32 %v399, 1e-05
    %v416 = vadd.f32 %v400, 1e-05
    %v417 = vadd.f32 %v401, 1e-05
    %v418 = vadd.f32 %v402, 1e-05
    %v419 = vrsqrt.pop %v403
    %v420 = vmul.f32 %v419, %v403
    %v421 = vmul.f32 %v420, %v419
    %v422 = vmul.f32 0.5, %v421
    %v423 = vsub.f32 1.5, %v422
    %v424 = vmul.f32 %v419, %v423
    %vm425 = vweird.f32 %v403
    %vm426 = vweird.f32 %v419
    %vm427 = vmor %vm425, %vm426
    %v428 = vsel %vm427, %v419, %v424
    %v429 = vrsqrt.pop %v404
    %v430 = vmul.f32 %v429, %v404
    %v431 = vmul.f32 %v430, %v429
    %v432 = vmul.f32 0.5, %v431
    %v433 = vsub.f32 1.5, %v432
    %v434 = vmul.f32 %v429, %v433
    %vm435 = vweird.f32 %v404
    %vm436 = vweird.f32 %v429
    %vm437 = vmor %vm435, %vm436
    %v438 = vsel %vm437, %v429, %v434
    %v439 = vrsqrt.pop %v405
    %v440 = vmul.f32 %v439, %v405
    %v441 = vmul.f32 %v440, %v439
    %v442 = vmul.f32 0.5, %v441
    %v443 = vsub.f32 1.5, %v442
    %v444 = vmul.f32 %v439, %v443
    %vm445 = vweird.f32 %v405
    %vm446 = vweird.f32 %v439
    %vm447 = vmor %vm445, %vm446
    %v448 = vsel %vm447, %v439, %v444
    %v449 = vrsqrt.pop %v406
    %v450 = vmul.f32 %v449, %v406
    %v451 = vmul.f32 %v450, %v449
    %v452 = vmul.f32 0.5, %v451
    %v453 = vsub.f32 1.5, %v452
    %v454 = vmul.f32 %v449, %v453
    %vm455 = vweird.f32 %v406
    %vm456 = vweird.f32 %v449
    %vm457 = vmor %vm455, %vm456
    %v458 = vsel %vm457, %v449, %v454
    %v459 = vrsqrt.pop %v407
    %v460 = vmul.f32 %v459, %v407
    %v461 = vmul.f32 %v460, %v459
    %v462 = vmul.f32 0.5, %v461
    %v463 = vsub.f32 1.5, %v462
    %v464 = vmul.f32 %v459, %v463
    %vm465 = vweird.f32 %v407
    %vm466 = vweird.f32 %v459
    %vm467 = vmor %vm465, %vm466
    %v468 = vsel %vm467, %v459, %v464
    %v469 = vrsqrt.pop %v408
    %v470 = vmul.f32 %v469, %v408
    %v471 = vmul.f32 %v470, %v469
    %v472 = vmul.f32 0.5, %v471
    %v473 = vsub.f32 1.5, %v472
    %v474 = vmul.f32 %v469, %v473
    %vm475 = vweird.f32 %v408
    %vm476 = vweird.f32 %v469
    %vm477 = vmor %vm475, %vm476
    %v478 = vsel %vm477, %v469, %v474
    %v479 = vrsqrt.pop %v409
    %v480 = vmul.f32 %v479, %v409
    %v481 = vmul.f32 %v480, %v479
    %v482 = vmul.f32 0.5, %v481
    %v483 = vsub.f32 1.5, %v482
    %v484 = vmul.f32 %v479, %v483
    %vm485 = vweird.f32 %v409
    %vm486 = vweird.f32 %v479
    %vm487 = vmor %vm485, %vm486
    %v488 = vsel %vm487, %v479, %v484
    %v489 = vrsqrt.pop %v410
    %v490 = vmul.f32 %v489, %v410
    %v491 = vmul.f32 %v490, %v489
    %v492 = vmul.f32 0.5, %v491
    %v493 = vsub.f32 1.5, %v492
    %v494 = vmul.f32 %v489, %v493
    %vm495 = vweird.f32 %v410
    %vm496 = vweird.f32 %v489
    %vm497 = vmor %vm495, %vm496
    %v498 = vsel %vm497, %v489, %v494
    %v499 = vrsqrt.pop %v411
    %v500 = vmul.f32 %v499, %v411
    %v501 = vmul.f32 %v500, %v499
    %v502 = vmul.f32 0.5, %v501
    %v503 = vsub.f32 1.5, %v502
    %v504 = vmul.f32 %v499, %v503
    %vm505 = vweird.f32 %v411
    %vm506 = vweird.f32 %v499
    %vm507 = vmor %vm505, %vm506
    %v508 = vsel %vm507, %v499, %v504
    %v509 = vrsqrt.pop %v412
    %v510 = vmul.f32 %v509, %v412
    %v511 = vmul.f32 %v510, %v509
    %v512 = vmul.f32 0.5, %v511
    %v513 = vsub.f32 1.5, %v512
    %v514 = vmul.f32 %v509, %v513
    %vm515 = vweird.f32 %v412
    %vm516 = vweird.f32 %v509
    %vm517 = vmor %vm515, %vm516
    %v518 = vsel %vm517, %v509, %v514
    %v519 = vrsqrt.pop %v413
    %v520 = vmul.f32 %v519, %v413
    %v521 = vmul.f32 %v520, %v519
    %v522 = vmul.f32 0.5, %v521
    %v523 = vsub.f32 1.5, %v522
    %v524 = vmul.f32 %v519, %v523
    %vm525 = vweird.f32 %v413
    %vm526 = vweird.f32 %v519
    %vm527 = vmor %vm525, %vm526
    %v528 = vsel %vm527, %v519, %v524
    %v529 = vrsqrt.pop %v414
    %v530 = vmul.f32 %v529, %v414
    %v531 = vmul.f32 %v530, %v529
    %v532 = vmul.f32 0.5, %v531
    %v533 = vsub.f32 1.5, %v532
    %v534 = vmul.f32 %v529, %v533
    %vm535 = vweird.f32 %v414
    %vm536 = vweird.f32 %v529
    %vm537 = vmor %vm535, %vm536
    %v538 = vsel %vm537, %v529, %v534
    %v539 = vrsqrt.pop %v415
    %v540 = vmul.f32 %v539, %v415
    %v541 = vmul.f32 %v540, %v539
    %v542 = vmul.f32 0.5, %v541
    %v543 = vsub.f32 1.5, %v542
    %v544 = vmul.f32 %v539, %v543
    %vm545 = vweird.f32 %v415
    %vm546 = vweird.f32 %v539
    %vm547 = vmor %vm545, %vm546
    %v548 = vsel %vm547, %v539, %v544
    %v549 = vrsqrt.pop %v416
    %v550 = vmul.f32 %v549, %v416
    %v551 = vmul.f32 %v550, %v549
    %v552 = vmul.f32 0.5, %v551
    %v553 = vsub.f32 1.5, %v552
    %v554 = vmul.f32 %v549, %v553
    %vm555 = vweird.f32 %v416
    %vm556 = vweird.f32 %v549
    %vm557 = vmor %vm555, %vm556
    %v558 = vsel %vm557, %v549, %v554
    %v559 = vrsqrt.pop %v417
    %v560 = vmul.f32 %v559, %v417
    %v561 = vmul.f32 %v560, %v559
    %v562 = vmul.f32 0.5, %v561
    %v563 = vsub.f32 1.5, %v562
    %v564 = vmul.f32 %v559, %v563
    %vm565 = vweird.f32 %v417
    %vm566 = vweird.f32 %v559
    %vm567 = vmor %vm565, %vm566
    %v568 = vsel %vm567, %v559, %v564
    %v569 = vrsqrt.pop %v418
    %v570 = vmul.f32 %v569, %v418
    %v571 = vmul.f32 %v570, %v569
    %v572 = vmul.f32 0.5, %v571
    %v573 = vsub.f32 1.5, %v572
    %v574 = vmul.f32 %v569, %v573
    %vm575 = vweird.f32 %v418
    %vm576 = vweird.f32 %v569
    %vm577 = vmor %vm575, %vm576
    %v578 = vsel %vm577, %v569, %v574
    %v579 = vmul.f32 %v323, %v428
    %v580 = vmul.f32 %v324, %v438
    %v581 = vmul.f32 %v325, %v448
    %v582 = vmul.f32 %v326, %v458
    %v583 = vmul.f32 %v327, %v468
    %v584 = vmul.f32 %v328, %v478
    %v585 = vmul.f32 %v329, %v488
    %v586 = vmul.f32 %v330, %v498
    %v587 = vmul.f32 %v331, %v508
    %v588 = vmul.f32 %v332, %v518
    %v589 = vmul.f32 %v333, %v528
    %v590 = vmul.f32 %v334, %v538
    %v591 = vmul.f32 %v335, %v548
    %v592 = vmul.f32 %v336, %v558
    %v593 = vmul.f32 %v337, %v568
    %v594 = vmul.f32 %v338, %v578
    %v595 = vperm.slane %v266, 0
    %v596 = vmul.f32 %v579, %v595
    %v597 = vmul.f32 %v580, %v595
    %v598 = vmul.f32 %v581, %v595
    %v599 = vmul.f32 %v582, %v595
    %v600 = vmul.f32 %v583, %v595
    %v601 = vmul.f32 %v584, %v595
    %v602 = vmul.f32 %v585, %v595
    %v603 = vmul.f32 %v586, %v595
    %v604 = vmul.f32 %v587, %v595
    %v605 = vmul.f32 %v588, %v595
    %v606 = vmul.f32 %v589, %v595
    %v607 = vmul.f32 %v590, %v595
    %v608 = vmul.f32 %v591, %v595
    %v609 = vmul.f32 %v592, %v595
    %v610 = vmul.f32 %v593, %v595
    %v611 = vmul.f32 %v594, %v595
    %v612 = vperm.slane %v267, 0
    %v613 = vadd.f32 %v596, %v612
    %v614 = vadd.f32 %v597, %v612
    %v615 = vadd.f32 %v598, %v612
    %v616 = vadd.f32 %v599, %v612
    %v617 = vadd.f32 %v600, %v612
    %v618 = vadd.f32 %v601, %v612
    %v619 = vadd.f32 %v602, %v612
    %v620 = vadd.f32 %v603, %v612
    %v621 = vadd.f32 %v604, %v612
    %v622 = vadd.f32 %v605, %v612
    %v623 = vadd.f32 %v606, %v612
    %v624 = vadd.f32 %v607, %v612
    %v625 = vadd.f32 %v608, %v612
    %v626 = vadd.f32 %v609, %v612
    %v627 = vadd.f32 %v610, %v612
    %v628 = vadd.f32 %v611, %v612
    %v629 = vmax.f32 %v613, 0.0
    %v630 = vmax.f32 %v614, 0.0
    %v631 = vmax.f32 %v615, 0.0
    %v632 = vmax.f32 %v616, 0.0
    %v633 = vmax.f32 %v617, 0.0
    %v634 = vmax.f32 %v618, 0.0
    %v635 = vmax.f32 %v619, 0.0
    %v636 = vmax.f32 %v620, 0.0
    %v637 = vmax.f32 %v621, 0.0
    %v638 = vmax.f32 %v622, 0.0
    %v639 = vmax.f32 %v623, 0.0
    %v640 = vmax.f32 %v624, 0.0
    %v641 = vmax.f32 %v625, 0.0
    %v642 = vmax.f32 %v626, 0.0
    %v643 = vmax.f32 %v627, 0.0
    %v644 = vmax.f32 %v628, 0.0
    %v645 = vpack.c.bf16 %v630, %v629
    %v646 = vpack.c.bf16 %v632, %v631
    %v647 = vpack.c.bf16 %v634, %v633
    %v648 = vpack.c.bf16 %v636, %v635
    %v649 = vpack.c.bf16 %v638, %v637
    %v650 = vpack.c.bf16 %v640, %v639
    %v651 = vpack.c.bf16 %v642, %v641
    %v652 = vpack.c.bf16 %v644, %v643
    %v653 = vld [vmem:[%s5] sm:$0xff]
    %v654 = vld [vmem:[#allocation7] sm:$0xf]
    %v655 = vld [vmem:[#allocation7 + $0x18] sm:$0xf]
    %v656 = vld [vmem:[#allocation7 + $0x30] sm:$0xf]
    %v657 = vld [vmem:[#allocation7 + $0x48] sm:$0xf]
    %v658 = vld [vmem:[#allocation7 + $0x60] sm:$0xf]
    %v659 = vld [vmem:[#allocation7 + $0x78] sm:$0xf]
    %v660 = vld [vmem:[#allocation7 + $0x90] sm:$0xf]
    %v661 = vld [vmem:[#allocation7 + $0xa8] sm:$0xf]
    %v662 = vld [vmem:[#allocation7 + $0xc0] sm:$0xf]
    %v663 = vld [vmem:[#allocation7 + $0xd8] sm:$0xf]
    %v664 = vld [vmem:[#allocation7 + $0xf0] sm:$0xf]
    %v665 = vld [vmem:[#allocation7 + $0x108] sm:$0xf]
    %v666 = vld [vmem:[#allocation7 + $0x120] sm:$0xf]
    %v667 = vld [vmem:[#allocation7 + $0x138] sm:$0xf]
    %v668 = vld [vmem:[#allocation7 + $0x150] sm:$0xf]
    %v669 = vld [vmem:[#allocation7 + $0x168] sm:$0xf]
    %v686 = vunpack.c.l.b16 %v654
    %v687 = vunpack.c.l.b16 %v655
    %v688 = vunpack.c.l.b16 %v656
    %v689 = vunpack.c.l.b16 %v657
    %v690 = vunpack.c.l.b16 %v658
    %v691 = vunpack.c.l.b16 %v659
    %v692 = vunpack.c.l.b16 %v660
    %v693 = vunpack.c.l.b16 %v661
    %v694 = vunpack.c.l.b16 %v662
    %v695 = vunpack.c.l.b16 %v663
    %v696 = vunpack.c.l.b16 %v664
    %v697 = vunpack.c.l.b16 %v665
    %v698 = vunpack.c.l.b16 %v666
    %v699 = vunpack.c.l.b16 %v667
    %v700 = vunpack.c.l.b16 %v668
    %v701 = vunpack.c.l.b16 %v669
    %v702 = vpack.c.b16 %v687, %v686
    %v703 = vpack.c.b16 %v689, %v688
    %v704 = vpack.c.b16 %v691, %v690
    %v705 = vpack.c.b16 %v693, %v692
    %v706 = vpack.c.b16 %v695, %v694
    %v707 = vpack.c.b16 %v697, %v696
    %v708 = vpack.c.b16 %v699, %v698
    %v709 = vpack.c.b16 %v701, %v700
    %718 = vmatpush.bf16.msra.mxu0 %v709
    %719 = vmatpush.bf16.msra.mxu0 %v708
    %720 = vmatpush.bf16.msra.mxu0 %v707
    %721 = vmatpush.bf16.msra.mxu0 %v706
    %722 = vmatpush.bf16.msra.mxu0 %v705
    %723 = vmatpush.bf16.msra.mxu0 %v704
    %724 = vmatpush.bf16.msra.mxu0 %v703
    %725 = vmatpush.bf16.msra.mxu0 %v702
    %726 = vmatmul.bf16.gmra.mxu0 %v645
    %v727 = vpop.f32.mrf.mxu0
    %v728 = vadd.f32 0.0, %v727
    %v729 = vpop.f32.mrf.mxu0
    %v730 = vadd.f32 0.0, %v729
    %731 = vmatmul.bf16.gmra.mxu0 %v646
    %v732 = vpop.f32.mrf.mxu0
    %v733 = vadd.f32 0.0, %v732
    %v734 = vpop.f32.mrf.mxu0
    %v735 = vadd.f32 0.0, %v734
    %736 = vmatmul.bf16.gmra.mxu0 %v647
    %v737 = vpop.f32.mrf.mxu0
    %v738 = vadd.f32 0.0, %v737
    %v739 = vpop.f32.mrf.mxu0
    %v740 = vadd.f32 0.0, %v739
    %741 = vmatmul.bf16.gmra.mxu0 %v648
    %v742 = vpop.f32.mrf.mxu0
    %v743 = vadd.f32 0.0, %v742
    %v744 = vpop.f32.mrf.mxu0
    %v745 = vadd.f32 0.0, %v744
    %746 = vmatmul.bf16.gmra.mxu0 %v649
    %v747 = vpop.f32.mrf.mxu0
    %v748 = vadd.f32 0.0, %v747
    %v749 = vpop.f32.mrf.mxu0
    %v750 = vadd.f32 0.0, %v749
    %751 = vmatmul.bf16.gmra.mxu0 %v650
    %v752 = vpop.f32.mrf.mxu0
    %v753 = vadd.f32 0.0, %v752
    %v754 = vpop.f32.mrf.mxu0
    %v755 = vadd.f32 0.0, %v754
    %756 = vmatmul.bf16.gmra.mxu0 %v651
    %v757 = vpop.f32.mrf.mxu0
    %v758 = vadd.f32 0.0, %v757
    %v759 = vpop.f32.mrf.mxu0
    %v760 = vadd.f32 0.0, %v759
    %761 = vmatmul.bf16.gmra.mxu0 %v652
    %v762 = vpop.f32.mrf.mxu0
    %v763 = vadd.f32 0.0, %v762
    %v764 = vpop.f32.mrf.mxu0
    %v765 = vadd.f32 0.0, %v764
    %766 = vdwg.mxu0
    %v767 = vpack.c.bf16 %v728, %v728
    %v768 = vpack.c.bf16 %v730, %v730
    %v769 = vpack.c.bf16 %v733, %v733
    %v770 = vpack.c.bf16 %v735, %v735
    %v771 = vpack.c.bf16 %v738, %v738
    %v772 = vpack.c.bf16 %v740, %v740
    %v773 = vpack.c.bf16 %v743, %v743
    %v774 = vpack.c.bf16 %v745, %v745
    %v775 = vpack.c.bf16 %v748, %v748
    %v776 = vpack.c.bf16 %v750, %v750
    %v777 = vpack.c.bf16 %v753, %v753
    %v778 = vpack.c.bf16 %v755, %v755
    %v779 = vpack.c.bf16 %v758, %v758
    %v780 = vpack.c.bf16 %v760, %v760
    %v781 = vpack.c.bf16 %v763, %v763
    %v782 = vpack.c.bf16 %v765, %v765
    %v799 = vunpack.c.l.b16 %v767
    %v800 = vunpack.c.l.b16 %v768
    %v801 = vunpack.c.l.b16 %v769
    %v802 = vunpack.c.l.b16 %v770
    %v803 = vunpack.c.l.b16 %v771
    %v804 = vunpack.c.l.b16 %v772
    %v805 = vunpack.c.l.b16 %v773
    %v806 = vunpack.c.l.b16 %v774
    %v807 = vunpack.c.l.b16 %v775
    %v808 = vunpack.c.l.b16 %v776
    %v809 = vunpack.c.l.b16 %v777
    %v810 = vunpack.c.l.b16 %v778
    %v811 = vunpack.c.l.b16 %v779
    %v812 = vunpack.c.l.b16 %v780
    %v813 = vunpack.c.l.b16 %v781
    %v814 = vunpack.c.l.b16 %v782
    %v815 = vpack.c.b16 %v800, %v799
    %v816 = vpack.c.b16 %v802, %v801
    %v817 = vpack.c.b16 %v804, %v803
    %v818 = vpack.c.b16 %v806, %v805
    %v819 = vpack.c.b16 %v808, %v807
    %v820 = vpack.c.b16 %v810, %v809
    %v821 = vpack.c.b16 %v812, %v811
    %v822 = vpack.c.b16 %v814, %v813
    %v832 = vunpack.c.l.b16 %v653
    %v833 = vpack.c.b16 %v832, %v832
    %v834 = vrot.slane %v833, 1
    %836 = vmatpush.bf16.xpose.msra.mxu0 0
    %837 = vmatpush.bf16.xpose.msra.mxu0 0
    %838 = vmatpush.bf16.xpose.msra.mxu0 0
    %839 = vmatpush.bf16.xpose.msra.mxu0 0
    %840 = vmatpush.bf16.xpose.msra.mxu0 0
    %841 = vmatpush.bf16.xpose.msra.mxu0 0
    %842 = vmatpush.bf16.xpose.msra.mxu0 0
    %843 = vmatpush.bf16.xpose.msra.mxu0 %v834
    %844 = vmatmul.bf16.gmra.mxu0 %v815
    %v845 = vpop.f32.mrf.mxu0
    %v846 = vadd.f32 0.0, %v845
    %v847 = vpop.f32.mrf.mxu0
    %v848 = vadd.f32 0.0, %v847
    %849 = vmatmul.bf16.gmra.mxu0 %v816
    %v850 = vpop.f32.mrf.mxu0
    %v851 = vadd.f32 0.0, %v850
    %v852 = vpop.f32.mrf.mxu0
    %v853 = vadd.f32 0.0, %v852
    %854 = vmatmul.bf16.gmra.mxu0 %v817
    %v855 = vpop.f32.mrf.mxu0
    %v856 = vadd.f32 0.0, %v855
    %v857 = vpop.f32.mrf.mxu0
    %v858 = vadd.f32 0.0, %v857
    %859 = vmatmul.bf16.gmra.mxu0 %v818
    %v860 = vpop.f32.mrf.mxu0
    %v861 = vadd.f32 0.0, %v860
    %v862 = vpop.f32.mrf.mxu0
    %v863 = vadd.f32 0.0, %v862
    %864 = vmatmul.bf16.gmra.mxu0 %v819
    %v865 = vpop.f32.mrf.mxu0
    %v866 = vadd.f32 0.0, %v865
    %v867 = vpop.f32.mrf.mxu0
    %v868 = vadd.f32 0.0, %v867
    %869 = vmatmul.bf16.gmra.mxu0 %v820
    %v870 = vpop.f32.mrf.mxu0
    %v871 = vadd.f32 0.0, %v870
    %v872 = vpop.f32.mrf.mxu0
    %v873 = vadd.f32 0.0, %v872
    %874 = vmatmul.bf16.gmra.mxu0 %v821
    %v875 = vpop.f32.mrf.mxu0
    %v876 = vadd.f32 0.0, %v875
    %v877 = vpop.f32.mrf.mxu0
    %v878 = vadd.f32 0.0, %v877
    %879 = vmatmul.bf16.gmra.mxu0 %v822
    %v880 = vpop.f32.mrf.mxu0
    %v881 = vadd.f32 0.0, %v880
    %v882 = vpop.f32.mrf.mxu0
    %v883 = vadd.f32 0.0, %v882
    %884 = vdwg.mxu0
    %885 = vmatpush.bf16.xpose.msra.mxu0 %v822
    %886 = vmatpush.bf16.xpose.msra.mxu0 %v821
    %887 = vmatpush.bf16.xpose.msra.mxu0 %v820
    %888 = vmatpush.bf16.xpose.msra.mxu0 %v819
    %889 = vmatpush.bf16.xpose.msra.mxu0 %v818
    %890 = vmatpush.bf16.xpose.msra.mxu0 %v817
    %891 = vmatpush.bf16.xpose.msra.mxu0 %v816
    %892 = vmatpush.bf16.xpose.msra.mxu0 %v815
    %893 = vmatmul.bf16.gmra.mxu0 %v653
    %v894 = vpop.f32.mrf.mxu0
    %v895 = vadd.f32 0.0, %v894
    %v896 = vpop.f32.mrf.mxu0
    %897 = vdwg.mxu0
    %899 = vset.pattern.permute.xlu0 0
    %900 = vperm.xlu0 %899, %v846
    %v901 = vpop.permute.xlu0 %900
    %904 = vset.pattern.permute.xlu0 0
    %905 = vperm.xlu0 %904, %v848
    %v906 = vpop.permute.xlu0 %905
    %909 = vset.pattern.permute.xlu0 0
    %910 = vperm.xlu0 %909, %v851
    %v911 = vpop.permute.xlu0 %910
    %914 = vset.pattern.permute.xlu0 0
    %915 = vperm.xlu0 %914, %v853
    %v916 = vpop.permute.xlu0 %915
    %919 = vset.pattern.permute.xlu0 0
    %920 = vperm.xlu0 %919, %v856
    %v921 = vpop.permute.xlu0 %920
    %924 = vset.pattern.permute.xlu0 0
    %925 = vperm.xlu0 %924, %v858
    %v926 = vpop.permute.xlu0 %925
    %929 = vset.pattern.permute.xlu0 0
    %930 = vperm.xlu0 %929, %v861
    %v931 = vpop.permute.xlu0 %930
    %934 = vset.pattern.permute.xlu0 0
    %935 = vperm.xlu0 %934, %v863
    %v936 = vpop.permute.xlu0 %935
    %939 = vset.pattern.permute.xlu0 0
    %940 = vperm.xlu0 %939, %v866
    %v941 = vpop.permute.xlu0 %940
    %944 = vset.pattern.permute.xlu0 0
    %945 = vperm.xlu0 %944, %v868
    %v946 = vpop.permute.xlu0 %945
    %949 = vset.pattern.permute.xlu0 0
    %950 = vperm.xlu0 %949, %v871
    %v951 = vpop.permute.xlu0 %950
    %954 = vset.pattern.permute.xlu0 0
    %955 = vperm.xlu0 %954, %v873
    %v956 = vpop.permute.xlu0 %955
    %959 = vset.pattern.permute.xlu0 0
    %960 = vperm.xlu0 %959, %v876
    %v961 = vpop.permute.xlu0 %960
    %964 = vset.pattern.permute.xlu0 0
    %965 = vperm.xlu0 %964, %v878
    %v966 = vpop.permute.xlu0 %965
    %969 = vset.pattern.permute.xlu0 0
    %970 = vperm.xlu0 %969, %v881
    %v971 = vpop.permute.xlu0 %970
    %974 = vset.pattern.permute.xlu0 0
    %975 = vperm.xlu0 %974, %v883
    %v976 = vpop.permute.xlu0 %975
    %v978 = vperm.slane %v895, 0
    %v979 = vadd.f32 %v901, %v978
    %v980 = vadd.f32 %v906, %v978
    %v981 = vadd.f32 %v911, %v978
    %v982 = vadd.f32 %v916, %v978
    %v983 = vadd.f32 %v921, %v978
    %v984 = vadd.f32 %v926, %v978
    %v985 = vadd.f32 %v931, %v978
    %v986 = vadd.f32 %v936, %v978
    %v987 = vadd.f32 %v941, %v978
    %v988 = vadd.f32 %v946, %v978
    %v989 = vadd.f32 %v951, %v978
    %v990 = vadd.f32 %v956, %v978
    %v991 = vadd.f32 %v961, %v978
    %v992 = vadd.f32 %v966, %v978
    %v993 = vadd.f32 %v971, %v978
    %v994 = vadd.f32 %v976, %v978
    %vm995 = vcmp.gt.f32.partialorder %v979, 0.0
    %vm996 = vcmp.gt.f32.partialorder %v980, 0.0
    %vm997 = vcmp.gt.f32.partialorder %v981, 0.0
    %vm998 = vcmp.gt.f32.partialorder %v982, 0.0
    %vm999 = vcmp.gt.f32.partialorder %v983, 0.0
    %vm1000 = vcmp.gt.f32.partialorder %v984, 0.0
    %vm1001 = vcmp.gt.f32.partialorder %v985, 0.0
    %vm1002 = vcmp.gt.f32.partialorder %v986, 0.0
    %vm1003 = vcmp.gt.f32.partialorder %v987, 0.0
    %vm1004 = vcmp.gt.f32.partialorder %v988, 0.0
    %vm1005 = vcmp.gt.f32.partialorder %v989, 0.0
    %vm1006 = vcmp.gt.f32.partialorder %v990, 0.0
    %vm1007 = vcmp.gt.f32.partialorder %v991, 0.0
    %vm1008 = vcmp.gt.f32.partialorder %v992, 0.0
    %vm1009 = vcmp.gt.f32.partialorder %v993, 0.0
    %vm1010 = vcmp.gt.f32.partialorder %v994, 0.0
    %v1011 = vmul.f32 %v979, 0.2
    %v1012 = vmul.f32 %v980, 0.2
    %v1013 = vmul.f32 %v981, 0.2
    %v1014 = vmul.f32 %v982, 0.2
    %v1015 = vmul.f32 %v983, 0.2
    %v1016 = vmul.f32 %v984, 0.2
    %v1017 = vmul.f32 %v985, 0.2
    %v1018 = vmul.f32 %v986, 0.2
    %v1019 = vmul.f32 %v987, 0.2
    %v1020 = vmul.f32 %v988, 0.2
    %v1021 = vmul.f32 %v989, 0.2
    %v1022 = vmul.f32 %v990, 0.2
    %v1023 = vmul.f32 %v991, 0.2
    %v1024 = vmul.f32 %v992, 0.2
    %v1025 = vmul.f32 %v993, 0.2
    %v1026 = vmul.f32 %v994, 0.2
    %v1027 = vsel %vm995, %v979, %v1011
    %v1028 = vsel %vm996, %v980, %v1012
    %v1029 = vsel %vm997, %v981, %v1013
    %v1030 = vsel %vm998, %v982, %v1014
    %v1031 = vsel %vm999, %v983, %v1015
    %v1032 = vsel %vm1000, %v984, %v1016
    %v1033 = vsel %vm1001, %v985, %v1017
    %v1034 = vsel %vm1002, %v986, %v1018
    %v1035 = vsel %vm1003, %v987, %v1019
    %v1036 = vsel %vm1004, %v988, %v1020
    %v1037 = vsel %vm1005, %v989, %v1021
    %v1038 = vsel %vm1006, %v990, %v1022
    %v1039 = vsel %vm1007, %v991, %v1023
    %v1040 = vsel %vm1008, %v992, %v1024
    %v1041 = vsel %vm1009, %v993, %v1025
    %v1042 = vsel %vm1010, %v994, %v1026
    %v1043 = vadd.f32 %v1027, %v118
    %v1044 = vadd.f32 %v1028, %v119
    %v1045 = vadd.f32 %v1029, %v120
    %v1046 = vadd.f32 %v1030, %v121
    %v1047 = vadd.f32 %v1031, %v122
    %v1048 = vadd.f32 %v1032, %v123
    %v1049 = vadd.f32 %v1033, %v124
    %v1050 = vadd.f32 %v1034, %v125
    %v1051 = vadd.f32 %v1035, %v126
    %v1052 = vadd.f32 %v1036, %v127
    %v1053 = vadd.f32 %v1037, %v128
    %v1054 = vadd.f32 %v1038, %v129
    %v1055 = vadd.f32 %v1039, %v130
    %v1056 = vadd.f32 %v1040, %v131
    %v1057 = vadd.f32 %v1041, %v132
    %v1058 = vadd.f32 %v1042, %v133
    %1059 = vmax.xlane.f32.xlu0 %v1043
    %v1060 = vpop.xlane.xlu0 %1059
    %1061 = vmax.xlane.f32.xlu0 %v1044
    %v1062 = vpop.xlane.xlu0 %1061
    %1063 = vmax.xlane.f32.xlu0 %v1045
    %v1064 = vpop.xlane.xlu0 %1063
    %1065 = vmax.xlane.f32.xlu0 %v1046
    %v1066 = vpop.xlane.xlu0 %1065
    %1067 = vmax.xlane.f32.xlu0 %v1047
    %v1068 = vpop.xlane.xlu0 %1067
    %1069 = vmax.xlane.f32.xlu0 %v1048
    %v1070 = vpop.xlane.xlu0 %1069
    %1071 = vmax.xlane.f32.xlu0 %v1049
    %v1072 = vpop.xlane.xlu0 %1071
    %1073 = vmax.xlane.f32.xlu0 %v1050
    %v1074 = vpop.xlane.xlu0 %1073
    %1075 = vmax.xlane.f32.xlu0 %v1051
    %v1076 = vpop.xlane.xlu0 %1075
    %1077 = vmax.xlane.f32.xlu0 %v1052
    %v1078 = vpop.xlane.xlu0 %1077
    %1079 = vmax.xlane.f32.xlu0 %v1053
    %v1080 = vpop.xlane.xlu0 %1079
    %1081 = vmax.xlane.f32.xlu0 %v1054
    %v1082 = vpop.xlane.xlu0 %1081
    %1083 = vmax.xlane.f32.xlu0 %v1055
    %v1084 = vpop.xlane.xlu0 %1083
    %1085 = vmax.xlane.f32.xlu0 %v1056
    %v1086 = vpop.xlane.xlu0 %1085
    %1087 = vmax.xlane.f32.xlu0 %v1057
    %v1088 = vpop.xlane.xlu0 %1087
    %1089 = vmax.xlane.f32.xlu0 %v1058
    %v1090 = vpop.xlane.xlu0 %1089
    %v1091 = vsub.f32 %v1043, %v1060
    %v1092 = vsub.f32 %v1044, %v1062
    %v1093 = vsub.f32 %v1045, %v1064
    %v1094 = vsub.f32 %v1046, %v1066
    %v1095 = vsub.f32 %v1047, %v1068
    %v1096 = vsub.f32 %v1048, %v1070
    %v1097 = vsub.f32 %v1049, %v1072
    %v1098 = vsub.f32 %v1050, %v1074
    %v1099 = vsub.f32 %v1051, %v1076
    %v1100 = vsub.f32 %v1052, %v1078
    %v1101 = vsub.f32 %v1053, %v1080
    %v1102 = vsub.f32 %v1054, %v1082
    %v1103 = vsub.f32 %v1055, %v1084
    %v1104 = vsub.f32 %v1056, %v1086
    %v1105 = vsub.f32 %v1057, %v1088
    %v1106 = vsub.f32 %v1058, %v1090
    %v1107 = vmul.f32 %v1091, 1.442695
    %v1108 = vpow.pop %v1107
    %v1109 = vmul.f32 %v1092, 1.442695
    %v1110 = vpow.pop %v1109
    %v1111 = vmul.f32 %v1093, 1.442695
    %v1112 = vpow.pop %v1111
    %v1113 = vmul.f32 %v1094, 1.442695
    %v1114 = vpow.pop %v1113
    %v1115 = vmul.f32 %v1095, 1.442695
    %v1116 = vpow.pop %v1115
    %v1117 = vmul.f32 %v1096, 1.442695
    %v1118 = vpow.pop %v1117
    %v1119 = vmul.f32 %v1097, 1.442695
    %v1120 = vpow.pop %v1119
    %v1121 = vmul.f32 %v1098, 1.442695
    %v1122 = vpow.pop %v1121
    %v1123 = vmul.f32 %v1099, 1.442695
    %v1124 = vpow.pop %v1123
    %v1125 = vmul.f32 %v1100, 1.442695
    %v1126 = vpow.pop %v1125
    %v1127 = vmul.f32 %v1101, 1.442695
    %v1128 = vpow.pop %v1127
    %v1129 = vmul.f32 %v1102, 1.442695
    %v1130 = vpow.pop %v1129
    %v1131 = vmul.f32 %v1103, 1.442695
    %v1132 = vpow.pop %v1131
    %v1133 = vmul.f32 %v1104, 1.442695
    %v1134 = vpow.pop %v1133
    %v1135 = vmul.f32 %v1105, 1.442695
    %v1136 = vpow.pop %v1135
    %v1137 = vmul.f32 %v1106, 1.442695
    %v1138 = vpow.pop %v1137
    %1139 = vadd.xlane.f32.xlu0 %v1108
    %v1140 = vpop.xlane.xlu0 %1139
    %1141 = vadd.xlane.f32.xlu0 %v1110
    %v1142 = vpop.xlane.xlu0 %1141
    %1143 = vadd.xlane.f32.xlu0 %v1112
    %v1144 = vpop.xlane.xlu0 %1143
    %1145 = vadd.xlane.f32.xlu0 %v1114
    %v1146 = vpop.xlane.xlu0 %1145
    %1147 = vadd.xlane.f32.xlu0 %v1116
    %v1148 = vpop.xlane.xlu0 %1147
    %1149 = vadd.xlane.f32.xlu0 %v1118
    %v1150 = vpop.xlane.xlu0 %1149
    %1151 = vadd.xlane.f32.xlu0 %v1120
    %v1152 = vpop.xlane.xlu0 %1151
    %1153 = vadd.xlane.f32.xlu0 %v1122
    %v1154 = vpop.xlane.xlu0 %1153
    %1155 = vadd.xlane.f32.xlu0 %v1124
    %v1156 = vpop.xlane.xlu0 %1155
    %1157 = vadd.xlane.f32.xlu0 %v1126
    %v1158 = vpop.xlane.xlu0 %1157
    %1159 = vadd.xlane.f32.xlu0 %v1128
    %v1160 = vpop.xlane.xlu0 %1159
    %1161 = vadd.xlane.f32.xlu0 %v1130
    %v1162 = vpop.xlane.xlu0 %1161
    %1163 = vadd.xlane.f32.xlu0 %v1132
    %v1164 = vpop.xlane.xlu0 %1163
    %1165 = vadd.xlane.f32.xlu0 %v1134
    %v1166 = vpop.xlane.xlu0 %1165
    %1167 = vadd.xlane.f32.xlu0 %v1136
    %v1168 = vpop.xlane.xlu0 %1167
    %1169 = vadd.xlane.f32.xlu0 %v1138
    %v1170 = vpop.xlane.xlu0 %1169
    %v1171 = vrcp.pop %v1140
    %v1172 = vrcp.pop %v1142
    %v1173 = vrcp.pop %v1144
    %v1174 = vrcp.pop %v1146
    %v1175 = vrcp.pop %v1148
    %v1176 = vrcp.pop %v1150
    %v1177 = vrcp.pop %v1152
    %v1178 = vrcp.pop %v1154
    %v1179 = vrcp.pop %v1156
    %v1180 = vrcp.pop %v1158
    %v1181 = vrcp.pop %v1160
    %v1182 = vrcp.pop %v1162
    %v1183 = vrcp.pop %v1164
    %v1184 = vrcp.pop %v1166
    %v1185 = vrcp.pop %v1168
    %v1186 = vrcp.pop %v1170
    %v1187 = vmul.f32 %v1108, %v1171
    %v1188 = vmul.f32 %v1110, %v1172
    %v1189 = vmul.f32 %v1112, %v1173
    %v1190 = vmul.f32 %v1114, %v1174
    %v1191 = vmul.f32 %v1116, %v1175
    %v1192 = vmul.f32 %v1118, %v1176
    %v1193 = vmul.f32 %v1120, %v1177
    %v1194 = vmul.f32 %v1122, %v1178
    %v1195 = vmul.f32 %v1124, %v1179
    %v1196 = vmul.f32 %v1126, %v1180
    %v1197 = vmul.f32 %v1128, %v1181
    %v1198 = vmul.f32 %v1130, %v1182
    %v1199 = vmul.f32 %v1132, %v1183
    %v1200 = vmul.f32 %v1134, %v1184
    %v1201 = vmul.f32 %v1136, %v1185
    %v1202 = vmul.f32 %v1138, %v1186
    %v1203 = vpack.c.bf16 %v1188, %v1187
    %v1204 = vpack.c.bf16 %v1190, %v1189
    %v1205 = vpack.c.bf16 %v1192, %v1191
    %v1206 = vpack.c.bf16 %v1194, %v1193
    %v1207 = vpack.c.bf16 %v1196, %v1195
    %v1208 = vpack.c.bf16 %v1198, %v1197
    %v1209 = vpack.c.bf16 %v1200, %v1199
    %v1210 = vpack.c.bf16 %v1202, %v1201
    %1211 = vmatpush.bf16.msra.mxu0 %v822
    %1212 = vmatpush.bf16.msra.mxu0 %v821
    %1213 = vmatpush.bf16.msra.mxu0 %v820
    %1214 = vmatpush.bf16.msra.mxu0 %v819
    %1215 = vmatpush.bf16.msra.mxu0 %v818
    %1216 = vmatpush.bf16.msra.mxu0 %v817
    %1217 = vmatpush.bf16.msra.mxu0 %v816
    %1218 = vmatpush.bf16.msra.mxu0 %v815
    %1219 = vmatmul.bf16.gmra.mxu0 %v1203
    %v1220 = vpop.f32.mrf.mxu0
    %v1221 = vadd.f32 0.0, %v1220
    %v1222 = vpop.f32.mrf.mxu0
    %v1223 = vadd.f32 0.0, %v1222
    %1224 = vmatmul.bf16.gmra.mxu0 %v1204
    %v1225 = vpop.f32.mrf.mxu0
    %v1226 = vadd.f32 0.0, %v1225
    %v1227 = vpop.f32.mrf.mxu0
    %v1228 = vadd.f32 0.0, %v1227
    %1229 = vmatmul.bf16.gmra.mxu0 %v1205
    %v1230 = vpop.f32.mrf.mxu0
    %v1231 = vadd.f32 0.0, %v1230
    %v1232 = vpop.f32.mrf.mxu0
    %v1233 = vadd.f32 0.0, %v1232
    %1234 = vmatmul.bf16.gmra.mxu0 %v1206
    %v1235 = vpop.f32.mrf.mxu0
    %v1236 = vadd.f32 0.0, %v1235
    %v1237 = vpop.f32.mrf.mxu0
    %v1238 = vadd.f32 0.0, %v1237
    %1239 = vmatmul.bf16.gmra.mxu0 %v1207
    %v1240 = vpop.f32.mrf.mxu0
    %v1241 = vadd.f32 0.0, %v1240
    %v1242 = vpop.f32.mrf.mxu0
    %v1243 = vadd.f32 0.0, %v1242
    %1244 = vmatmul.bf16.gmra.mxu0 %v1208
    %v1245 = vpop.f32.mrf.mxu0
    %v1246 = vadd.f32 0.0, %v1245
    %v1247 = vpop.f32.mrf.mxu0
    %v1248 = vadd.f32 0.0, %v1247
    %1249 = vmatmul.bf16.gmra.mxu0 %v1209
    %v1250 = vpop.f32.mrf.mxu0
    %v1251 = vadd.f32 0.0, %v1250
    %v1252 = vpop.f32.mrf.mxu0
    %v1253 = vadd.f32 0.0, %v1252
    %1254 = vmatmul.bf16.gmra.mxu0 %v1210
    %v1255 = vpop.f32.mrf.mxu0
    %v1256 = vadd.f32 0.0, %v1255
    %v1257 = vpop.f32.mrf.mxu0
    %v1258 = vadd.f32 0.0, %v1257
    %1259 = vdwg.mxu0
    %1260 = vset.pattern.permute.xlu0 1
    %1261 = vperm.xlu0 %1260, %v846
    %v1262 = vpop.permute.xlu0 %1261
    %1264 = vset.pattern.permute.xlu0 1
    %1265 = vperm.xlu0 %1264, %v848
    %v1266 = vpop.permute.xlu0 %1265
    %1268 = vset.pattern.permute.xlu0 1
    %1269 = vperm.xlu0 %1268, %v851
    %v1270 = vpop.permute.xlu0 %1269
    %1272 = vset.pattern.permute.xlu0 1
    %1273 = vperm.xlu0 %1272, %v853
    %v1274 = vpop.permute.xlu0 %1273
    %1276 = vset.pattern.permute.xlu0 1
    %1277 = vperm.xlu0 %1276, %v856
    %v1278 = vpop.permute.xlu0 %1277
    %1280 = vset.pattern.permute.xlu0 1
    %1281 = vperm.xlu0 %1280, %v858
    %v1282 = vpop.permute.xlu0 %1281
    %1284 = vset.pattern.permute.xlu0 1
    %1285 = vperm.xlu0 %1284, %v861
    %v1286 = vpop.permute.xlu0 %1285
    %1288 = vset.pattern.permute.xlu0 1
    %1289 = vperm.xlu0 %1288, %v863
    %v1290 = vpop.permute.xlu0 %1289
    %1292 = vset.pattern.permute.xlu0 1
    %1293 = vperm.xlu0 %1292, %v866
    %v1294 = vpop.permute.xlu0 %1293
    %1296 = vset.pattern.permute.xlu0 1
    %1297 = vperm.xlu0 %1296, %v868
    %v1298 = vpop.permute.xlu0 %1297
    %1300 = vset.pattern.permute.xlu0 1
    %1301 = vperm.xlu0 %1300, %v871
    %v1302 = vpop.permute.xlu0 %1301
    %1304 = vset.pattern.permute.xlu0 1
    %1305 = vperm.xlu0 %1304, %v873
    %v1306 = vpop.permute.xlu0 %1305
    %1308 = vset.pattern.permute.xlu0 1
    %1309 = vperm.xlu0 %1308, %v876
    %v1310 = vpop.permute.xlu0 %1309
    %1312 = vset.pattern.permute.xlu0 1
    %1313 = vperm.xlu0 %1312, %v878
    %v1314 = vpop.permute.xlu0 %1313
    %1316 = vset.pattern.permute.xlu0 1
    %1317 = vperm.xlu0 %1316, %v881
    %v1318 = vpop.permute.xlu0 %1317
    %1320 = vset.pattern.permute.xlu0 1
    %1321 = vperm.xlu0 %1320, %v883
    %v1322 = vpop.permute.xlu0 %1321
    %v1324 = vperm.slane %v895, 1
    %v1325 = vadd.f32 %v1262, %v1324
    %v1326 = vadd.f32 %v1266, %v1324
    %v1327 = vadd.f32 %v1270, %v1324
    %v1328 = vadd.f32 %v1274, %v1324
    %v1329 = vadd.f32 %v1278, %v1324
    %v1330 = vadd.f32 %v1282, %v1324
    %v1331 = vadd.f32 %v1286, %v1324
    %v1332 = vadd.f32 %v1290, %v1324
    %v1333 = vadd.f32 %v1294, %v1324
    %v1334 = vadd.f32 %v1298, %v1324
    %v1335 = vadd.f32 %v1302, %v1324
    %v1336 = vadd.f32 %v1306, %v1324
    %v1337 = vadd.f32 %v1310, %v1324
    %v1338 = vadd.f32 %v1314, %v1324
    %v1339 = vadd.f32 %v1318, %v1324
    %v1340 = vadd.f32 %v1322, %v1324
    %vm1341 = vcmp.gt.f32.partialorder %v1325, 0.0
    %vm1342 = vcmp.gt.f32.partialorder %v1326, 0.0
    %vm1343 = vcmp.gt.f32.partialorder %v1327, 0.0
    %vm1344 = vcmp.gt.f32.partialorder %v1328, 0.0
    %vm1345 = vcmp.gt.f32.partialorder %v1329, 0.0
    %vm1346 = vcmp.gt.f32.partialorder %v1330, 0.0
    %vm1347 = vcmp.gt.f32.partialorder %v1331, 0.0
    %vm1348 = vcmp.gt.f32.partialorder %v1332, 0.0
    %vm1349 = vcmp.gt.f32.partialorder %v1333, 0.0
    %vm1350 = vcmp.gt.f32.partialorder %v1334, 0.0
    %vm1351 = vcmp.gt.f32.partialorder %v1335, 0.0
    %vm1352 = vcmp.gt.f32.partialorder %v1336, 0.0
    %vm1353 = vcmp.gt.f32.partialorder %v1337, 0.0
    %vm1354 = vcmp.gt.f32.partialorder %v1338, 0.0
    %vm1355 = vcmp.gt.f32.partialorder %v1339, 0.0
    %vm1356 = vcmp.gt.f32.partialorder %v1340, 0.0
    %v1357 = vmul.f32 %v1325, 0.2
    %v1358 = vmul.f32 %v1326, 0.2
    %v1359 = vmul.f32 %v1327, 0.2
    %v1360 = vmul.f32 %v1328, 0.2
    %v1361 = vmul.f32 %v1329, 0.2
    %v1362 = vmul.f32 %v1330, 0.2
    %v1363 = vmul.f32 %v1331, 0.2
    %v1364 = vmul.f32 %v1332, 0.2
    %v1365 = vmul.f32 %v1333, 0.2
    %v1366 = vmul.f32 %v1334, 0.2
    %v1367 = vmul.f32 %v1335, 0.2
    %v1368 = vmul.f32 %v1336, 0.2
    %v1369 = vmul.f32 %v1337, 0.2
    %v1370 = vmul.f32 %v1338, 0.2
    %v1371 = vmul.f32 %v1339, 0.2
    %v1372 = vmul.f32 %v1340, 0.2
    %v1373 = vsel %vm1341, %v1325, %v1357
    %v1374 = vsel %vm1342, %v1326, %v1358
    %v1375 = vsel %vm1343, %v1327, %v1359
    %v1376 = vsel %vm1344, %v1328, %v1360
    %v1377 = vsel %vm1345, %v1329, %v1361
    %v1378 = vsel %vm1346, %v1330, %v1362
    %v1379 = vsel %vm1347, %v1331, %v1363
    %v1380 = vsel %vm1348, %v1332, %v1364
    %v1381 = vsel %vm1349, %v1333, %v1365
    %v1382 = vsel %vm1350, %v1334, %v1366
    %v1383 = vsel %vm1351, %v1335, %v1367
    %v1384 = vsel %vm1352, %v1336, %v1368
    %v1385 = vsel %vm1353, %v1337, %v1369
    %v1386 = vsel %vm1354, %v1338, %v1370
    %v1387 = vsel %vm1355, %v1339, %v1371
    %v1388 = vsel %vm1356, %v1340, %v1372
    %v1389 = vadd.f32 %v1373, %v118
    %v1390 = vadd.f32 %v1374, %v119
    %v1391 = vadd.f32 %v1375, %v120
    %v1392 = vadd.f32 %v1376, %v121
    %v1393 = vadd.f32 %v1377, %v122
    %v1394 = vadd.f32 %v1378, %v123
    %v1395 = vadd.f32 %v1379, %v124
    %v1396 = vadd.f32 %v1380, %v125
    %v1397 = vadd.f32 %v1381, %v126
    %v1398 = vadd.f32 %v1382, %v127
    %v1399 = vadd.f32 %v1383, %v128
    %v1400 = vadd.f32 %v1384, %v129
    %v1401 = vadd.f32 %v1385, %v130
    %v1402 = vadd.f32 %v1386, %v131
    %v1403 = vadd.f32 %v1387, %v132
    %v1404 = vadd.f32 %v1388, %v133
    %1405 = vmax.xlane.f32.xlu0 %v1389
    %v1406 = vpop.xlane.xlu0 %1405
    %1407 = vmax.xlane.f32.xlu0 %v1390
    %v1408 = vpop.xlane.xlu0 %1407
    %1409 = vmax.xlane.f32.xlu0 %v1391
    %v1410 = vpop.xlane.xlu0 %1409
    %1411 = vmax.xlane.f32.xlu0 %v1392
    %v1412 = vpop.xlane.xlu0 %1411
    %1413 = vmax.xlane.f32.xlu0 %v1393
    %v1414 = vpop.xlane.xlu0 %1413
    %1415 = vmax.xlane.f32.xlu0 %v1394
    %v1416 = vpop.xlane.xlu0 %1415
    %1417 = vmax.xlane.f32.xlu0 %v1395
    %v1418 = vpop.xlane.xlu0 %1417
    %1419 = vmax.xlane.f32.xlu0 %v1396
    %v1420 = vpop.xlane.xlu0 %1419
    %1421 = vmax.xlane.f32.xlu0 %v1397
    %v1422 = vpop.xlane.xlu0 %1421
    %1423 = vmax.xlane.f32.xlu0 %v1398
    %v1424 = vpop.xlane.xlu0 %1423
    %1425 = vmax.xlane.f32.xlu0 %v1399
    %v1426 = vpop.xlane.xlu0 %1425
    %1427 = vmax.xlane.f32.xlu0 %v1400
    %v1428 = vpop.xlane.xlu0 %1427
    %1429 = vmax.xlane.f32.xlu0 %v1401
    %v1430 = vpop.xlane.xlu0 %1429
    %1431 = vmax.xlane.f32.xlu0 %v1402
    %v1432 = vpop.xlane.xlu0 %1431
    %1433 = vmax.xlane.f32.xlu0 %v1403
    %v1434 = vpop.xlane.xlu0 %1433
    %1435 = vmax.xlane.f32.xlu0 %v1404
    %v1436 = vpop.xlane.xlu0 %1435
    %v1437 = vsub.f32 %v1389, %v1406
    %v1438 = vsub.f32 %v1390, %v1408
    %v1439 = vsub.f32 %v1391, %v1410
    %v1440 = vsub.f32 %v1392, %v1412
    %v1441 = vsub.f32 %v1393, %v1414
    %v1442 = vsub.f32 %v1394, %v1416
    %v1443 = vsub.f32 %v1395, %v1418
    %v1444 = vsub.f32 %v1396, %v1420
    %v1445 = vsub.f32 %v1397, %v1422
    %v1446 = vsub.f32 %v1398, %v1424
    %v1447 = vsub.f32 %v1399, %v1426
    %v1448 = vsub.f32 %v1400, %v1428
    %v1449 = vsub.f32 %v1401, %v1430
    %v1450 = vsub.f32 %v1402, %v1432
    %v1451 = vsub.f32 %v1403, %v1434
    %v1452 = vsub.f32 %v1404, %v1436
    %v1453 = vmul.f32 %v1437, 1.442695
    %v1454 = vpow.pop %v1453
    %v1455 = vmul.f32 %v1438, 1.442695
    %v1456 = vpow.pop %v1455
    %v1457 = vmul.f32 %v1439, 1.442695
    %v1458 = vpow.pop %v1457
    %v1459 = vmul.f32 %v1440, 1.442695
    %v1460 = vpow.pop %v1459
    %v1461 = vmul.f32 %v1441, 1.442695
    %v1462 = vpow.pop %v1461
    %v1463 = vmul.f32 %v1442, 1.442695
    %v1464 = vpow.pop %v1463
    %v1465 = vmul.f32 %v1443, 1.442695
    %v1466 = vpow.pop %v1465
    %v1467 = vmul.f32 %v1444, 1.442695
    %v1468 = vpow.pop %v1467
    %v1469 = vmul.f32 %v1445, 1.442695
    %v1470 = vpow.pop %v1469
    %v1471 = vmul.f32 %v1446, 1.442695
    %v1472 = vpow.pop %v1471
    %v1473 = vmul.f32 %v1447, 1.442695
    %v1474 = vpow.pop %v1473
    %v1475 = vmul.f32 %v1448, 1.442695
    %v1476 = vpow.pop %v1475
    %v1477 = vmul.f32 %v1449, 1.442695
    %v1478 = vpow.pop %v1477
    %v1479 = vmul.f32 %v1450, 1.442695
    %v1480 = vpow.pop %v1479
    %v1481 = vmul.f32 %v1451, 1.442695
    %v1482 = vpow.pop %v1481
    %v1483 = vmul.f32 %v1452, 1.442695
    %v1484 = vpow.pop %v1483
    %1485 = vadd.xlane.f32.xlu0 %v1454
    %v1486 = vpop.xlane.xlu0 %1485
    %1487 = vadd.xlane.f32.xlu0 %v1456
    %v1488 = vpop.xlane.xlu0 %1487
    %1489 = vadd.xlane.f32.xlu0 %v1458
    %v1490 = vpop.xlane.xlu0 %1489
    %1491 = vadd.xlane.f32.xlu0 %v1460
    %v1492 = vpop.xlane.xlu0 %1491
    %1493 = vadd.xlane.f32.xlu0 %v1462
    %v1494 = vpop.xlane.xlu0 %1493
    %1495 = vadd.xlane.f32.xlu0 %v1464
    %v1496 = vpop.xlane.xlu0 %1495
    %1497 = vadd.xlane.f32.xlu0 %v1466
    %v1498 = vpop.xlane.xlu0 %1497
    %1499 = vadd.xlane.f32.xlu0 %v1468
    %v1500 = vpop.xlane.xlu0 %1499
    %1501 = vadd.xlane.f32.xlu0 %v1470
    %v1502 = vpop.xlane.xlu0 %1501
    %1503 = vadd.xlane.f32.xlu0 %v1472
    %v1504 = vpop.xlane.xlu0 %1503
    %1505 = vadd.xlane.f32.xlu0 %v1474
    %v1506 = vpop.xlane.xlu0 %1505
    %1507 = vadd.xlane.f32.xlu0 %v1476
    %v1508 = vpop.xlane.xlu0 %1507
    %1509 = vadd.xlane.f32.xlu0 %v1478
    %v1510 = vpop.xlane.xlu0 %1509
    %1511 = vadd.xlane.f32.xlu0 %v1480
    %v1512 = vpop.xlane.xlu0 %1511
    %1513 = vadd.xlane.f32.xlu0 %v1482
    %v1514 = vpop.xlane.xlu0 %1513
    %1515 = vadd.xlane.f32.xlu0 %v1484
    %v1516 = vpop.xlane.xlu0 %1515
    %v1517 = vrcp.pop %v1486
    %v1518 = vrcp.pop %v1488
    %v1519 = vrcp.pop %v1490
    %v1520 = vrcp.pop %v1492
    %v1521 = vrcp.pop %v1494
    %v1522 = vrcp.pop %v1496
    %v1523 = vrcp.pop %v1498
    %v1524 = vrcp.pop %v1500
    %v1525 = vrcp.pop %v1502
    %v1526 = vrcp.pop %v1504
    %v1527 = vrcp.pop %v1506
    %v1528 = vrcp.pop %v1508
    %v1529 = vrcp.pop %v1510
    %v1530 = vrcp.pop %v1512
    %v1531 = vrcp.pop %v1514
    %v1532 = vrcp.pop %v1516
    %v1533 = vmul.f32 %v1454, %v1517
    %v1534 = vmul.f32 %v1456, %v1518
    %v1535 = vmul.f32 %v1458, %v1519
    %v1536 = vmul.f32 %v1460, %v1520
    %v1537 = vmul.f32 %v1462, %v1521
    %v1538 = vmul.f32 %v1464, %v1522
    %v1539 = vmul.f32 %v1466, %v1523
    %v1540 = vmul.f32 %v1468, %v1524
    %v1541 = vmul.f32 %v1470, %v1525
    %v1542 = vmul.f32 %v1472, %v1526
    %v1543 = vmul.f32 %v1474, %v1527
    %v1544 = vmul.f32 %v1476, %v1528
    %v1545 = vmul.f32 %v1478, %v1529
    %v1546 = vmul.f32 %v1480, %v1530
    %v1547 = vmul.f32 %v1482, %v1531
    %v1548 = vmul.f32 %v1484, %v1532
    %v1549 = vpack.c.bf16 %v1534, %v1533
    %v1550 = vpack.c.bf16 %v1536, %v1535
    %v1551 = vpack.c.bf16 %v1538, %v1537
    %v1552 = vpack.c.bf16 %v1540, %v1539
    %v1553 = vpack.c.bf16 %v1542, %v1541
    %v1554 = vpack.c.bf16 %v1544, %v1543
    %v1555 = vpack.c.bf16 %v1546, %v1545
    %v1556 = vpack.c.bf16 %v1548, %v1547
    %1557 = vrot.lane.b32.xlu0 %v815, 64
    %v1558 = vpop.permute.xlu0 %1557
    %1559 = vrot.lane.b32.xlu0 %v816, 64
    %v1560 = vpop.permute.xlu0 %1559
    %1561 = vrot.lane.b32.xlu0 %v817, 64
    %v1562 = vpop.permute.xlu0 %1561
    %1563 = vrot.lane.b32.xlu0 %v818, 64
    %v1564 = vpop.permute.xlu0 %1563
    %1565 = vrot.lane.b32.xlu0 %v819, 64
    %v1566 = vpop.permute.xlu0 %1565
    %1567 = vrot.lane.b32.xlu0 %v820, 64
    %v1568 = vpop.permute.xlu0 %1567
    %1569 = vrot.lane.b32.xlu0 %v821, 64
    %v1570 = vpop.permute.xlu0 %1569
    %1571 = vrot.lane.b32.xlu0 %v822, 64
    %v1572 = vpop.permute.xlu0 %1571
    %1581 = vmatpush.bf16.msra.mxu0 %v1572
    %1582 = vmatpush.bf16.msra.mxu0 %v1570
    %1583 = vmatpush.bf16.msra.mxu0 %v1568
    %1584 = vmatpush.bf16.msra.mxu0 %v1566
    %1585 = vmatpush.bf16.msra.mxu0 %v1564
    %1586 = vmatpush.bf16.msra.mxu0 %v1562
    %1587 = vmatpush.bf16.msra.mxu0 %v1560
    %1588 = vmatpush.bf16.msra.mxu0 %v1558
    %1589 = vmatmul.bf16.gmra.mxu0 %v1549
    %v1590 = vpop.f32.mrf.mxu0
    %v1591 = vadd.f32 0.0, %v1590
    %v1592 = vpop.f32.mrf.mxu0
    %v1593 = vadd.f32 0.0, %v1592
    %1594 = vmatmul.bf16.gmra.mxu0 %v1550
    %v1595 = vpop.f32.mrf.mxu0
    %v1596 = vadd.f32 0.0, %v1595
    %v1597 = vpop.f32.mrf.mxu0
    %v1598 = vadd.f32 0.0, %v1597
    %1599 = vmatmul.bf16.gmra.mxu0 %v1551
    %v1600 = vpop.f32.mrf.mxu0
    %v1601 = vadd.f32 0.0, %v1600
    %v1602 = vpop.f32.mrf.mxu0
    %v1603 = vadd.f32 0.0, %v1602
    %1604 = vmatmul.bf16.gmra.mxu0 %v1552
    %v1605 = vpop.f32.mrf.mxu0
    %v1606 = vadd.f32 0.0, %v1605
    %v1607 = vpop.f32.mrf.mxu0
    %v1608 = vadd.f32 0.0, %v1607
    %1609 = vmatmul.bf16.gmra.mxu0 %v1553
    %v1610 = vpop.f32.mrf.mxu0
    %v1611 = vadd.f32 0.0, %v1610
    %v1612 = vpop.f32.mrf.mxu0
    %v1613 = vadd.f32 0.0, %v1612
    %1614 = vmatmul.bf16.gmra.mxu0 %v1554
    %v1615 = vpop.f32.mrf.mxu0
    %v1616 = vadd.f32 0.0, %v1615
    %v1617 = vpop.f32.mrf.mxu0
    %v1618 = vadd.f32 0.0, %v1617
    %1619 = vmatmul.bf16.gmra.mxu0 %v1555
    %v1620 = vpop.f32.mrf.mxu0
    %v1621 = vadd.f32 0.0, %v1620
    %v1622 = vpop.f32.mrf.mxu0
    %v1623 = vadd.f32 0.0, %v1622
    %1624 = vmatmul.bf16.gmra.mxu0 %v1556
    %v1625 = vpop.f32.mrf.mxu0
    %v1626 = vadd.f32 0.0, %v1625
    %v1627 = vpop.f32.mrf.mxu0
    %v1628 = vadd.f32 0.0, %v1627
    %1629 = vdwg.mxu0
    %1646 = vrot.lane.b32.xlu0 %v1591, 64
    %v1647 = vpop.permute.xlu0 %1646
    %1648 = vrot.lane.b32.xlu0 %v1593, 64
    %v1649 = vpop.permute.xlu0 %1648
    %1650 = vrot.lane.b32.xlu0 %v1596, 64
    %v1651 = vpop.permute.xlu0 %1650
    %1652 = vrot.lane.b32.xlu0 %v1598, 64
    %v1653 = vpop.permute.xlu0 %1652
    %1654 = vrot.lane.b32.xlu0 %v1601, 64
    %v1655 = vpop.permute.xlu0 %1654
    %1656 = vrot.lane.b32.xlu0 %v1603, 64
    %v1657 = vpop.permute.xlu0 %1656
    %1658 = vrot.lane.b32.xlu0 %v1606, 64
    %v1659 = vpop.permute.xlu0 %1658
    %1660 = vrot.lane.b32.xlu0 %v1608, 64
    %v1661 = vpop.permute.xlu0 %1660
    %1662 = vrot.lane.b32.xlu0 %v1611, 64
    %v1663 = vpop.permute.xlu0 %1662
    %1664 = vrot.lane.b32.xlu0 %v1613, 64
    %v1665 = vpop.permute.xlu0 %1664
    %1666 = vrot.lane.b32.xlu0 %v1616, 64
    %v1667 = vpop.permute.xlu0 %1666
    %1668 = vrot.lane.b32.xlu0 %v1618, 64
    %v1669 = vpop.permute.xlu0 %1668
    %1670 = vrot.lane.b32.xlu0 %v1621, 64
    %v1671 = vpop.permute.xlu0 %1670
    %1672 = vrot.lane.b32.xlu0 %v1623, 64
    %v1673 = vpop.permute.xlu0 %1672
    %1674 = vrot.lane.b32.xlu0 %v1626, 64
    %v1675 = vpop.permute.xlu0 %1674
    %1676 = vrot.lane.b32.xlu0 %v1628, 64
    %v1677 = vpop.permute.xlu0 %1676
    %vm1694 = vcmask 523264
    %v1695 = vsel %vm1694, %v1221, %v1647
    %v1696 = vsel %vm1694, %v1223, %v1649
    %v1697 = vsel %vm1694, %v1226, %v1651
    %v1698 = vsel %vm1694, %v1228, %v1653
    %v1699 = vsel %vm1694, %v1231, %v1655
    %v1700 = vsel %vm1694, %v1233, %v1657
    %v1701 = vsel %vm1694, %v1236, %v1659
    %v1702 = vsel %vm1694, %v1238, %v1661
    %v1703 = vsel %vm1694, %v1241, %v1663
    %v1704 = vsel %vm1694, %v1243, %v1665
    %v1705 = vsel %vm1694, %v1246, %v1667
    %v1706 = vsel %vm1694, %v1248, %v1669
    %v1707 = vsel %vm1694, %v1251, %v1671
    %v1708 = vsel %vm1694, %v1253, %v1673
    %v1709 = vsel %vm1694, %v1256, %v1675
    %v1710 = vsel %vm1694, %v1258, %v1677
    %v1711 = vld [vmem:[#allocation5 + $0x4] sm:$0x1]
    %v1712 = vperm.slane %v1711, 0
    %v1713 = vadd.f32 %v1695, %v1712
    %v1714 = vadd.f32 %v1696, %v1712
    %v1715 = vadd.f32 %v1697, %v1712
    %v1716 = vadd.f32 %v1698, %v1712
    %v1717 = vadd.f32 %v1699, %v1712
    %v1718 = vadd.f32 %v1700, %v1712
    %v1719 = vadd.f32 %v1701, %v1712
    %v1720 = vadd.f32 %v1702, %v1712
    %v1721 = vadd.f32 %v1703, %v1712
    %v1722 = vadd.f32 %v1704, %v1712
    %v1723 = vadd.f32 %v1705, %v1712
    %v1724 = vadd.f32 %v1706, %v1712
    %v1725 = vadd.f32 %v1707, %v1712
    %v1726 = vadd.f32 %v1708, %v1712
    %v1727 = vadd.f32 %v1709, %v1712
    %v1728 = vadd.f32 %v1710, %v1712
    %v1729 = vld [vmem:[#allocation7 + $0x4] sm:$0xf]
    %v1730 = vld [vmem:[#allocation7 + $0x1c] sm:$0xf]
    %v1731 = vld [vmem:[#allocation7 + $0x34] sm:$0xf]
    %v1732 = vld [vmem:[#allocation7 + $0x4c] sm:$0xf]
    %v1733 = vld [vmem:[#allocation7 + $0x64] sm:$0xf]
    %v1734 = vld [vmem:[#allocation7 + $0x7c] sm:$0xf]
    %v1735 = vld [vmem:[#allocation7 + $0x94] sm:$0xf]
    %v1736 = vld [vmem:[#allocation7 + $0xac] sm:$0xf]
    %v1737 = vld [vmem:[#allocation7 + $0xc4] sm:$0xf]
    %v1738 = vld [vmem:[#allocation7 + $0xdc] sm:$0xf]
    %v1739 = vld [vmem:[#allocation7 + $0xf4] sm:$0xf]
    %v1740 = vld [vmem:[#allocation7 + $0x10c] sm:$0xf]
    %v1741 = vld [vmem:[#allocation7 + $0x124] sm:$0xf]
    %v1742 = vld [vmem:[#allocation7 + $0x13c] sm:$0xf]
    %v1743 = vld [vmem:[#allocation7 + $0x154] sm:$0xf]
    %v1744 = vld [vmem:[#allocation7 + $0x16c] sm:$0xf]
    %v1745 = vld [vmem:[#allocation5 + $0x5] sm:$0x1]
    %v1746 = vperm.slane %v1745, 0
    %v1763 = vunpack.c.l.b16 %v1729
    %v1764 = vunpack.c.l.b16 %v1730
    %v1765 = vunpack.c.l.b16 %v1731
    %v1766 = vunpack.c.l.b16 %v1732
    %v1767 = vunpack.c.l.b16 %v1733
    %v1768 = vunpack.c.l.b16 %v1734
    %v1769 = vunpack.c.l.b16 %v1735
    %v1770 = vunpack.c.l.b16 %v1736
    %v1771 = vunpack.c.l.b16 %v1737
    %v1772 = vunpack.c.l.b16 %v1738
    %v1773 = vunpack.c.l.b16 %v1739
    %v1774 = vunpack.c.l.b16 %v1740
    %v1775 = vunpack.c.l.b16 %v1741
    %v1776 = vunpack.c.l.b16 %v1742
    %v1777 = vunpack.c.l.b16 %v1743
    %v1778 = vunpack.c.l.b16 %v1744
    %v1779 = vpack.c.b16 %v1764, %v1763
    %v1780 = vpack.c.b16 %v1766, %v1765
    %v1781 = vpack.c.b16 %v1768, %v1767
    %v1782 = vpack.c.b16 %v1770, %v1769
    %v1783 = vpack.c.b16 %v1772, %v1771
    %v1784 = vpack.c.b16 %v1774, %v1773
    %v1785 = vpack.c.b16 %v1776, %v1775
    %v1786 = vpack.c.b16 %v1778, %v1777
    %1795 = vmatpush.bf16.msra.mxu0 %v1786
    %1796 = vmatpush.bf16.msra.mxu0 %v1785
    %1797 = vmatpush.bf16.msra.mxu0 %v1784
    %1798 = vmatpush.bf16.msra.mxu0 %v1783
    %1799 = vmatpush.bf16.msra.mxu0 %v1782
    %1800 = vmatpush.bf16.msra.mxu0 %v1781
    %1801 = vmatpush.bf16.msra.mxu0 %v1780
    %1802 = vmatpush.bf16.msra.mxu0 %v1779
    %1803 = vmatmul.bf16.gmra.mxu0 %v645
    %v1804 = vpop.f32.mrf.mxu0
    %v1805 = vadd.f32 %v1746, %v1804
    %v1806 = vpop.f32.mrf.mxu0
    %v1807 = vadd.f32 %v1746, %v1806
    %1808 = vmatmul.bf16.gmra.mxu0 %v646
    %v1809 = vpop.f32.mrf.mxu0
    %v1810 = vadd.f32 %v1746, %v1809
    %v1811 = vpop.f32.mrf.mxu0
    %v1812 = vadd.f32 %v1746, %v1811
    %1813 = vmatmul.bf16.gmra.mxu0 %v647
    %v1814 = vpop.f32.mrf.mxu0
    %v1815 = vadd.f32 %v1746, %v1814
    %v1816 = vpop.f32.mrf.mxu0
    %v1817 = vadd.f32 %v1746, %v1816
    %1818 = vmatmul.bf16.gmra.mxu0 %v648
    %v1819 = vpop.f32.mrf.mxu0
    %v1820 = vadd.f32 %v1746, %v1819
    %v1821 = vpop.f32.mrf.mxu0
    %v1822 = vadd.f32 %v1746, %v1821
    %1823 = vmatmul.bf16.gmra.mxu0 %v649
    %v1824 = vpop.f32.mrf.mxu0
    %v1825 = vadd.f32 %v1746, %v1824
    %v1826 = vpop.f32.mrf.mxu0
    %v1827 = vadd.f32 %v1746, %v1826
    %1828 = vmatmul.bf16.gmra.mxu0 %v650
    %v1829 = vpop.f32.mrf.mxu0
    %v1830 = vadd.f32 %v1746, %v1829
    %v1831 = vpop.f32.mrf.mxu0
    %v1832 = vadd.f32 %v1746, %v1831
    %1833 = vmatmul.bf16.gmra.mxu0 %v651
    %v1834 = vpop.f32.mrf.mxu0
    %v1835 = vadd.f32 %v1746, %v1834
    %v1836 = vpop.f32.mrf.mxu0
    %v1837 = vadd.f32 %v1746, %v1836
    %1838 = vmatmul.bf16.gmra.mxu0 %v652
    %v1839 = vpop.f32.mrf.mxu0
    %v1840 = vadd.f32 %v1746, %v1839
    %v1841 = vpop.f32.mrf.mxu0
    %v1842 = vadd.f32 %v1746, %v1841
    %1843 = vdwg.mxu0
    %v1844 = vadd.f32 %v1713, %v1805
    %v1845 = vadd.f32 %v1714, %v1807
    %v1846 = vadd.f32 %v1715, %v1810
    %v1847 = vadd.f32 %v1716, %v1812
    %v1848 = vadd.f32 %v1717, %v1815
    %v1849 = vadd.f32 %v1718, %v1817
    %v1850 = vadd.f32 %v1719, %v1820
    %v1851 = vadd.f32 %v1720, %v1822
    %v1852 = vadd.f32 %v1721, %v1825
    %v1853 = vadd.f32 %v1722, %v1827
    %v1854 = vadd.f32 %v1723, %v1830
    %v1855 = vadd.f32 %v1724, %v1832
    %v1856 = vadd.f32 %v1725, %v1835
    %v1857 = vadd.f32 %v1726, %v1837
    %v1858 = vadd.f32 %v1727, %v1840
    %v1859 = vadd.f32 %v1728, %v1842
    %v1860 = vmax.f32 %v1844, 0.0
    %v1861 = vmax.f32 %v1845, 0.0
    %v1862 = vmax.f32 %v1846, 0.0
    %v1863 = vmax.f32 %v1847, 0.0
    %v1864 = vmax.f32 %v1848, 0.0
    %v1865 = vmax.f32 %v1849, 0.0
    %v1866 = vmax.f32 %v1850, 0.0
    %v1867 = vmax.f32 %v1851, 0.0
    %v1868 = vmax.f32 %v1852, 0.0
    %v1869 = vmax.f32 %v1853, 0.0
    %v1870 = vmax.f32 %v1854, 0.0
    %v1871 = vmax.f32 %v1855, 0.0
    %v1872 = vmax.f32 %v1856, 0.0
    %v1873 = vmax.f32 %v1857, 0.0
    %v1874 = vmax.f32 %v1858, 0.0
    %v1875 = vmax.f32 %v1859, 0.0
    %v1876 = vpack.c.bf16 %v1861, %v1860
    %v1877 = vpack.c.bf16 %v1863, %v1862
    %v1878 = vpack.c.bf16 %v1865, %v1864
    %v1879 = vpack.c.bf16 %v1867, %v1866
    %v1880 = vpack.c.bf16 %v1869, %v1868
    %v1881 = vpack.c.bf16 %v1871, %v1870
    %v1882 = vpack.c.bf16 %v1873, %v1872
    %v1883 = vpack.c.bf16 %v1875, %v1874
    %v1884 = vld [vmem:[#allocation7 + $0x8] sm:$0xff]
    %v1885 = vld [vmem:[#allocation7 + $0x20] sm:$0xff]
    %v1886 = vld [vmem:[#allocation7 + $0x38] sm:$0xff]
    %v1887 = vld [vmem:[#allocation7 + $0x50] sm:$0xff]
    %v1888 = vld [vmem:[#allocation7 + $0x68] sm:$0xff]
    %v1889 = vld [vmem:[#allocation7 + $0x80] sm:$0xff]
    %v1890 = vld [vmem:[#allocation7 + $0x98] sm:$0xff]
    %v1891 = vld [vmem:[#allocation7 + $0xb0] sm:$0xff]
    %v1892 = vld [vmem:[#allocation7 + $0xc8] sm:$0xff]
    %v1893 = vld [vmem:[#allocation7 + $0xe0] sm:$0xff]
    %v1894 = vld [vmem:[#allocation7 + $0xf8] sm:$0xff]
    %v1895 = vld [vmem:[#allocation7 + $0x110] sm:$0xff]
    %v1896 = vld [vmem:[#allocation7 + $0x128] sm:$0xff]
    %v1897 = vld [vmem:[#allocation7 + $0x140] sm:$0xff]
    %v1898 = vld [vmem:[#allocation7 + $0x158] sm:$0xff]
    %v1899 = vld [vmem:[#allocation7 + $0x170] sm:$0xff]
    %v1916 = vunpack.c.l.b16 %v1884
    %v1917 = vunpack.c.h.b16 %v1884
    %v1918 = vunpack.c.l.b16 %v1885
    %v1919 = vunpack.c.h.b16 %v1885
    %v1920 = vunpack.c.l.b16 %v1886
    %v1921 = vunpack.c.h.b16 %v1886
    %v1922 = vunpack.c.l.b16 %v1887
    %v1923 = vunpack.c.h.b16 %v1887
    %v1924 = vunpack.c.l.b16 %v1888
    %v1925 = vunpack.c.h.b16 %v1888
    %v1926 = vunpack.c.l.b16 %v1889
    %v1927 = vunpack.c.h.b16 %v1889
    %v1928 = vunpack.c.l.b16 %v1890
    %v1929 = vunpack.c.h.b16 %v1890
    %v1930 = vunpack.c.l.b16 %v1891
    %v1931 = vunpack.c.h.b16 %v1891
    %v1932 = vunpack.c.l.b16 %v1892
    %v1933 = vunpack.c.h.b16 %v1892
    %v1934 = vunpack.c.l.b16 %v1893
    %v1935 = vunpack.c.h.b16 %v1893
    %v1936 = vunpack.c.l.b16 %v1894
    %v1937 = vunpack.c.h.b16 %v1894
    %v1938 = vunpack.c.l.b16 %v1895
    %v1939 = vunpack.c.h.b16 %v1895
    %v1940 = vunpack.c.l.b16 %v1896
    %v1941 = vunpack.c.h.b16 %v1896
    %v1942 = vunpack.c.l.b16 %v1897
    %v1943 = vunpack.c.h.b16 %v1897
    %v1944 = vunpack.c.l.b16 %v1898
    %v1945 = vunpack.c.h.b16 %v1898
    %v1946 = vunpack.c.l.b16 %v1899
    %v1947 = vunpack.c.h.b16 %v1899
    %v1948 = vpack.c.b16 %v1918, %v1916
    %v1949 = vpack.c.b16 %v1919, %v1917
    %v1950 = vpack.c.b16 %v1922, %v1920
    %v1951 = vpack.c.b16 %v1923, %v1921
    %v1952 = vpack.c.b16 %v1926, %v1924
    %v1953 = vpack.c.b16 %v1927, %v1925
    %v1954 = vpack.c.b16 %v1930, %v1928
    %v1955 = vpack.c.b16 %v1931, %v1929
    %v1956 = vpack.c.b16 %v1934, %v1932
    %v1957 = vpack.c.b16 %v1935, %v1933
    %v1958 = vpack.c.b16 %v1938, %v1936
    %v1959 = vpack.c.b16 %v1939, %v1937
    %v1960 = vpack.c.b16 %v1942, %v1940
    %v1961 = vpack.c.b16 %v1943, %v1941
    %v1962 = vpack.c.b16 %v1946, %v1944
    %v1963 = vpack.c.b16 %v1947, %v1945
    %1980 = vmatpush.bf16.msra.mxu0 %v1962
    %1981 = vmatpush.bf16.msra.mxu0 %v1960
    %1982 = vmatpush.bf16.msra.mxu0 %v1958
    %1983 = vmatpush.bf16.msra.mxu0 %v1956
    %1984 = vmatpush.bf16.msra.mxu0 %v1954
    %1985 = vmatpush.bf16.msra.mxu0 %v1952
    %1986 = vmatpush.bf16.msra.mxu0 %v1950
    %1987 = vmatpush.bf16.msra.mxu0 %v1948
    %1988 = vmatmul.bf16.gmra.mxu0 %v1876
    %v1989 = vpop.f32.mrf.mxu0
    %v1990 = vadd.f32 0.0, %v1989
    %v1991 = vpop.f32.mrf.mxu0
    %v1992 = vadd.f32 0.0, %v1991
    %1993 = vmatmul.bf16.gmra.mxu0 %v1877
    %v1994 = vpop.f32.mrf.mxu0
    %v1995 = vadd.f32 0.0, %v1994
    %v1996 = vpop.f32.mrf.mxu0
    %v1997 = vadd.f32 0.0, %v1996
    %1998 = vmatmul.bf16.gmra.mxu0 %v1878
    %v1999 = vpop.f32.mrf.mxu0
    %v2000 = vadd.f32 0.0, %v1999
    %v2001 = vpop.f32.mrf.mxu0
    %v2002 = vadd.f32 0.0, %v2001
    %2003 = vmatmul.bf16.gmra.mxu0 %v1879
    %v2004 = vpop.f32.mrf.mxu0
    %v2005 = vadd.f32 0.0, %v2004
    %v2006 = vpop.f32.mrf.mxu0
    %v2007 = vadd.f32 0.0, %v2006
    %2008 = vmatmul.bf16.gmra.mxu0 %v1880
    %v2009 = vpop.f32.mrf.mxu0
    %v2010 = vadd.f32 0.0, %v2009
    %v2011 = vpop.f32.mrf.mxu0
    %v2012 = vadd.f32 0.0, %v2011
    %2013 = vmatmul.bf16.gmra.mxu0 %v1881
    %v2014 = vpop.f32.mrf.mxu0
    %v2015 = vadd.f32 0.0, %v2014
    %v2016 = vpop.f32.mrf.mxu0
    %v2017 = vadd.f32 0.0, %v2016
    %2018 = vmatmul.bf16.gmra.mxu0 %v1882
    %v2019 = vpop.f32.mrf.mxu0
    %v2020 = vadd.f32 0.0, %v2019
    %v2021 = vpop.f32.mrf.mxu0
    %v2022 = vadd.f32 0.0, %v2021
    %2023 = vmatmul.bf16.gmra.mxu0 %v1883
    %v2024 = vpop.f32.mrf.mxu0
    %v2025 = vadd.f32 0.0, %v2024
    %v2026 = vpop.f32.mrf.mxu0
    %v2027 = vadd.f32 0.0, %v2026
    %2028 = vdwg.mxu0
    %2029 = vmatpush.bf16.msra.mxu0 %v1963
    %2030 = vmatpush.bf16.msra.mxu0 %v1961
    %2031 = vmatpush.bf16.msra.mxu0 %v1959
    %2032 = vmatpush.bf16.msra.mxu0 %v1957
    %2033 = vmatpush.bf16.msra.mxu0 %v1955
    %2034 = vmatpush.bf16.msra.mxu0 %v1953
    %2035 = vmatpush.bf16.msra.mxu0 %v1951
    %2036 = vmatpush.bf16.msra.mxu0 %v1949
    %2037 = vmatmul.bf16.gmra.mxu0 %v1876
    %v2038 = vpop.f32.mrf.mxu0
    %v2039 = vadd.f32 0.0, %v2038
    %v2040 = vpop.f32.mrf.mxu0
    %v2041 = vadd.f32 0.0, %v2040
    %2042 = vmatmul.bf16.gmra.mxu0 %v1877
    %v2043 = vpop.f32.mrf.mxu0
    %v2044 = vadd.f32 0.0, %v2043
    %v2045 = vpop.f32.mrf.mxu0
    %v2046 = vadd.f32 0.0, %v2045
    %2047 = vmatmul.bf16.gmra.mxu0 %v1878
    %v2048 = vpop.f32.mrf.mxu0
    %v2049 = vadd.f32 0.0, %v2048
    %v2050 = vpop.f32.mrf.mxu0
    %v2051 = vadd.f32 0.0, %v2050
    %2052 = vmatmul.bf16.gmra.mxu0 %v1879
    %v2053 = vpop.f32.mrf.mxu0
    %v2054 = vadd.f32 0.0, %v2053
    %v2055 = vpop.f32.mrf.mxu0
    %v2056 = vadd.f32 0.0, %v2055
    %2057 = vmatmul.bf16.gmra.mxu0 %v1880
    %v2058 = vpop.f32.mrf.mxu0
    %v2059 = vadd.f32 0.0, %v2058
    %v2060 = vpop.f32.mrf.mxu0
    %v2061 = vadd.f32 0.0, %v2060
    %2062 = vmatmul.bf16.gmra.mxu0 %v1881
    %v2063 = vpop.f32.mrf.mxu0
    %v2064 = vadd.f32 0.0, %v2063
    %v2065 = vpop.f32.mrf.mxu0
    %v2066 = vadd.f32 0.0, %v2065
    %2067 = vmatmul.bf16.gmra.mxu0 %v1882
    %v2068 = vpop.f32.mrf.mxu0
    %v2069 = vadd.f32 0.0, %v2068
    %v2070 = vpop.f32.mrf.mxu0
    %v2071 = vadd.f32 0.0, %v2070
    %2072 = vmatmul.bf16.gmra.mxu0 %v1883
    %v2073 = vpop.f32.mrf.mxu0
    %v2074 = vadd.f32 0.0, %v2073
    %v2075 = vpop.f32.mrf.mxu0
    %v2076 = vadd.f32 0.0, %v2075
    %2077 = vdwg.mxu0
    %v2078 = vpack.c.bf16 %v2039, %v1990
    %v2079 = vpack.c.bf16 %v2041, %v1992
    %v2080 = vpack.c.bf16 %v2044, %v1995
    %v2081 = vpack.c.bf16 %v2046, %v1997
    %v2082 = vpack.c.bf16 %v2049, %v2000
    %v2083 = vpack.c.bf16 %v2051, %v2002
    %v2084 = vpack.c.bf16 %v2054, %v2005
    %v2085 = vpack.c.bf16 %v2056, %v2007
    %v2086 = vpack.c.bf16 %v2059, %v2010
    %v2087 = vpack.c.bf16 %v2061, %v2012
    %v2088 = vpack.c.bf16 %v2064, %v2015
    %v2089 = vpack.c.bf16 %v2066, %v2017
    %v2090 = vpack.c.bf16 %v2069, %v2020
    %v2091 = vpack.c.bf16 %v2071, %v2022
    %v2092 = vpack.c.bf16 %v2074, %v2025
    %v2093 = vpack.c.bf16 %v2076, %v2027
    %v2110 = vunpack.c.l.b16 %v2078
    %v2111 = vunpack.c.h.b16 %v2078
    %v2112 = vunpack.c.l.b16 %v2079
    %v2113 = vunpack.c.h.b16 %v2079
    %v2114 = vunpack.c.l.b16 %v2080
    %v2115 = vunpack.c.h.b16 %v2080
    %v2116 = vunpack.c.l.b16 %v2081
    %v2117 = vunpack.c.h.b16 %v2081
    %v2118 = vunpack.c.l.b16 %v2082
    %v2119 = vunpack.c.h.b16 %v2082
    %v2120 = vunpack.c.l.b16 %v2083
    %v2121 = vunpack.c.h.b16 %v2083
    %v2122 = vunpack.c.l.b16 %v2084
    %v2123 = vunpack.c.h.b16 %v2084
    %v2124 = vunpack.c.l.b16 %v2085
    %v2125 = vunpack.c.h.b16 %v2085
    %v2126 = vunpack.c.l.b16 %v2086
    %v2127 = vunpack.c.h.b16 %v2086
    %v2128 = vunpack.c.l.b16 %v2087
    %v2129 = vunpack.c.h.b16 %v2087
    %v2130 = vunpack.c.l.b16 %v2088
    %v2131 = vunpack.c.h.b16 %v2088
    %v2132 = vunpack.c.l.b16 %v2089
    %v2133 = vunpack.c.h.b16 %v2089
    %v2134 = vunpack.c.l.b16 %v2090
    %v2135 = vunpack.c.h.b16 %v2090
    %v2136 = vunpack.c.l.b16 %v2091
    %v2137 = vunpack.c.h.b16 %v2091
    %v2138 = vunpack.c.l.b16 %v2092
    %v2139 = vunpack.c.h.b16 %v2092
    %v2140 = vunpack.c.l.b16 %v2093
    %v2141 = vunpack.c.h.b16 %v2093
    %v2142 = vpack.c.b16 %v2112, %v2110
    %v2143 = vpack.c.b16 %v2113, %v2111
    %v2144 = vpack.c.b16 %v2116, %v2114
    %v2145 = vpack.c.b16 %v2117, %v2115
    %v2146 = vpack.c.b16 %v2120, %v2118
    %v2147 = vpack.c.b16 %v2121, %v2119
    %v2148 = vpack.c.b16 %v2124, %v2122
    %v2149 = vpack.c.b16 %v2125, %v2123
    %v2150 = vpack.c.b16 %v2128, %v2126
    %v2151 = vpack.c.b16 %v2129, %v2127
    %v2152 = vpack.c.b16 %v2132, %v2130
    %v2153 = vpack.c.b16 %v2133, %v2131
    %v2154 = vpack.c.b16 %v2136, %v2134
    %v2155 = vpack.c.b16 %v2137, %v2135
    %v2156 = vpack.c.b16 %v2140, %v2138
    %v2157 = vpack.c.b16 %v2141, %v2139
    %v2174 = vunpack.c.h.b16 %v653
    %v2175 = vpack.c.b16 %v2174, %v2174
    %v2176 = vrot.slane %v833, 3
    %v2177 = vrot.slane %v2175, 3
    %2180 = vmatpush.bf16.xpose.msra.mxu0 0
    %2181 = vmatpush.bf16.xpose.msra.mxu0 0
    %2182 = vmatpush.bf16.xpose.msra.mxu0 0
    %2183 = vmatpush.bf16.xpose.msra.mxu0 0
    %2184 = vmatpush.bf16.xpose.msra.mxu0 0
    %2185 = vmatpush.bf16.xpose.msra.mxu0 0
    %2186 = vmatpush.bf16.xpose.msra.mxu0 0
    %2187 = vmatpush.bf16.xpose.msra.mxu0 %v2176
    %2188 = vmatmul.bf16.gmra.mxu0 %v2142
    %v2189 = vpop.f32.mrf.mxu0
    %v2190 = vadd.f32 0.0, %v2189
    %v2191 = vpop.f32.mrf.mxu0
    %v2192 = vadd.f32 0.0, %v2191
    %2193 = vmatmul.bf16.gmra.mxu0 %v2144
    %v2194 = vpop.f32.mrf.mxu0
    %v2195 = vadd.f32 0.0, %v2194
    %v2196 = vpop.f32.mrf.mxu0
    %v2197 = vadd.f32 0.0, %v2196
    %2198 = vmatmul.bf16.gmra.mxu0 %v2146
    %v2199 = vpop.f32.mrf.mxu0
    %v2200 = vadd.f32 0.0, %v2199
    %v2201 = vpop.f32.mrf.mxu0
    %v2202 = vadd.f32 0.0, %v2201
    %2203 = vmatmul.bf16.gmra.mxu0 %v2148
    %v2204 = vpop.f32.mrf.mxu0
    %v2205 = vadd.f32 0.0, %v2204
    %v2206 = vpop.f32.mrf.mxu0
    %v2207 = vadd.f32 0.0, %v2206
    %2208 = vmatmul.bf16.gmra.mxu0 %v2150
    %v2209 = vpop.f32.mrf.mxu0
    %v2210 = vadd.f32 0.0, %v2209
    %v2211 = vpop.f32.mrf.mxu0
    %v2212 = vadd.f32 0.0, %v2211
    %2213 = vmatmul.bf16.gmra.mxu0 %v2152
    %v2214 = vpop.f32.mrf.mxu0
    %v2215 = vadd.f32 0.0, %v2214
    %v2216 = vpop.f32.mrf.mxu0
    %v2217 = vadd.f32 0.0, %v2216
    %2218 = vmatmul.bf16.gmra.mxu0 %v2154
    %v2219 = vpop.f32.mrf.mxu0
    %v2220 = vadd.f32 0.0, %v2219
    %v2221 = vpop.f32.mrf.mxu0
    %v2222 = vadd.f32 0.0, %v2221
    %2223 = vmatmul.bf16.gmra.mxu0 %v2156
    %v2224 = vpop.f32.mrf.mxu0
    %v2225 = vadd.f32 0.0, %v2224
    %v2226 = vpop.f32.mrf.mxu0
    %v2227 = vadd.f32 0.0, %v2226
    %2228 = vdwg.mxu0
    %2229 = vmatpush.bf16.xpose.msra.mxu0 0
    %2230 = vmatpush.bf16.xpose.msra.mxu0 0
    %2231 = vmatpush.bf16.xpose.msra.mxu0 0
    %2232 = vmatpush.bf16.xpose.msra.mxu0 0
    %2233 = vmatpush.bf16.xpose.msra.mxu0 0
    %2234 = vmatpush.bf16.xpose.msra.mxu0 0
    %2235 = vmatpush.bf16.xpose.msra.mxu0 0
    %2236 = vmatpush.bf16.xpose.msra.mxu0 %v2177
    %2237 = vmatmul.bf16.gmra.mxu0 %v2143
    %v2238 = vpop.f32.mrf.mxu0
    %v2239 = vadd.f32 %v2190, %v2238
    %v2240 = vpop.f32.mrf.mxu0
    %v2241 = vadd.f32 %v2192, %v2240
    %2242 = vmatmul.bf16.gmra.mxu0 %v2145
    %v2243 = vpop.f32.mrf.mxu0
    %v2244 = vadd.f32 %v2195, %v2243
    %v2245 = vpop.f32.mrf.mxu0
    %v2246 = vadd.f32 %v2197, %v2245
    %2247 = vmatmul.bf16.gmra.mxu0 %v2147
    %v2248 = vpop.f32.mrf.mxu0
    %v2249 = vadd.f32 %v2200, %v2248
    %v2250 = vpop.f32.mrf.mxu0
    %v2251 = vadd.f32 %v2202, %v2250
    %2252 = vmatmul.bf16.gmra.mxu0 %v2149
    %v2253 = vpop.f32.mrf.mxu0
    %v2254 = vadd.f32 %v2205, %v2253
    %v2255 = vpop.f32.mrf.mxu0
    %v2256 = vadd.f32 %v2207, %v2255
    %2257 = vmatmul.bf16.gmra.mxu0 %v2151
    %v2258 = vpop.f32.mrf.mxu0
    %v2259 = vadd.f32 %v2210, %v2258
    %v2260 = vpop.f32.mrf.mxu0
    %v2261 = vadd.f32 %v2212, %v2260
    %2262 = vmatmul.bf16.gmra.mxu0 %v2153
    %v2263 = vpop.f32.mrf.mxu0
    %v2264 = vadd.f32 %v2215, %v2263
    %v2265 = vpop.f32.mrf.mxu0
    %v2266 = vadd.f32 %v2217, %v2265
    %2267 = vmatmul.bf16.gmra.mxu0 %v2155
    %v2268 = vpop.f32.mrf.mxu0
    %v2269 = vadd.f32 %v2220, %v2268
    %v2270 = vpop.f32.mrf.mxu0
    %v2271 = vadd.f32 %v2222, %v2270
    %2272 = vmatmul.bf16.gmra.mxu0 %v2157
    %v2273 = vpop.f32.mrf.mxu0
    %v2274 = vadd.f32 %v2225, %v2273
    %v2275 = vpop.f32.mrf.mxu0
    %v2276 = vadd.f32 %v2227, %v2275
    %2277 = vdwg.mxu0
    %v2278 = vrot.slane %v833, 2
    %v2279 = vrot.slane %v2175, 2
    %2282 = vmatpush.bf16.xpose.msra.mxu0 %v2156
    %2283 = vmatpush.bf16.xpose.msra.mxu0 %v2154
    %2284 = vmatpush.bf16.xpose.msra.mxu0 %v2152
    %2285 = vmatpush.bf16.xpose.msra.mxu0 %v2150
    %2286 = vmatpush.bf16.xpose.msra.mxu0 %v2148
    %2287 = vmatpush.bf16.xpose.msra.mxu0 %v2146
    %2288 = vmatpush.bf16.xpose.msra.mxu0 %v2144
    %2289 = vmatpush.bf16.xpose.msra.mxu0 %v2142
    %2290 = vmatmul.bf16.gmra.mxu0 %v2278
    %v2291 = vpop.f32.mrf.mxu0
    %v2292 = vadd.f32 0.0, %v2291
    %v2293 = vpop.f32.mrf.mxu0
    %2294 = vdwg.mxu0
    %2295 = vmatpush.bf16.xpose.msra.mxu0 %v2157
    %2296 = vmatpush.bf16.xpose.msra.mxu0 %v2155
    %2297 = vmatpush.bf16.xpose.msra.mxu0 %v2153
    %2298 = vmatpush.bf16.xpose.msra.mxu0 %v2151
    %2299 = vmatpush.bf16.xpose.msra.mxu0 %v2149
    %2300 = vmatpush.bf16.xpose.msra.mxu0 %v2147
    %2301 = vmatpush.bf16.xpose.msra.mxu0 %v2145
    %2302 = vmatpush.bf16.xpose.msra.mxu0 %v2143
    %2303 = vmatmul.bf16.gmra.mxu0 %v2279
    %v2304 = vpop.f32.mrf.mxu0
    %v2305 = vadd.f32 %v2292, %v2304
    %v2306 = vpop.f32.mrf.mxu0
    %2307 = vdwg.mxu0
    %2309 = vset.pattern.permute.xlu0 0
    %2310 = vperm.xlu0 %2309, %v2239
    %v2311 = vpop.permute.xlu0 %2310
    %2314 = vset.pattern.permute.xlu0 0
    %2315 = vperm.xlu0 %2314, %v2241
    %v2316 = vpop.permute.xlu0 %2315
    %2319 = vset.pattern.permute.xlu0 0
    %2320 = vperm.xlu0 %2319, %v2244
    %v2321 = vpop.permute.xlu0 %2320
    %2324 = vset.pattern.permute.xlu0 0
    %2325 = vperm.xlu0 %2324, %v2246
    %v2326 = vpop.permute.xlu0 %2325
    %2329 = vset.pattern.permute.xlu0 0
    %2330 = vperm.xlu0 %2329, %v2249
    %v2331 = vpop.permute.xlu0 %2330
    %2334 = vset.pattern.permute.xlu0 0
    %2335 = vperm.xlu0 %2334, %v2251
    %v2336 = vpop.permute.xlu0 %2335
    %2339 = vset.pattern.permute.xlu0 0
    %2340 = vperm.xlu0 %2339, %v2254
    %v2341 = vpop.permute.xlu0 %2340
    %2344 = vset.pattern.permute.xlu0 0
    %2345 = vperm.xlu0 %2344, %v2256
    %v2346 = vpop.permute.xlu0 %2345
    %2349 = vset.pattern.permute.xlu0 0
    %2350 = vperm.xlu0 %2349, %v2259
    %v2351 = vpop.permute.xlu0 %2350
    %2354 = vset.pattern.permute.xlu0 0
    %2355 = vperm.xlu0 %2354, %v2261
    %v2356 = vpop.permute.xlu0 %2355
    %2359 = vset.pattern.permute.xlu0 0
    %2360 = vperm.xlu0 %2359, %v2264
    %v2361 = vpop.permute.xlu0 %2360
    %2364 = vset.pattern.permute.xlu0 0
    %2365 = vperm.xlu0 %2364, %v2266
    %v2366 = vpop.permute.xlu0 %2365
    %2369 = vset.pattern.permute.xlu0 0
    %2370 = vperm.xlu0 %2369, %v2269
    %v2371 = vpop.permute.xlu0 %2370
    %2374 = vset.pattern.permute.xlu0 0
    %2375 = vperm.xlu0 %2374, %v2271
    %v2376 = vpop.permute.xlu0 %2375
    %2379 = vset.pattern.permute.xlu0 0
    %2380 = vperm.xlu0 %2379, %v2274
    %v2381 = vpop.permute.xlu0 %2380
    %2384 = vset.pattern.permute.xlu0 0
    %2385 = vperm.xlu0 %2384, %v2276
    %v2386 = vpop.permute.xlu0 %2385
    %v2388 = vperm.slane %v2305, 0
    %v2389 = vadd.f32 %v2311, %v2388
    %v2390 = vadd.f32 %v2316, %v2388
    %v2391 = vadd.f32 %v2321, %v2388
    %v2392 = vadd.f32 %v2326, %v2388
    %v2393 = vadd.f32 %v2331, %v2388
    %v2394 = vadd.f32 %v2336, %v2388
    %v2395 = vadd.f32 %v2341, %v2388
    %v2396 = vadd.f32 %v2346, %v2388
    %v2397 = vadd.f32 %v2351, %v2388
    %v2398 = vadd.f32 %v2356, %v2388
    %v2399 = vadd.f32 %v2361, %v2388
    %v2400 = vadd.f32 %v2366, %v2388
    %v2401 = vadd.f32 %v2371, %v2388
    %v2402 = vadd.f32 %v2376, %v2388
    %v2403 = vadd.f32 %v2381, %v2388
    %v2404 = vadd.f32 %v2386, %v2388
    %vm2405 = vcmp.gt.f32.partialorder %v2389, 0.0
    %vm2406 = vcmp.gt.f32.partialorder %v2390, 0.0
    %vm2407 = vcmp.gt.f32.partialorder %v2391, 0.0
    %vm2408 = vcmp.gt.f32.partialorder %v2392, 0.0
    %vm2409 = vcmp.gt.f32.partialorder %v2393, 0.0
    %vm2410 = vcmp.gt.f32.partialorder %v2394, 0.0
    %vm2411 = vcmp.gt.f32.partialorder %v2395, 0.0
    %vm2412 = vcmp.gt.f32.partialorder %v2396, 0.0
    %vm2413 = vcmp.gt.f32.partialorder %v2397, 0.0
    %vm2414 = vcmp.gt.f32.partialorder %v2398, 0.0
    %vm2415 = vcmp.gt.f32.partialorder %v2399, 0.0
    %vm2416 = vcmp.gt.f32.partialorder %v2400, 0.0
    %vm2417 = vcmp.gt.f32.partialorder %v2401, 0.0
    %vm2418 = vcmp.gt.f32.partialorder %v2402, 0.0
    %vm2419 = vcmp.gt.f32.partialorder %v2403, 0.0
    %vm2420 = vcmp.gt.f32.partialorder %v2404, 0.0
    %v2421 = vmul.f32 %v2389, 0.2
    %v2422 = vmul.f32 %v2390, 0.2
    %v2423 = vmul.f32 %v2391, 0.2
    %v2424 = vmul.f32 %v2392, 0.2
    %v2425 = vmul.f32 %v2393, 0.2
    %v2426 = vmul.f32 %v2394, 0.2
    %v2427 = vmul.f32 %v2395, 0.2
    %v2428 = vmul.f32 %v2396, 0.2
    %v2429 = vmul.f32 %v2397, 0.2
    %v2430 = vmul.f32 %v2398, 0.2
    %v2431 = vmul.f32 %v2399, 0.2
    %v2432 = vmul.f32 %v2400, 0.2
    %v2433 = vmul.f32 %v2401, 0.2
    %v2434 = vmul.f32 %v2402, 0.2
    %v2435 = vmul.f32 %v2403, 0.2
    %v2436 = vmul.f32 %v2404, 0.2
    %v2437 = vsel %vm2405, %v2389, %v2421
    %v2438 = vsel %vm2406, %v2390, %v2422
    %v2439 = vsel %vm2407, %v2391, %v2423
    %v2440 = vsel %vm2408, %v2392, %v2424
    %v2441 = vsel %vm2409, %v2393, %v2425
    %v2442 = vsel %vm2410, %v2394, %v2426
    %v2443 = vsel %vm2411, %v2395, %v2427
    %v2444 = vsel %vm2412, %v2396, %v2428
    %v2445 = vsel %vm2413, %v2397, %v2429
    %v2446 = vsel %vm2414, %v2398, %v2430
    %v2447 = vsel %vm2415, %v2399, %v2431
    %v2448 = vsel %vm2416, %v2400, %v2432
    %v2449 = vsel %vm2417, %v2401, %v2433
    %v2450 = vsel %vm2418, %v2402, %v2434
    %v2451 = vsel %vm2419, %v2403, %v2435
    %v2452 = vsel %vm2420, %v2404, %v2436
    %v2453 = vadd.f32 %v2437, %v118
    %v2454 = vadd.f32 %v2438, %v119
    %v2455 = vadd.f32 %v2439, %v120
    %v2456 = vadd.f32 %v2440, %v121
    %v2457 = vadd.f32 %v2441, %v122
    %v2458 = vadd.f32 %v2442, %v123
    %v2459 = vadd.f32 %v2443, %v124
    %v2460 = vadd.f32 %v2444, %v125
    %v2461 = vadd.f32 %v2445, %v126
    %v2462 = vadd.f32 %v2446, %v127
    %v2463 = vadd.f32 %v2447, %v128
    %v2464 = vadd.f32 %v2448, %v129
    %v2465 = vadd.f32 %v2449, %v130
    %v2466 = vadd.f32 %v2450, %v131
    %v2467 = vadd.f32 %v2451, %v132
    %v2468 = vadd.f32 %v2452, %v133
    %2469 = vmax.xlane.f32.xlu0 %v2453
    %v2470 = vpop.xlane.xlu0 %2469
    %2471 = vmax.xlane.f32.xlu0 %v2454
    %v2472 = vpop.xlane.xlu0 %2471
    %2473 = vmax.xlane.f32.xlu0 %v2455
    %v2474 = vpop.xlane.xlu0 %2473
    %2475 = vmax.xlane.f32.xlu0 %v2456
    %v2476 = vpop.xlane.xlu0 %2475
    %2477 = vmax.xlane.f32.xlu0 %v2457
    %v2478 = vpop.xlane.xlu0 %2477
    %2479 = vmax.xlane.f32.xlu0 %v2458
    %v2480 = vpop.xlane.xlu0 %2479
    %2481 = vmax.xlane.f32.xlu0 %v2459
    %v2482 = vpop.xlane.xlu0 %2481
    %2483 = vmax.xlane.f32.xlu0 %v2460
    %v2484 = vpop.xlane.xlu0 %2483
    %2485 = vmax.xlane.f32.xlu0 %v2461
    %v2486 = vpop.xlane.xlu0 %2485
    %2487 = vmax.xlane.f32.xlu0 %v2462
    %v2488 = vpop.xlane.xlu0 %2487
    %2489 = vmax.xlane.f32.xlu0 %v2463
    %v2490 = vpop.xlane.xlu0 %2489
    %2491 = vmax.xlane.f32.xlu0 %v2464
    %v2492 = vpop.xlane.xlu0 %2491
    %2493 = vmax.xlane.f32.xlu0 %v2465
    %v2494 = vpop.xlane.xlu0 %2493
    %2495 = vmax.xlane.f32.xlu0 %v2466
    %v2496 = vpop.xlane.xlu0 %2495
    %2497 = vmax.xlane.f32.xlu0 %v2467
    %v2498 = vpop.xlane.xlu0 %2497
    %2499 = vmax.xlane.f32.xlu0 %v2468
    %v2500 = vpop.xlane.xlu0 %2499
    %v2501 = vsub.f32 %v2453, %v2470
    %v2502 = vsub.f32 %v2454, %v2472
    %v2503 = vsub.f32 %v2455, %v2474
    %v2504 = vsub.f32 %v2456, %v2476
    %v2505 = vsub.f32 %v2457, %v2478
    %v2506 = vsub.f32 %v2458, %v2480
    %v2507 = vsub.f32 %v2459, %v2482
    %v2508 = vsub.f32 %v2460, %v2484
    %v2509 = vsub.f32 %v2461, %v2486
    %v2510 = vsub.f32 %v2462, %v2488
    %v2511 = vsub.f32 %v2463, %v2490
    %v2512 = vsub.f32 %v2464, %v2492
    %v2513 = vsub.f32 %v2465, %v2494
    %v2514 = vsub.f32 %v2466, %v2496
    %v2515 = vsub.f32 %v2467, %v2498
    %v2516 = vsub.f32 %v2468, %v2500
    %v2517 = vmul.f32 %v2501, 1.442695
    %v2518 = vpow.pop %v2517
    %v2519 = vmul.f32 %v2502, 1.442695
    %v2520 = vpow.pop %v2519
    %v2521 = vmul.f32 %v2503, 1.442695
    %v2522 = vpow.pop %v2521
    %v2523 = vmul.f32 %v2504, 1.442695
    %v2524 = vpow.pop %v2523
    %v2525 = vmul.f32 %v2505, 1.442695
    %v2526 = vpow.pop %v2525
    %v2527 = vmul.f32 %v2506, 1.442695
    %v2528 = vpow.pop %v2527
    %v2529 = vmul.f32 %v2507, 1.442695
    %v2530 = vpow.pop %v2529
    %v2531 = vmul.f32 %v2508, 1.442695
    %v2532 = vpow.pop %v2531
    %v2533 = vmul.f32 %v2509, 1.442695
    %v2534 = vpow.pop %v2533
    %v2535 = vmul.f32 %v2510, 1.442695
    %v2536 = vpow.pop %v2535
    %v2537 = vmul.f32 %v2511, 1.442695
    %v2538 = vpow.pop %v2537
    %v2539 = vmul.f32 %v2512, 1.442695
    %v2540 = vpow.pop %v2539
    %v2541 = vmul.f32 %v2513, 1.442695
    %v2542 = vpow.pop %v2541
    %v2543 = vmul.f32 %v2514, 1.442695
    %v2544 = vpow.pop %v2543
    %v2545 = vmul.f32 %v2515, 1.442695
    %v2546 = vpow.pop %v2545
    %v2547 = vmul.f32 %v2516, 1.442695
    %v2548 = vpow.pop %v2547
    %2549 = vadd.xlane.f32.xlu0 %v2518
    %v2550 = vpop.xlane.xlu0 %2549
    %2551 = vadd.xlane.f32.xlu0 %v2520
    %v2552 = vpop.xlane.xlu0 %2551
    %2553 = vadd.xlane.f32.xlu0 %v2522
    %v2554 = vpop.xlane.xlu0 %2553
    %2555 = vadd.xlane.f32.xlu0 %v2524
    %v2556 = vpop.xlane.xlu0 %2555
    %2557 = vadd.xlane.f32.xlu0 %v2526
    %v2558 = vpop.xlane.xlu0 %2557
    %2559 = vadd.xlane.f32.xlu0 %v2528
    %v2560 = vpop.xlane.xlu0 %2559
    %2561 = vadd.xlane.f32.xlu0 %v2530
    %v2562 = vpop.xlane.xlu0 %2561
    %2563 = vadd.xlane.f32.xlu0 %v2532
    %v2564 = vpop.xlane.xlu0 %2563
    %2565 = vadd.xlane.f32.xlu0 %v2534
    %v2566 = vpop.xlane.xlu0 %2565
    %2567 = vadd.xlane.f32.xlu0 %v2536
    %v2568 = vpop.xlane.xlu0 %2567
    %2569 = vadd.xlane.f32.xlu0 %v2538
    %v2570 = vpop.xlane.xlu0 %2569
    %2571 = vadd.xlane.f32.xlu0 %v2540
    %v2572 = vpop.xlane.xlu0 %2571
    %2573 = vadd.xlane.f32.xlu0 %v2542
    %v2574 = vpop.xlane.xlu0 %2573
    %2575 = vadd.xlane.f32.xlu0 %v2544
    %v2576 = vpop.xlane.xlu0 %2575
    %2577 = vadd.xlane.f32.xlu0 %v2546
    %v2578 = vpop.xlane.xlu0 %2577
    %2579 = vadd.xlane.f32.xlu0 %v2548
    %v2580 = vpop.xlane.xlu0 %2579
    %v2581 = vrcp.pop %v2550
    %v2582 = vrcp.pop %v2552
    %v2583 = vrcp.pop %v2554
    %v2584 = vrcp.pop %v2556
    %v2585 = vrcp.pop %v2558
    %v2586 = vrcp.pop %v2560
    %v2587 = vrcp.pop %v2562
    %v2588 = vrcp.pop %v2564
    %v2589 = vrcp.pop %v2566
    %v2590 = vrcp.pop %v2568
    %v2591 = vrcp.pop %v2570
    %v2592 = vrcp.pop %v2572
    %v2593 = vrcp.pop %v2574
    %v2594 = vrcp.pop %v2576
    %v2595 = vrcp.pop %v2578
    %v2596 = vrcp.pop %v2580
    %v2597 = vmul.f32 %v2518, %v2581
    %v2598 = vmul.f32 %v2520, %v2582
    %v2599 = vmul.f32 %v2522, %v2583
    %v2600 = vmul.f32 %v2524, %v2584
    %v2601 = vmul.f32 %v2526, %v2585
    %v2602 = vmul.f32 %v2528, %v2586
    %v2603 = vmul.f32 %v2530, %v2587
    %v2604 = vmul.f32 %v2532, %v2588
    %v2605 = vmul.f32 %v2534, %v2589
    %v2606 = vmul.f32 %v2536, %v2590
    %v2607 = vmul.f32 %v2538, %v2591
    %v2608 = vmul.f32 %v2540, %v2592
    %v2609 = vmul.f32 %v2542, %v2593
    %v2610 = vmul.f32 %v2544, %v2594
    %v2611 = vmul.f32 %v2546, %v2595
    %v2612 = vmul.f32 %v2548, %v2596
    %v2613 = vpack.c.bf16 %v2597, %v2597
    %v2614 = vpack.c.bf16 %v2598, %v2598
    %v2615 = vpack.c.bf16 %v2599, %v2599
    %v2616 = vpack.c.bf16 %v2600, %v2600
    %v2617 = vpack.c.bf16 %v2601, %v2601
    %v2618 = vpack.c.bf16 %v2602, %v2602
    %v2619 = vpack.c.bf16 %v2603, %v2603
    %v2620 = vpack.c.bf16 %v2604, %v2604
    %v2621 = vpack.c.bf16 %v2605, %v2605
    %v2622 = vpack.c.bf16 %v2606, %v2606
    %v2623 = vpack.c.bf16 %v2607, %v2607
    %v2624 = vpack.c.bf16 %v2608, %v2608
    %v2625 = vpack.c.bf16 %v2609, %v2609
    %v2626 = vpack.c.bf16 %v2610, %v2610
    %v2627 = vpack.c.bf16 %v2611, %v2611
    %v2628 = vpack.c.bf16 %v2612, %v2612
    %2629 = vset.pattern.permute.xlu0 1
    %2630 = vperm.xlu0 %2629, %v2239
    %v2631 = vpop.permute.xlu0 %2630
    %2633 = vset.pattern.permute.xlu0 1
    %2634 = vperm.xlu0 %2633, %v2241
    %v2635 = vpop.permute.xlu0 %2634
    %2637 = vset.pattern.permute.xlu0 1
    %2638 = vperm.xlu0 %2637, %v2244
    %v2639 = vpop.permute.xlu0 %2638
    %2641 = vset.pattern.permute.xlu0 1
    %2642 = vperm.xlu0 %2641, %v2246
    %v2643 = vpop.permute.xlu0 %2642
    %2645 = vset.pattern.permute.xlu0 1
    %2646 = vperm.xlu0 %2645, %v2249
    %v2647 = vpop.permute.xlu0 %2646
    %2649 = vset.pattern.permute.xlu0 1
    %2650 = vperm.xlu0 %2649, %v2251
    %v2651 = vpop.permute.xlu0 %2650
    %2653 = vset.pattern.permute.xlu0 1
    %2654 = vperm.xlu0 %2653, %v2254
    %v2655 = vpop.permute.xlu0 %2654
    %2657 = vset.pattern.permute.xlu0 1
    %2658 = vperm.xlu0 %2657, %v2256
    %v2659 = vpop.permute.xlu0 %2658
    %2661 = vset.pattern.permute.xlu0 1
    %2662 = vperm.xlu0 %2661, %v2259
    %v2663 = vpop.permute.xlu0 %2662
    %2665 = vset.pattern.permute.xlu0 1
    %2666 = vperm.xlu0 %2665, %v2261
    %v2667 = vpop.permute.xlu0 %2666
    %2669 = vset.pattern.permute.xlu0 1
    %2670 = vperm.xlu0 %2669, %v2264
    %v2671 = vpop.permute.xlu0 %2670
    %2673 = vset.pattern.permute.xlu0 1
    %2674 = vperm.xlu0 %2673, %v2266
    %v2675 = vpop.permute.xlu0 %2674
    %2677 = vset.pattern.permute.xlu0 1
    %2678 = vperm.xlu0 %2677, %v2269
    %v2679 = vpop.permute.xlu0 %2678
    %2681 = vset.pattern.permute.xlu0 1
    %2682 = vperm.xlu0 %2681, %v2271
    %v2683 = vpop.permute.xlu0 %2682
    %2685 = vset.pattern.permute.xlu0 1
    %2686 = vperm.xlu0 %2685, %v2274
    %v2687 = vpop.permute.xlu0 %2686
    %2689 = vset.pattern.permute.xlu0 1
    %2690 = vperm.xlu0 %2689, %v2276
    %v2691 = vpop.permute.xlu0 %2690
    %v2693 = vperm.slane %v2305, 1
    %v2694 = vadd.f32 %v2631, %v2693
    %v2695 = vadd.f32 %v2635, %v2693
    %v2696 = vadd.f32 %v2639, %v2693
    %v2697 = vadd.f32 %v2643, %v2693
    %v2698 = vadd.f32 %v2647, %v2693
    %v2699 = vadd.f32 %v2651, %v2693
    %v2700 = vadd.f32 %v2655, %v2693
    %v2701 = vadd.f32 %v2659, %v2693
    %v2702 = vadd.f32 %v2663, %v2693
    %v2703 = vadd.f32 %v2667, %v2693
    %v2704 = vadd.f32 %v2671, %v2693
    %v2705 = vadd.f32 %v2675, %v2693
    %v2706 = vadd.f32 %v2679, %v2693
    %v2707 = vadd.f32 %v2683, %v2693
    %v2708 = vadd.f32 %v2687, %v2693
    %v2709 = vadd.f32 %v2691, %v2693
    %vm2710 = vcmp.gt.f32.partialorder %v2694, 0.0
    %vm2711 = vcmp.gt.f32.partialorder %v2695, 0.0
    %vm2712 = vcmp.gt.f32.partialorder %v2696, 0.0
    %vm2713 = vcmp.gt.f32.partialorder %v2697, 0.0
    %vm2714 = vcmp.gt.f32.partialorder %v2698, 0.0
    %vm2715 = vcmp.gt.f32.partialorder %v2699, 0.0
    %vm2716 = vcmp.gt.f32.partialorder %v2700, 0.0
    %vm2717 = vcmp.gt.f32.partialorder %v2701, 0.0
    %vm2718 = vcmp.gt.f32.partialorder %v2702, 0.0
    %vm2719 = vcmp.gt.f32.partialorder %v2703, 0.0
    %vm2720 = vcmp.gt.f32.partialorder %v2704, 0.0
    %vm2721 = vcmp.gt.f32.partialorder %v2705, 0.0
    %vm2722 = vcmp.gt.f32.partialorder %v2706, 0.0
    %vm2723 = vcmp.gt.f32.partialorder %v2707, 0.0
    %vm2724 = vcmp.gt.f32.partialorder %v2708, 0.0
    %vm2725 = vcmp.gt.f32.partialorder %v2709, 0.0
    %v2726 = vmul.f32 %v2694, 0.2
    %v2727 = vmul.f32 %v2695, 0.2
    %v2728 = vmul.f32 %v2696, 0.2
    %v2729 = vmul.f32 %v2697, 0.2
    %v2730 = vmul.f32 %v2698, 0.2
    %v2731 = vmul.f32 %v2699, 0.2
    %v2732 = vmul.f32 %v2700, 0.2
    %v2733 = vmul.f32 %v2701, 0.2
    %v2734 = vmul.f32 %v2702, 0.2
    %v2735 = vmul.f32 %v2703, 0.2
    %v2736 = vmul.f32 %v2704, 0.2
    %v2737 = vmul.f32 %v2705, 0.2
    %v2738 = vmul.f32 %v2706, 0.2
    %v2739 = vmul.f32 %v2707, 0.2
    %v2740 = vmul.f32 %v2708, 0.2
    %v2741 = vmul.f32 %v2709, 0.2
    %v2742 = vsel %vm2710, %v2694, %v2726
    %v2743 = vsel %vm2711, %v2695, %v2727
    %v2744 = vsel %vm2712, %v2696, %v2728
    %v2745 = vsel %vm2713, %v2697, %v2729
    %v2746 = vsel %vm2714, %v2698, %v2730
    %v2747 = vsel %vm2715, %v2699, %v2731
    %v2748 = vsel %vm2716, %v2700, %v2732
    %v2749 = vsel %vm2717, %v2701, %v2733
    %v2750 = vsel %vm2718, %v2702, %v2734
    %v2751 = vsel %vm2719, %v2703, %v2735
    %v2752 = vsel %vm2720, %v2704, %v2736
    %v2753 = vsel %vm2721, %v2705, %v2737
    %v2754 = vsel %vm2722, %v2706, %v2738
    %v2755 = vsel %vm2723, %v2707, %v2739
    %v2756 = vsel %vm2724, %v2708, %v2740
    %v2757 = vsel %vm2725, %v2709, %v2741
    %v2758 = vadd.f32 %v2742, %v118
    %v2759 = vadd.f32 %v2743, %v119
    %v2760 = vadd.f32 %v2744, %v120
    %v2761 = vadd.f32 %v2745, %v121
    %v2762 = vadd.f32 %v2746, %v122
    %v2763 = vadd.f32 %v2747, %v123
    %v2764 = vadd.f32 %v2748, %v124
    %v2765 = vadd.f32 %v2749, %v125
    %v2766 = vadd.f32 %v2750, %v126
    %v2767 = vadd.f32 %v2751, %v127
    %v2768 = vadd.f32 %v2752, %v128
    %v2769 = vadd.f32 %v2753, %v129
    %v2770 = vadd.f32 %v2754, %v130
    %v2771 = vadd.f32 %v2755, %v131
    %v2772 = vadd.f32 %v2756, %v132
    %v2773 = vadd.f32 %v2757, %v133
    %2774 = vmax.xlane.f32.xlu0 %v2758
    %v2775 = vpop.xlane.xlu0 %2774
    %2776 = vmax.xlane.f32.xlu0 %v2759
    %v2777 = vpop.xlane.xlu0 %2776
    %2778 = vmax.xlane.f32.xlu0 %v2760
    %v2779 = vpop.xlane.xlu0 %2778
    %2780 = vmax.xlane.f32.xlu0 %v2761
    %v2781 = vpop.xlane.xlu0 %2780
    %2782 = vmax.xlane.f32.xlu0 %v2762
    %v2783 = vpop.xlane.xlu0 %2782
    %2784 = vmax.xlane.f32.xlu0 %v2763
    %v2785 = vpop.xlane.xlu0 %2784
    %2786 = vmax.xlane.f32.xlu0 %v2764
    %v2787 = vpop.xlane.xlu0 %2786
    %2788 = vmax.xlane.f32.xlu0 %v2765
    %v2789 = vpop.xlane.xlu0 %2788
    %2790 = vmax.xlane.f32.xlu0 %v2766
    %v2791 = vpop.xlane.xlu0 %2790
    %2792 = vmax.xlane.f32.xlu0 %v2767
    %v2793 = vpop.xlane.xlu0 %2792
    %2794 = vmax.xlane.f32.xlu0 %v2768
    %v2795 = vpop.xlane.xlu0 %2794
    %2796 = vmax.xlane.f32.xlu0 %v2769
    %v2797 = vpop.xlane.xlu0 %2796
    %2798 = vmax.xlane.f32.xlu0 %v2770
    %v2799 = vpop.xlane.xlu0 %2798
    %2800 = vmax.xlane.f32.xlu0 %v2771
    %v2801 = vpop.xlane.xlu0 %2800
    %2802 = vmax.xlane.f32.xlu0 %v2772
    %v2803 = vpop.xlane.xlu0 %2802
    %2804 = vmax.xlane.f32.xlu0 %v2773
    %v2805 = vpop.xlane.xlu0 %2804
    %v2806 = vsub.f32 %v2758, %v2775
    %v2807 = vsub.f32 %v2759, %v2777
    %v2808 = vsub.f32 %v2760, %v2779
    %v2809 = vsub.f32 %v2761, %v2781
    %v2810 = vsub.f32 %v2762, %v2783
    %v2811 = vsub.f32 %v2763, %v2785
    %v2812 = vsub.f32 %v2764, %v2787
    %v2813 = vsub.f32 %v2765, %v2789
    %v2814 = vsub.f32 %v2766, %v2791
    %v2815 = vsub.f32 %v2767, %v2793
    %v2816 = vsub.f32 %v2768, %v2795
    %v2817 = vsub.f32 %v2769, %v2797
    %v2818 = vsub.f32 %v2770, %v2799
    %v2819 = vsub.f32 %v2771, %v2801
    %v2820 = vsub.f32 %v2772, %v2803
    %v2821 = vsub.f32 %v2773, %v2805
    %v2822 = vmul.f32 %v2806, 1.442695
    %v2823 = vpow.pop %v2822
    %v2824 = vmul.f32 %v2807, 1.442695
    %v2825 = vpow.pop %v2824
    %v2826 = vmul.f32 %v2808, 1.442695
    %v2827 = vpow.pop %v2826
    %v2828 = vmul.f32 %v2809, 1.442695
    %v2829 = vpow.pop %v2828
    %v2830 = vmul.f32 %v2810, 1.442695
    %v2831 = vpow.pop %v2830
    %v2832 = vmul.f32 %v2811, 1.442695
    %v2833 = vpow.pop %v2832
    %v2834 = vmul.f32 %v2812, 1.442695
    %v2835 = vpow.pop %v2834
    %v2836 = vmul.f32 %v2813, 1.442695
    %v2837 = vpow.pop %v2836
    %v2838 = vmul.f32 %v2814, 1.442695
    %v2839 = vpow.pop %v2838
    %v2840 = vmul.f32 %v2815, 1.442695
    %v2841 = vpow.pop %v2840
    %v2842 = vmul.f32 %v2816, 1.442695
    %v2843 = vpow.pop %v2842
    %v2844 = vmul.f32 %v2817, 1.442695
    %v2845 = vpow.pop %v2844
    %v2846 = vmul.f32 %v2818, 1.442695
    %v2847 = vpow.pop %v2846
    %v2848 = vmul.f32 %v2819, 1.442695
    %v2849 = vpow.pop %v2848
    %v2850 = vmul.f32 %v2820, 1.442695
    %v2851 = vpow.pop %v2850
    %v2852 = vmul.f32 %v2821, 1.442695
    %v2853 = vpow.pop %v2852
    %2854 = vadd.xlane.f32.xlu0 %v2823
    %v2855 = vpop.xlane.xlu0 %2854
    %2856 = vadd.xlane.f32.xlu0 %v2825
    %v2857 = vpop.xlane.xlu0 %2856
    %2858 = vadd.xlane.f32.xlu0 %v2827
    %v2859 = vpop.xlane.xlu0 %2858
    %2860 = vadd.xlane.f32.xlu0 %v2829
    %v2861 = vpop.xlane.xlu0 %2860
    %2862 = vadd.xlane.f32.xlu0 %v2831
    %v2863 = vpop.xlane.xlu0 %2862
    %2864 = vadd.xlane.f32.xlu0 %v2833
    %v2865 = vpop.xlane.xlu0 %2864
    %2866 = vadd.xlane.f32.xlu0 %v2835
    %v2867 = vpop.xlane.xlu0 %2866
    %2868 = vadd.xlane.f32.xlu0 %v2837
    %v2869 = vpop.xlane.xlu0 %2868
    %2870 = vadd.xlane.f32.xlu0 %v2839
    %v2871 = vpop.xlane.xlu0 %2870
    %2872 = vadd.xlane.f32.xlu0 %v2841
    %v2873 = vpop.xlane.xlu0 %2872
    %2874 = vadd.xlane.f32.xlu0 %v2843
    %v2875 = vpop.xlane.xlu0 %2874
    %2876 = vadd.xlane.f32.xlu0 %v2845
    %v2877 = vpop.xlane.xlu0 %2876
    %2878 = vadd.xlane.f32.xlu0 %v2847
    %v2879 = vpop.xlane.xlu0 %2878
    %2880 = vadd.xlane.f32.xlu0 %v2849
    %v2881 = vpop.xlane.xlu0 %2880
    %2882 = vadd.xlane.f32.xlu0 %v2851
    %v2883 = vpop.xlane.xlu0 %2882
    %2884 = vadd.xlane.f32.xlu0 %v2853
    %v2885 = vpop.xlane.xlu0 %2884
    %v2886 = vrcp.pop %v2855
    %v2887 = vrcp.pop %v2857
    %v2888 = vrcp.pop %v2859
    %v2889 = vrcp.pop %v2861
    %v2890 = vrcp.pop %v2863
    %v2891 = vrcp.pop %v2865
    %v2892 = vrcp.pop %v2867
    %v2893 = vrcp.pop %v2869
    %v2894 = vrcp.pop %v2871
    %v2895 = vrcp.pop %v2873
    %v2896 = vrcp.pop %v2875
    %v2897 = vrcp.pop %v2877
    %v2898 = vrcp.pop %v2879
    %v2899 = vrcp.pop %v2881
    %v2900 = vrcp.pop %v2883
    %v2901 = vrcp.pop %v2885
    %v2902 = vmul.f32 %v2823, %v2886
    %v2903 = vmul.f32 %v2825, %v2887
    %v2904 = vmul.f32 %v2827, %v2888
    %v2905 = vmul.f32 %v2829, %v2889
    %v2906 = vmul.f32 %v2831, %v2890
    %v2907 = vmul.f32 %v2833, %v2891
    %v2908 = vmul.f32 %v2835, %v2892
    %v2909 = vmul.f32 %v2837, %v2893
    %v2910 = vmul.f32 %v2839, %v2894
    %v2911 = vmul.f32 %v2841, %v2895
    %v2912 = vmul.f32 %v2843, %v2896
    %v2913 = vmul.f32 %v2845, %v2897
    %v2914 = vmul.f32 %v2847, %v2898
    %v2915 = vmul.f32 %v2849, %v2899
    %v2916 = vmul.f32 %v2851, %v2900
    %v2917 = vmul.f32 %v2853, %v2901
    %v2918 = vpack.c.bf16 %v2902, %v2902
    %v2919 = vpack.c.bf16 %v2903, %v2903
    %v2920 = vpack.c.bf16 %v2904, %v2904
    %v2921 = vpack.c.bf16 %v2905, %v2905
    %v2922 = vpack.c.bf16 %v2906, %v2906
    %v2923 = vpack.c.bf16 %v2907, %v2907
    %v2924 = vpack.c.bf16 %v2908, %v2908
    %v2925 = vpack.c.bf16 %v2909, %v2909
    %v2926 = vpack.c.bf16 %v2910, %v2910
    %v2927 = vpack.c.bf16 %v2911, %v2911
    %v2928 = vpack.c.bf16 %v2912, %v2912
    %v2929 = vpack.c.bf16 %v2913, %v2913
    %v2930 = vpack.c.bf16 %v2914, %v2914
    %v2931 = vpack.c.bf16 %v2915, %v2915
    %v2932 = vpack.c.bf16 %v2916, %v2916
    %v2933 = vpack.c.bf16 %v2917, %v2917
    %v2950 = vunpack.c.l.b16 %v2613
    %v2951 = vunpack.c.l.b16 %v2614
    %v2952 = vunpack.c.l.b16 %v2615
    %v2953 = vunpack.c.l.b16 %v2616
    %v2954 = vunpack.c.l.b16 %v2617
    %v2955 = vunpack.c.l.b16 %v2618
    %v2956 = vunpack.c.l.b16 %v2619
    %v2957 = vunpack.c.l.b16 %v2620
    %v2958 = vunpack.c.l.b16 %v2621
    %v2959 = vunpack.c.l.b16 %v2622
    %v2960 = vunpack.c.l.b16 %v2623
    %v2961 = vunpack.c.l.b16 %v2624
    %v2962 = vunpack.c.l.b16 %v2625
    %v2963 = vunpack.c.l.b16 %v2626
    %v2964 = vunpack.c.l.b16 %v2627
    %v2965 = vunpack.c.l.b16 %v2628
    %v2966 = vpack.c.b16 %v2951, %v2950
    %v2967 = vpack.c.b16 %v2953, %v2952
    %v2968 = vpack.c.b16 %v2955, %v2954
    %v2969 = vpack.c.b16 %v2957, %v2956
    %v2970 = vpack.c.b16 %v2959, %v2958
    %v2971 = vpack.c.b16 %v2961, %v2960
    %v2972 = vpack.c.b16 %v2963, %v2962
    %v2973 = vpack.c.b16 %v2965, %v2964
    %v2998 = vunpack.c.l.b16 %v2918
    %v2999 = vunpack.c.l.b16 %v2919
    %v3000 = vunpack.c.l.b16 %v2920
    %v3001 = vunpack.c.l.b16 %v2921
    %v3002 = vunpack.c.l.b16 %v2922
    %v3003 = vunpack.c.l.b16 %v2923
    %v3004 = vunpack.c.l.b16 %v2924
    %v3005 = vunpack.c.l.b16 %v2925
    %v3006 = vunpack.c.l.b16 %v2926
    %v3007 = vunpack.c.l.b16 %v2927
    %v3008 = vunpack.c.l.b16 %v2928
    %v3009 = vunpack.c.l.b16 %v2929
    %v3010 = vunpack.c.l.b16 %v2930
    %v3011 = vunpack.c.l.b16 %v2931
    %v3012 = vunpack.c.l.b16 %v2932
    %v3013 = vunpack.c.l.b16 %v2933
    %v3014 = vpack.c.b16 %v2999, %v2998
    %v3015 = vpack.c.b16 %v3001, %v3000
    %v3016 = vpack.c.b16 %v3003, %v3002
    %v3017 = vpack.c.b16 %v3005, %v3004
    %v3018 = vpack.c.b16 %v3007, %v3006
    %v3019 = vpack.c.b16 %v3009, %v3008
    %v3020 = vpack.c.b16 %v3011, %v3010
    %v3021 = vpack.c.b16 %v3013, %v3012
    %3030 = vmatpush.bf16.msra.mxu0 %v2156
    %3031 = vmatpush.bf16.msra.mxu0 %v2154
    %3032 = vmatpush.bf16.msra.mxu0 %v2152
    %3033 = vmatpush.bf16.msra.mxu0 %v2150
    %3034 = vmatpush.bf16.msra.mxu0 %v2148
    %3035 = vmatpush.bf16.msra.mxu0 %v2146
    %3036 = vmatpush.bf16.msra.mxu0 %v2144
    %3037 = vmatpush.bf16.msra.mxu0 %v2142
    %3038 = vmatmul.bf16.gmra.mxu0 %v2966
    %v3039 = vpop.f32.mrf.mxu0
    %v3040 = vadd.f32 0.0, %v3039
    %v3041 = vpop.f32.mrf.mxu0
    %v3042 = vadd.f32 0.0, %v3041
    %3043 = vmatmul.bf16.gmra.mxu0 %v2967
    %v3044 = vpop.f32.mrf.mxu0
    %v3045 = vadd.f32 0.0, %v3044
    %v3046 = vpop.f32.mrf.mxu0
    %v3047 = vadd.f32 0.0, %v3046
    %3048 = vmatmul.bf16.gmra.mxu0 %v2968
    %v3049 = vpop.f32.mrf.mxu0
    %v3050 = vadd.f32 0.0, %v3049
    %v3051 = vpop.f32.mrf.mxu0
    %v3052 = vadd.f32 0.0, %v3051
    %3053 = vmatmul.bf16.gmra.mxu0 %v2969
    %v3054 = vpop.f32.mrf.mxu0
    %v3055 = vadd.f32 0.0, %v3054
    %v3056 = vpop.f32.mrf.mxu0
    %v3057 = vadd.f32 0.0, %v3056
    %3058 = vmatmul.bf16.gmra.mxu0 %v2970
    %v3059 = vpop.f32.mrf.mxu0
    %v3060 = vadd.f32 0.0, %v3059
    %v3061 = vpop.f32.mrf.mxu0
    %v3062 = vadd.f32 0.0, %v3061
    %3063 = vmatmul.bf16.gmra.mxu0 %v2971
    %v3064 = vpop.f32.mrf.mxu0
    %v3065 = vadd.f32 0.0, %v3064
    %v3066 = vpop.f32.mrf.mxu0
    %v3067 = vadd.f32 0.0, %v3066
    %3068 = vmatmul.bf16.gmra.mxu0 %v2972
    %v3069 = vpop.f32.mrf.mxu0
    %v3070 = vadd.f32 0.0, %v3069
    %v3071 = vpop.f32.mrf.mxu0
    %v3072 = vadd.f32 0.0, %v3071
    %3073 = vmatmul.bf16.gmra.mxu0 %v2973
    %v3074 = vpop.f32.mrf.mxu0
    %v3075 = vadd.f32 0.0, %v3074
    %v3076 = vpop.f32.mrf.mxu0
    %v3077 = vadd.f32 0.0, %v3076
    %3078 = vdwg.mxu0
    %3079 = vmatpush.bf16.msra.mxu0 %v2157
    %3080 = vmatpush.bf16.msra.mxu0 %v2155
    %3081 = vmatpush.bf16.msra.mxu0 %v2153
    %3082 = vmatpush.bf16.msra.mxu0 %v2151
    %3083 = vmatpush.bf16.msra.mxu0 %v2149
    %3084 = vmatpush.bf16.msra.mxu0 %v2147
    %3085 = vmatpush.bf16.msra.mxu0 %v2145
    %3086 = vmatpush.bf16.msra.mxu0 %v2143
    %3087 = vmatmul.bf16.gmra.mxu0 %v3014
    %v3088 = vpop.f32.mrf.mxu0
    %v3089 = vadd.f32 %v3040, %v3088
    %v3090 = vpop.f32.mrf.mxu0
    %v3091 = vadd.f32 %v3042, %v3090
    %3092 = vmatmul.bf16.gmra.mxu0 %v3015
    %v3093 = vpop.f32.mrf.mxu0
    %v3094 = vadd.f32 %v3045, %v3093
    %v3095 = vpop.f32.mrf.mxu0
    %v3096 = vadd.f32 %v3047, %v3095
    %3097 = vmatmul.bf16.gmra.mxu0 %v3016
    %v3098 = vpop.f32.mrf.mxu0
    %v3099 = vadd.f32 %v3050, %v3098
    %v3100 = vpop.f32.mrf.mxu0
    %v3101 = vadd.f32 %v3052, %v3100
    %3102 = vmatmul.bf16.gmra.mxu0 %v3017
    %v3103 = vpop.f32.mrf.mxu0
    %v3104 = vadd.f32 %v3055, %v3103
    %v3105 = vpop.f32.mrf.mxu0
    %v3106 = vadd.f32 %v3057, %v3105
    %3107 = vmatmul.bf16.gmra.mxu0 %v3018
    %v3108 = vpop.f32.mrf.mxu0
    %v3109 = vadd.f32 %v3060, %v3108
    %v3110 = vpop.f32.mrf.mxu0
    %v3111 = vadd.f32 %v3062, %v3110
    %3112 = vmatmul.bf16.gmra.mxu0 %v3019
    %v3113 = vpop.f32.mrf.mxu0
    %v3114 = vadd.f32 %v3065, %v3113
    %v3115 = vpop.f32.mrf.mxu0
    %v3116 = vadd.f32 %v3067, %v3115
    %3117 = vmatmul.bf16.gmra.mxu0 %v3020
    %v3118 = vpop.f32.mrf.mxu0
    %v3119 = vadd.f32 %v3070, %v3118
    %v3120 = vpop.f32.mrf.mxu0
    %v3121 = vadd.f32 %v3072, %v3120
    %3122 = vmatmul.bf16.gmra.mxu0 %v3021
    %v3123 = vpop.f32.mrf.mxu0
    %v3124 = vadd.f32 %v3075, %v3123
    %v3125 = vpop.f32.mrf.mxu0
    %v3126 = vadd.f32 %v3077, %v3125
    %3127 = vdwg.mxu0
    %v3128 = vmul.f32 %v3089, 0.5
    %v3129 = vmul.f32 %v3091, 0.5
    %v3130 = vmul.f32 %v3094, 0.5
    %v3131 = vmul.f32 %v3096, 0.5
    %v3132 = vmul.f32 %v3099, 0.5
    %v3133 = vmul.f32 %v3101, 0.5
    %v3134 = vmul.f32 %v3104, 0.5
    %v3135 = vmul.f32 %v3106, 0.5
    %v3136 = vmul.f32 %v3109, 0.5
    %v3137 = vmul.f32 %v3111, 0.5
    %v3138 = vmul.f32 %v3114, 0.5
    %v3139 = vmul.f32 %v3116, 0.5
    %v3140 = vmul.f32 %v3119, 0.5
    %v3141 = vmul.f32 %v3121, 0.5
    %v3142 = vmul.f32 %v3124, 0.5
    %v3143 = vmul.f32 %v3126, 0.5
    %v3144 = vld [vmem:[#allocation5 + $0x6] sm:$0x1]
    %v3145 = vperm.slane %v3144, 0
    %v3146 = vadd.f32 %v3128, %v3145
    %v3147 = vadd.f32 %v3129, %v3145
    %v3148 = vadd.f32 %v3130, %v3145
    %v3149 = vadd.f32 %v3131, %v3145
    %v3150 = vadd.f32 %v3132, %v3145
    %v3151 = vadd.f32 %v3133, %v3145
    %v3152 = vadd.f32 %v3134, %v3145
    %v3153 = vadd.f32 %v3135, %v3145
    %v3154 = vadd.f32 %v3136, %v3145
    %v3155 = vadd.f32 %v3137, %v3145
    %v3156 = vadd.f32 %v3138, %v3145
    %v3157 = vadd.f32 %v3139, %v3145
    %v3158 = vadd.f32 %v3140, %v3145
    %v3159 = vadd.f32 %v3141, %v3145
    %v3160 = vadd.f32 %v3142, %v3145
    %v3161 = vadd.f32 %v3143, %v3145
    %v3162 = vld [vmem:[#allocation7 + $0x10] sm:$0xf]
    %v3163 = vld [vmem:[#allocation7 + $0x28] sm:$0xf]
    %v3164 = vld [vmem:[#allocation7 + $0x40] sm:$0xf]
    %v3165 = vld [vmem:[#allocation7 + $0x58] sm:$0xf]
    %v3166 = vld [vmem:[#allocation7 + $0x70] sm:$0xf]
    %v3167 = vld [vmem:[#allocation7 + $0x88] sm:$0xf]
    %v3168 = vld [vmem:[#allocation7 + $0xa0] sm:$0xf]
    %v3169 = vld [vmem:[#allocation7 + $0xb8] sm:$0xf]
    %v3170 = vld [vmem:[#allocation7 + $0xd0] sm:$0xf]
    %v3171 = vld [vmem:[#allocation7 + $0xe8] sm:$0xf]
    %v3172 = vld [vmem:[#allocation7 + $0x100] sm:$0xf]
    %v3173 = vld [vmem:[#allocation7 + $0x118] sm:$0xf]
    %v3174 = vld [vmem:[#allocation7 + $0x130] sm:$0xf]
    %v3175 = vld [vmem:[#allocation7 + $0x148] sm:$0xf]
    %v3176 = vld [vmem:[#allocation7 + $0x160] sm:$0xf]
    %v3177 = vld [vmem:[#allocation7 + $0x178] sm:$0xf]
    %v3178 = vld [vmem:[#allocation5 + $0x7] sm:$0x1]
    %v3179 = vperm.slane %v3178, 0
    %v3196 = vunpack.c.l.b16 %v3162
    %v3197 = vunpack.c.l.b16 %v3163
    %v3198 = vunpack.c.l.b16 %v3164
    %v3199 = vunpack.c.l.b16 %v3165
    %v3200 = vunpack.c.l.b16 %v3166
    %v3201 = vunpack.c.l.b16 %v3167
    %v3202 = vunpack.c.l.b16 %v3168
    %v3203 = vunpack.c.l.b16 %v3169
    %v3204 = vunpack.c.l.b16 %v3170
    %v3205 = vunpack.c.l.b16 %v3171
    %v3206 = vunpack.c.l.b16 %v3172
    %v3207 = vunpack.c.l.b16 %v3173
    %v3208 = vunpack.c.l.b16 %v3174
    %v3209 = vunpack.c.l.b16 %v3175
    %v3210 = vunpack.c.l.b16 %v3176
    %v3211 = vunpack.c.l.b16 %v3177
    %v3212 = vpack.c.b16 %v3197, %v3196
    %v3213 = vpack.c.b16 %v3199, %v3198
    %v3214 = vpack.c.b16 %v3201, %v3200
    %v3215 = vpack.c.b16 %v3203, %v3202
    %v3216 = vpack.c.b16 %v3205, %v3204
    %v3217 = vpack.c.b16 %v3207, %v3206
    %v3218 = vpack.c.b16 %v3209, %v3208
    %v3219 = vpack.c.b16 %v3211, %v3210
    %3228 = vmatpush.bf16.msra.mxu0 %v3219
    %3229 = vmatpush.bf16.msra.mxu0 %v3218
    %3230 = vmatpush.bf16.msra.mxu0 %v3217
    %3231 = vmatpush.bf16.msra.mxu0 %v3216
    %3232 = vmatpush.bf16.msra.mxu0 %v3215
    %3233 = vmatpush.bf16.msra.mxu0 %v3214
    %3234 = vmatpush.bf16.msra.mxu0 %v3213
    %3235 = vmatpush.bf16.msra.mxu0 %v3212
    %3236 = vmatmul.bf16.gmra.mxu0 %v1876
    %v3237 = vpop.f32.mrf.mxu0
    %v3238 = vadd.f32 %v3179, %v3237
    %v3239 = vpop.f32.mrf.mxu0
    %v3240 = vadd.f32 %v3179, %v3239
    %3241 = vmatmul.bf16.gmra.mxu0 %v1877
    %v3242 = vpop.f32.mrf.mxu0
    %v3243 = vadd.f32 %v3179, %v3242
    %v3244 = vpop.f32.mrf.mxu0
    %v3245 = vadd.f32 %v3179, %v3244
    %3246 = vmatmul.bf16.gmra.mxu0 %v1878
    %v3247 = vpop.f32.mrf.mxu0
    %v3248 = vadd.f32 %v3179, %v3247
    %v3249 = vpop.f32.mrf.mxu0
    %v3250 = vadd.f32 %v3179, %v3249
    %3251 = vmatmul.bf16.gmra.mxu0 %v1879
    %v3252 = vpop.f32.mrf.mxu0
    %v3253 = vadd.f32 %v3179, %v3252
    %v3254 = vpop.f32.mrf.mxu0
    %v3255 = vadd.f32 %v3179, %v3254
    %3256 = vmatmul.bf16.gmra.mxu0 %v1880
    %v3257 = vpop.f32.mrf.mxu0
    %v3258 = vadd.f32 %v3179, %v3257
    %v3259 = vpop.f32.mrf.mxu0
    %v3260 = vadd.f32 %v3179, %v3259
    %3261 = vmatmul.bf16.gmra.mxu0 %v1881
    %v3262 = vpop.f32.mrf.mxu0
    %v3263 = vadd.f32 %v3179, %v3262
    %v3264 = vpop.f32.mrf.mxu0
    %v3265 = vadd.f32 %v3179, %v3264
    %3266 = vmatmul.bf16.gmra.mxu0 %v1882
    %v3267 = vpop.f32.mrf.mxu0
    %v3268 = vadd.f32 %v3179, %v3267
    %v3269 = vpop.f32.mrf.mxu0
    %v3270 = vadd.f32 %v3179, %v3269
    %3271 = vmatmul.bf16.gmra.mxu0 %v1883
    %v3272 = vpop.f32.mrf.mxu0
    %v3273 = vadd.f32 %v3179, %v3272
    %v3274 = vpop.f32.mrf.mxu0
    %v3275 = vadd.f32 %v3179, %v3274
    %3276 = vdwg.mxu0
    %v3277 = vadd.f32 %v3146, %v3238
    %v3278 = vadd.f32 %v3147, %v3240
    %v3279 = vadd.f32 %v3148, %v3243
    %v3280 = vadd.f32 %v3149, %v3245
    %v3281 = vadd.f32 %v3150, %v3248
    %v3282 = vadd.f32 %v3151, %v3250
    %v3283 = vadd.f32 %v3152, %v3253
    %v3284 = vadd.f32 %v3153, %v3255
    %v3285 = vadd.f32 %v3154, %v3258
    %v3286 = vadd.f32 %v3155, %v3260
    %v3287 = vadd.f32 %v3156, %v3263
    %v3288 = vadd.f32 %v3157, %v3265
    %v3289 = vadd.f32 %v3158, %v3268
    %v3290 = vadd.f32 %v3159, %v3270
    %v3291 = vadd.f32 %v3160, %v3273
    %v3292 = vadd.f32 %v3161, %v3275
    %v3293 = vmax.f32 %v3277, 0.0
    %v3294 = vmax.f32 %v3278, 0.0
    %v3295 = vmax.f32 %v3279, 0.0
    %v3296 = vmax.f32 %v3280, 0.0
    %v3297 = vmax.f32 %v3281, 0.0
    %v3298 = vmax.f32 %v3282, 0.0
    %v3299 = vmax.f32 %v3283, 0.0
    %v3300 = vmax.f32 %v3284, 0.0
    %v3301 = vmax.f32 %v3285, 0.0
    %v3302 = vmax.f32 %v3286, 0.0
    %v3303 = vmax.f32 %v3287, 0.0
    %v3304 = vmax.f32 %v3288, 0.0
    %v3305 = vmax.f32 %v3289, 0.0
    %v3306 = vmax.f32 %v3290, 0.0
    %v3307 = vmax.f32 %v3291, 0.0
    %v3308 = vmax.f32 %v3292, 0.0
    %v3309 = vpack.c.bf16 %v3294, %v3293
    %v3310 = vpack.c.bf16 %v3296, %v3295
    %v3311 = vpack.c.bf16 %v3298, %v3297
    %v3312 = vpack.c.bf16 %v3300, %v3299
    %v3313 = vpack.c.bf16 %v3302, %v3301
    %v3314 = vpack.c.bf16 %v3304, %v3303
    %v3315 = vpack.c.bf16 %v3306, %v3305
    %v3316 = vpack.c.bf16 %v3308, %v3307
    %v3317 = vld [vmem:[#allocation7 + $0x14] sm:$0xf]
    %v3318 = vld [vmem:[#allocation7 + $0x2c] sm:$0xf]
    %v3319 = vld [vmem:[#allocation7 + $0x44] sm:$0xf]
    %v3320 = vld [vmem:[#allocation7 + $0x5c] sm:$0xf]
    %v3321 = vld [vmem:[#allocation7 + $0x74] sm:$0xf]
    %v3322 = vld [vmem:[#allocation7 + $0x8c] sm:$0xf]
    %v3323 = vld [vmem:[#allocation7 + $0xa4] sm:$0xf]
    %v3324 = vld [vmem:[#allocation7 + $0xbc] sm:$0xf]
    %v3325 = vld [vmem:[#allocation7 + $0xd4] sm:$0xf]
    %v3326 = vld [vmem:[#allocation7 + $0xec] sm:$0xf]
    %v3327 = vld [vmem:[#allocation7 + $0x104] sm:$0xf]
    %v3328 = vld [vmem:[#allocation7 + $0x11c] sm:$0xf]
    %v3329 = vld [vmem:[#allocation7 + $0x134] sm:$0xf]
    %v3330 = vld [vmem:[#allocation7 + $0x14c] sm:$0xf]
    %v3331 = vld [vmem:[#allocation7 + $0x164] sm:$0xf]
    %v3332 = vld [vmem:[#allocation7 + $0x17c] sm:$0xf]
    %v3333 = vld [vmem:[#allocation5 + $0x8] sm:$0x1]
    %v3334 = vperm.slane %v3333, 0
    %v3351 = vunpack.c.l.b16 %v3317
    %v3352 = vunpack.c.l.b16 %v3318
    %v3353 = vunpack.c.l.b16 %v3319
    %v3354 = vunpack.c.l.b16 %v3320
    %v3355 = vunpack.c.l.b16 %v3321
    %v3356 = vunpack.c.l.b16 %v3322
    %v3357 = vunpack.c.l.b16 %v3323
    %v3358 = vunpack.c.l.b16 %v3324
    %v3359 = vunpack.c.l.b16 %v3325
    %v3360 = vunpack.c.l.b16 %v3326
    %v3361 = vunpack.c.l.b16 %v3327
    %v3362 = vunpack.c.l.b16 %v3328
    %v3363 = vunpack.c.l.b16 %v3329
    %v3364 = vunpack.c.l.b16 %v3330
    %v3365 = vunpack.c.l.b16 %v3331
    %v3366 = vunpack.c.l.b16 %v3332
    %v3367 = vpack.c.b16 %v3352, %v3351
    %v3368 = vpack.c.b16 %v3354, %v3353
    %v3369 = vpack.c.b16 %v3356, %v3355
    %v3370 = vpack.c.b16 %v3358, %v3357
    %v3371 = vpack.c.b16 %v3360, %v3359
    %v3372 = vpack.c.b16 %v3362, %v3361
    %v3373 = vpack.c.b16 %v3364, %v3363
    %v3374 = vpack.c.b16 %v3366, %v3365
    %3383 = vmatpush.bf16.msra.mxu0 %v3374
    %3384 = vmatpush.bf16.msra.mxu0 %v3373
    %3385 = vmatpush.bf16.msra.mxu0 %v3372
    %3386 = vmatpush.bf16.msra.mxu0 %v3371
    %3387 = vmatpush.bf16.msra.mxu0 %v3370
    %3388 = vmatpush.bf16.msra.mxu0 %v3369
    %3389 = vmatpush.bf16.msra.mxu0 %v3368
    %3390 = vmatpush.bf16.msra.mxu0 %v3367
    %3391 = vmatmul.bf16.gmra.mxu0 %v3309
    %v3392 = vpop.f32.mrf.mxu0
    %v3393 = vadd.f32 %v3334, %v3392
    %v3394 = vpop.f32.mrf.mxu0
    %v3395 = vadd.f32 %v3334, %v3394
    %3396 = vmatmul.bf16.gmra.mxu0 %v3310
    %v3397 = vpop.f32.mrf.mxu0
    %v3398 = vadd.f32 %v3334, %v3397
    %v3399 = vpop.f32.mrf.mxu0
    %v3400 = vadd.f32 %v3334, %v3399
    %3401 = vmatmul.bf16.gmra.mxu0 %v3311
    %v3402 = vpop.f32.mrf.mxu0
    %v3403 = vadd.f32 %v3334, %v3402
    %v3404 = vpop.f32.mrf.mxu0
    %v3405 = vadd.f32 %v3334, %v3404
    %3406 = vmatmul.bf16.gmra.mxu0 %v3312
    %v3407 = vpop.f32.mrf.mxu0
    %v3408 = vadd.f32 %v3334, %v3407
    %v3409 = vpop.f32.mrf.mxu0
    %v3410 = vadd.f32 %v3334, %v3409
    %3411 = vmatmul.bf16.gmra.mxu0 %v3313
    %v3412 = vpop.f32.mrf.mxu0
    %v3413 = vadd.f32 %v3334, %v3412
    %v3414 = vpop.f32.mrf.mxu0
    %v3415 = vadd.f32 %v3334, %v3414
    %3416 = vmatmul.bf16.gmra.mxu0 %v3314
    %v3417 = vpop.f32.mrf.mxu0
    %v3418 = vadd.f32 %v3334, %v3417
    %v3419 = vpop.f32.mrf.mxu0
    %v3420 = vadd.f32 %v3334, %v3419
    %3421 = vmatmul.bf16.gmra.mxu0 %v3315
    %v3422 = vpop.f32.mrf.mxu0
    %v3423 = vadd.f32 %v3334, %v3422
    %v3424 = vpop.f32.mrf.mxu0
    %v3425 = vadd.f32 %v3334, %v3424
    %3426 = vmatmul.bf16.gmra.mxu0 %v3316
    %v3427 = vpop.f32.mrf.mxu0
    %v3428 = vadd.f32 %v3334, %v3427
    %v3429 = vpop.f32.mrf.mxu0
    %v3430 = vadd.f32 %v3334, %v3429
    %3431 = vdwg.mxu0
    %v3432 = vpack.c.bf16 %v3395, %v3393
    %v3433 = vpack.c.bf16 %v3400, %v3398
    %v3434 = vpack.c.bf16 %v3405, %v3403
    %v3435 = vpack.c.bf16 %v3410, %v3408
    %v3436 = vpack.c.bf16 %v3415, %v3413
    %v3437 = vpack.c.bf16 %v3420, %v3418
    %v3438 = vpack.c.bf16 %v3425, %v3423
    %v3439 = vpack.c.bf16 %v3430, %v3428
    %v3440 = vld [vmem:[%s5 + $0x10] sm:$0xf]
    %v3441 = vld [vmem:[#allocation5 + $0x9] sm:$0x1]
    %v3442 = vperm.slane %v3441, 0
    %3443 = vmatpush.bf16.xpose.msra.mxu0 0
    %3444 = vmatpush.bf16.xpose.msra.mxu0 0
    %3445 = vmatpush.bf16.xpose.msra.mxu0 0
    %3446 = vmatpush.bf16.xpose.msra.mxu0 0
    %3447 = vmatpush.bf16.xpose.msra.mxu0 0
    %3448 = vmatpush.bf16.xpose.msra.mxu0 0
    %3449 = vmatpush.bf16.xpose.msra.mxu0 0
    %3450 = vmatpush.bf16.xpose.msra.mxu0 %v3440
    %3451 = vmatmul.bf16.gmra.mxu0 %v3432
    %v3452 = vpop.f32.mrf.mxu0
    %v3453 = vadd.f32 %v3442, %v3452
    %v3454 = vpop.f32.mrf.mxu0
    %v3455 = vadd.f32 %v3442, %v3454
    %3456 = vmatmul.bf16.gmra.mxu0 %v3433
    %v3457 = vpop.f32.mrf.mxu0
    %v3458 = vadd.f32 %v3442, %v3457
    %v3459 = vpop.f32.mrf.mxu0
    %v3460 = vadd.f32 %v3442, %v3459
    %3461 = vmatmul.bf16.gmra.mxu0 %v3434
    %v3462 = vpop.f32.mrf.mxu0
    %v3463 = vadd.f32 %v3442, %v3462
    %v3464 = vpop.f32.mrf.mxu0
    %v3465 = vadd.f32 %v3442, %v3464
    %3466 = vmatmul.bf16.gmra.mxu0 %v3435
    %v3467 = vpop.f32.mrf.mxu0
    %v3468 = vadd.f32 %v3442, %v3467
    %v3469 = vpop.f32.mrf.mxu0
    %v3470 = vadd.f32 %v3442, %v3469
    %3471 = vmatmul.bf16.gmra.mxu0 %v3436
    %v3472 = vpop.f32.mrf.mxu0
    %v3473 = vadd.f32 %v3442, %v3472
    %v3474 = vpop.f32.mrf.mxu0
    %v3475 = vadd.f32 %v3442, %v3474
    %3476 = vmatmul.bf16.gmra.mxu0 %v3437
    %v3477 = vpop.f32.mrf.mxu0
    %v3478 = vadd.f32 %v3442, %v3477
    %v3479 = vpop.f32.mrf.mxu0
    %v3480 = vadd.f32 %v3442, %v3479
    %3481 = vmatmul.bf16.gmra.mxu0 %v3438
    %v3482 = vpop.f32.mrf.mxu0
    %v3483 = vadd.f32 %v3442, %v3482
    %v3484 = vpop.f32.mrf.mxu0
    %v3485 = vadd.f32 %v3442, %v3484
    %3486 = vmatmul.bf16.gmra.mxu0 %v3439
    %v3487 = vpop.f32.mrf.mxu0
    %v3488 = vadd.f32 %v3442, %v3487
    %v3489 = vpop.f32.mrf.mxu0
    %v3490 = vadd.f32 %v3442, %v3489
    %3491 = vdwg.mxu0
    %vm3492 = vcmask 64512
    %v3493 = vsel %vm3492, %v3453, -inf
    %3494 = vmax.xlane.f32.xlu0 %v3493
    %v3495 = vpop.xlane.xlu0 %3494
    %v3496 = vsel %vm3492, %v3455, -inf
    %3497 = vmax.xlane.f32.xlu0 %v3496
    %v3498 = vpop.xlane.xlu0 %3497
    %v3499 = vsel %vm3492, %v3458, -inf
    %3500 = vmax.xlane.f32.xlu0 %v3499
    %v3501 = vpop.xlane.xlu0 %3500
    %v3502 = vsel %vm3492, %v3460, -inf
    %3503 = vmax.xlane.f32.xlu0 %v3502
    %v3504 = vpop.xlane.xlu0 %3503
    %v3505 = vsel %vm3492, %v3463, -inf
    %3506 = vmax.xlane.f32.xlu0 %v3505
    %v3507 = vpop.xlane.xlu0 %3506
    %v3508 = vsel %vm3492, %v3465, -inf
    %3509 = vmax.xlane.f32.xlu0 %v3508
    %v3510 = vpop.xlane.xlu0 %3509
    %v3511 = vsel %vm3492, %v3468, -inf
    %3512 = vmax.xlane.f32.xlu0 %v3511
    %v3513 = vpop.xlane.xlu0 %3512
    %v3514 = vsel %vm3492, %v3470, -inf
    %3515 = vmax.xlane.f32.xlu0 %v3514
    %v3516 = vpop.xlane.xlu0 %3515
    %v3517 = vsel %vm3492, %v3473, -inf
    %3518 = vmax.xlane.f32.xlu0 %v3517
    %v3519 = vpop.xlane.xlu0 %3518
    %v3520 = vsel %vm3492, %v3475, -inf
    %3521 = vmax.xlane.f32.xlu0 %v3520
    %v3522 = vpop.xlane.xlu0 %3521
    %v3523 = vsel %vm3492, %v3478, -inf
    %3524 = vmax.xlane.f32.xlu0 %v3523
    %v3525 = vpop.xlane.xlu0 %3524
    %v3526 = vsel %vm3492, %v3480, -inf
    %3527 = vmax.xlane.f32.xlu0 %v3526
    %v3528 = vpop.xlane.xlu0 %3527
    %v3529 = vsel %vm3492, %v3483, -inf
    %3530 = vmax.xlane.f32.xlu0 %v3529
    %v3531 = vpop.xlane.xlu0 %3530
    %v3532 = vsel %vm3492, %v3485, -inf
    %3533 = vmax.xlane.f32.xlu0 %v3532
    %v3534 = vpop.xlane.xlu0 %3533
    %v3535 = vsel %vm3492, %v3488, -inf
    %3536 = vmax.xlane.f32.xlu0 %v3535
    %v3537 = vpop.xlane.xlu0 %3536
    %v3538 = vsel %vm3492, %v3490, -inf
    %3539 = vmax.xlane.f32.xlu0 %v3538
    %v3540 = vpop.xlane.xlu0 %3539
    %v3541 = vsub.f32 %v3453, %v3495
    %v3542 = vsub.f32 %v3455, %v3498
    %v3543 = vsub.f32 %v3458, %v3501
    %v3544 = vsub.f32 %v3460, %v3504
    %v3545 = vsub.f32 %v3463, %v3507
    %v3546 = vsub.f32 %v3465, %v3510
    %v3547 = vsub.f32 %v3468, %v3513
    %v3548 = vsub.f32 %v3470, %v3516
    %v3549 = vsub.f32 %v3473, %v3519
    %v3550 = vsub.f32 %v3475, %v3522
    %v3551 = vsub.f32 %v3478, %v3525
    %v3552 = vsub.f32 %v3480, %v3528
    %v3553 = vsub.f32 %v3483, %v3531
    %v3554 = vsub.f32 %v3485, %v3534
    %v3555 = vsub.f32 %v3488, %v3537
    %v3556 = vsub.f32 %v3490, %v3540
    %v3557 = vmul.f32 %v3541, 1.442695
    %v3558 = vpow.pop %v3557
    %v3559 = vmul.f32 %v3542, 1.442695
    %v3560 = vpow.pop %v3559
    %v3561 = vmul.f32 %v3543, 1.442695
    %v3562 = vpow.pop %v3561
    %v3563 = vmul.f32 %v3544, 1.442695
    %v3564 = vpow.pop %v3563
    %v3565 = vmul.f32 %v3545, 1.442695
    %v3566 = vpow.pop %v3565
    %v3567 = vmul.f32 %v3546, 1.442695
    %v3568 = vpow.pop %v3567
    %v3569 = vmul.f32 %v3547, 1.442695
    %v3570 = vpow.pop %v3569
    %v3571 = vmul.f32 %v3548, 1.442695
    %v3572 = vpow.pop %v3571
    %v3573 = vmul.f32 %v3549, 1.442695
    %v3574 = vpow.pop %v3573
    %v3575 = vmul.f32 %v3550, 1.442695
    %v3576 = vpow.pop %v3575
    %v3577 = vmul.f32 %v3551, 1.442695
    %v3578 = vpow.pop %v3577
    %v3579 = vmul.f32 %v3552, 1.442695
    %v3580 = vpow.pop %v3579
    %v3581 = vmul.f32 %v3553, 1.442695
    %v3582 = vpow.pop %v3581
    %v3583 = vmul.f32 %v3554, 1.442695
    %v3584 = vpow.pop %v3583
    %v3585 = vmul.f32 %v3555, 1.442695
    %v3586 = vpow.pop %v3585
    %v3587 = vmul.f32 %v3556, 1.442695
    %v3588 = vpow.pop %v3587
    %v3589 = vsel %vm3492, %v3558, 0.0
    %3590 = vadd.xlane.f32.xlu0 %v3589
    %v3591 = vpop.xlane.xlu0 %3590
    %v3592 = vsel %vm3492, %v3560, 0.0
    %3593 = vadd.xlane.f32.xlu0 %v3592
    %v3594 = vpop.xlane.xlu0 %3593
    %v3595 = vsel %vm3492, %v3562, 0.0
    %3596 = vadd.xlane.f32.xlu0 %v3595
    %v3597 = vpop.xlane.xlu0 %3596
    %v3598 = vsel %vm3492, %v3564, 0.0
    %3599 = vadd.xlane.f32.xlu0 %v3598
    %v3600 = vpop.xlane.xlu0 %3599
    %v3601 = vsel %vm3492, %v3566, 0.0
    %3602 = vadd.xlane.f32.xlu0 %v3601
    %v3603 = vpop.xlane.xlu0 %3602
    %v3604 = vsel %vm3492, %v3568, 0.0
    %3605 = vadd.xlane.f32.xlu0 %v3604
    %v3606 = vpop.xlane.xlu0 %3605
    %v3607 = vsel %vm3492, %v3570, 0.0
    %3608 = vadd.xlane.f32.xlu0 %v3607
    %v3609 = vpop.xlane.xlu0 %3608
    %v3610 = vsel %vm3492, %v3572, 0.0
    %3611 = vadd.xlane.f32.xlu0 %v3610
    %v3612 = vpop.xlane.xlu0 %3611
    %v3613 = vsel %vm3492, %v3574, 0.0
    %3614 = vadd.xlane.f32.xlu0 %v3613
    %v3615 = vpop.xlane.xlu0 %3614
    %v3616 = vsel %vm3492, %v3576, 0.0
    %3617 = vadd.xlane.f32.xlu0 %v3616
    %v3618 = vpop.xlane.xlu0 %3617
    %v3619 = vsel %vm3492, %v3578, 0.0
    %3620 = vadd.xlane.f32.xlu0 %v3619
    %v3621 = vpop.xlane.xlu0 %3620
    %v3622 = vsel %vm3492, %v3580, 0.0
    %3623 = vadd.xlane.f32.xlu0 %v3622
    %v3624 = vpop.xlane.xlu0 %3623
    %v3625 = vsel %vm3492, %v3582, 0.0
    %3626 = vadd.xlane.f32.xlu0 %v3625
    %v3627 = vpop.xlane.xlu0 %3626
    %v3628 = vsel %vm3492, %v3584, 0.0
    %3629 = vadd.xlane.f32.xlu0 %v3628
    %v3630 = vpop.xlane.xlu0 %3629
    %v3631 = vsel %vm3492, %v3586, 0.0
    %3632 = vadd.xlane.f32.xlu0 %v3631
    %v3633 = vpop.xlane.xlu0 %3632
    %v3634 = vsel %vm3492, %v3588, 0.0
    %3635 = vadd.xlane.f32.xlu0 %v3634
    %v3636 = vpop.xlane.xlu0 %3635
    %v3637 = vrcp.pop %v3591
    %v3638 = vrcp.pop %v3594
    %v3639 = vrcp.pop %v3597
    %v3640 = vrcp.pop %v3600
    %v3641 = vrcp.pop %v3603
    %v3642 = vrcp.pop %v3606
    %v3643 = vrcp.pop %v3609
    %v3644 = vrcp.pop %v3612
    %v3645 = vrcp.pop %v3615
    %v3646 = vrcp.pop %v3618
    %v3647 = vrcp.pop %v3621
    %v3648 = vrcp.pop %v3624
    %v3649 = vrcp.pop %v3627
    %v3650 = vrcp.pop %v3630
    %v3651 = vrcp.pop %v3633
    %v3652 = vrcp.pop %v3636
    %v3653 = vmul.f32 %v3558, %v3637
    %v3654 = vmul.f32 %v3560, %v3638
    %v3655 = vmul.f32 %v3562, %v3639
    %v3656 = vmul.f32 %v3564, %v3640
    %v3657 = vmul.f32 %v3566, %v3641
    %v3658 = vmul.f32 %v3568, %v3642
    %v3659 = vmul.f32 %v3570, %v3643
    %v3660 = vmul.f32 %v3572, %v3644
    %v3661 = vmul.f32 %v3574, %v3645
    %v3662 = vmul.f32 %v3576, %v3646
    %v3663 = vmul.f32 %v3578, %v3647
    %v3664 = vmul.f32 %v3580, %v3648
    %v3665 = vmul.f32 %v3582, %v3649
    %v3666 = vmul.f32 %v3584, %v3650
    %v3667 = vmul.f32 %v3586, %v3651
    %v3668 = vmul.f32 %v3588, %v3652
    %3669 = vxpose.xlu0.b32.start [1/16] %v3653, 128
    %3670 = vxpose.xlu0.b32.cont [2/16] %v3654, 128
    %3671 = vxpose.xlu0.b32.cont [3/16] %v3655, 128
    %3672 = vxpose.xlu0.b32.cont [4/16] %v3656, 128
    %3673 = vxpose.xlu0.b32.cont [5/16] %v3657, 128
    %3674 = vxpose.xlu0.b32.cont [6/16] %v3658, 128
    %3675 = vxpose.xlu0.b32.cont [7/16] %v3659, 128
    %3676 = vxpose.xlu0.b32.cont [8/16] %v3660, 128
    %3677 = vxpose.xlu0.b32.cont [9/16] %v3661, 128
    %3678 = vxpose.xlu0.b32.cont [10/16] %v3662, 128
    %3679 = vxpose.xlu0.b32.cont [11/16] %v3663, 128
    %3680 = vxpose.xlu0.b32.cont [12/16] %v3664, 128
    %3681 = vxpose.xlu0.b32.cont [13/16] %v3665, 128
    %3682 = vxpose.xlu0.b32.cont [14/16] %v3666, 128
    %3683 = vxpose.xlu0.b32.cont [15/16] %v3667, 128
    %3684 = vxpose.xlu0.b32.end [16/16] %v3668, 128
    %v3685 = vpop.trf.xlu0
    %v3686 = vpop.trf.xlu0
    %v3687 = vpop.trf.xlu0
    %v3688 = vpop.trf.xlu0
    %v3689 = vpop.trf.xlu0
    %v3690 = vpop.trf.xlu0
    %v3691 = vpop.trf.xlu0
    %v3692 = vpop.trf.xlu0
    %v3693 = vpop.trf.xlu0
    %v3694 = vpop.trf.xlu0
    %v3695 = vpop.trf.xlu0
    %v3696 = vpop.trf.xlu0
    %v3697 = vpop.trf.xlu0
    %v3698 = vpop.trf.xlu0
    %v3699 = vpop.trf.xlu0
    %v3700 = vpop.trf.xlu0
    %v3701 = vld [vmem:[#allocation2] sm:$0xff]
    %v3703 = vrot.slane %v3701, 1
    %v3704 = vrot.slane %v3701, 2
    %v3705 = vrot.slane %v3701, 3
    %v3706 = vrot.slane %v3701, 4
    %v3707 = vrot.slane %v3701, 5
    %v3708 = vrot.slane %v3701, 6
    %v3709 = vrot.slane %v3701, 7
    %v3710 = vperm.slane %v3701, 0
    %v3711 = vperm.slane %v3703, 0
    %v3712 = vperm.slane %v3704, 0
    %v3713 = vperm.slane %v3705, 0
    %v3714 = vperm.slane %v3706, 0
    %v3715 = vperm.slane %v3707, 0
    %v3716 = vperm.slane %v3708, 0
    %v3717 = vperm.slane %v3709, 0
    %v3726 = vmul.f32 %v3710, %v3685
    %v3727 = vmul.f32 %v3711, %v3685
    %v3728 = vmul.f32 %v3712, %v3685
    %v3729 = vmul.f32 %v3713, %v3685
    %v3730 = vmul.f32 %v3714, %v3685
    %v3731 = vmul.f32 %v3715, %v3685
    %v3732 = vmul.f32 %v3716, %v3685
    %v3733 = vmul.f32 %v3717, %v3685
    %v3734 = vpack.c.bf16 %v3727, %v3726
    %v3735 = vpack.c.bf16 %v3729, %v3728
    %v3736 = vpack.c.bf16 %v3731, %v3730
    %v3737 = vpack.c.bf16 %v3733, %v3732
    %3738 = vmatpush.bf16.msra.mxu0 %v3316
    %3739 = vmatpush.bf16.msra.mxu0 %v3315
    %3740 = vmatpush.bf16.msra.mxu0 %v3314
    %3741 = vmatpush.bf16.msra.mxu0 %v3313
    %3742 = vmatpush.bf16.msra.mxu0 %v3312
    %3743 = vmatpush.bf16.msra.mxu0 %v3311
    %3744 = vmatpush.bf16.msra.mxu0 %v3310
    %3745 = vmatpush.bf16.msra.mxu0 %v3309
    %3746 = vmatmul.bf16.gmra.mxu0 %v3734
    %v3747 = vpop.f32.mrf.mxu0
    %v3748 = vadd.f32 0.0, %v3747
    %v3749 = vpop.f32.mrf.mxu0
    %v3750 = vadd.f32 0.0, %v3749
    %3751 = vmatmul.bf16.gmra.mxu0 %v3735
    %v3752 = vpop.f32.mrf.mxu0
    %v3753 = vadd.f32 0.0, %v3752
    %v3754 = vpop.f32.mrf.mxu0
    %v3755 = vadd.f32 0.0, %v3754
    %3756 = vmatmul.bf16.gmra.mxu0 %v3736
    %v3757 = vpop.f32.mrf.mxu0
    %v3758 = vadd.f32 0.0, %v3757
    %v3759 = vpop.f32.mrf.mxu0
    %v3760 = vadd.f32 0.0, %v3759
    %3761 = vmatmul.bf16.gmra.mxu0 %v3737
    %v3762 = vpop.f32.mrf.mxu0
    %v3763 = vadd.f32 0.0, %v3762
    %v3764 = vpop.f32.mrf.mxu0
    %v3765 = vadd.f32 0.0, %v3764
    %3766 = vdwg.mxu0
    %v3767 = vrot.slane %v3748, 4
    %v3768 = vmax.f32 %v3748, %v3767
    %v3769 = vrot.slane %v3768, 2
    %v3770 = vmax.f32 %v3768, %v3769
    %v3771 = vrot.slane %v3770, 1
    %v3772 = vmax.f32 %v3770, %v3771
    %v3773 = vrot.slane %v3750, 4
    %v3774 = vmax.f32 %v3750, %v3773
    %v3775 = vrot.slane %v3774, 2
    %v3776 = vmax.f32 %v3774, %v3775
    %v3777 = vrot.slane %v3776, 1
    %v3778 = vmax.f32 %v3776, %v3777
    %v3779 = vrot.slane %v3753, 4
    %v3780 = vmax.f32 %v3753, %v3779
    %v3781 = vrot.slane %v3780, 2
    %v3782 = vmax.f32 %v3780, %v3781
    %v3783 = vrot.slane %v3782, 1
    %v3784 = vmax.f32 %v3782, %v3783
    %v3785 = vrot.slane %v3755, 4
    %v3786 = vmax.f32 %v3755, %v3785
    %v3787 = vrot.slane %v3786, 2
    %v3788 = vmax.f32 %v3786, %v3787
    %v3789 = vrot.slane %v3788, 1
    %v3790 = vmax.f32 %v3788, %v3789
    %v3791 = vrot.slane %v3758, 4
    %v3792 = vmax.f32 %v3758, %v3791
    %v3793 = vrot.slane %v3792, 2
    %v3794 = vmax.f32 %v3792, %v3793
    %v3795 = vrot.slane %v3794, 1
    %v3796 = vmax.f32 %v3794, %v3795
    %v3797 = vrot.slane %v3760, 4
    %v3798 = vmax.f32 %v3760, %v3797
    %v3799 = vrot.slane %v3798, 2
    %v3800 = vmax.f32 %v3798, %v3799
    %v3801 = vrot.slane %v3800, 1
    %v3802 = vmax.f32 %v3800, %v3801
    %v3803 = vrot.slane %v3763, 4
    %v3804 = vmax.f32 %v3763, %v3803
    %v3805 = vrot.slane %v3804, 2
    %v3806 = vmax.f32 %v3804, %v3805
    %v3807 = vrot.slane %v3806, 1
    %v3808 = vmax.f32 %v3806, %v3807
    %v3809 = vrot.slane %v3765, 4
    %v3810 = vmax.f32 %v3765, %v3809
    %v3811 = vrot.slane %v3810, 2
    %v3812 = vmax.f32 %v3810, %v3811
    %v3813 = vrot.slane %v3812, 1
    %v3814 = vmax.f32 %v3812, %v3813
    %v3815 = vrot.slane %v3748, 4
    %v3816 = vmin.f32 %v3748, %v3815
    %v3817 = vrot.slane %v3816, 2
    %v3818 = vmin.f32 %v3816, %v3817
    %v3819 = vrot.slane %v3818, 1
    %v3820 = vmin.f32 %v3818, %v3819
    %v3821 = vrot.slane %v3750, 4
    %v3822 = vmin.f32 %v3750, %v3821
    %v3823 = vrot.slane %v3822, 2
    %v3824 = vmin.f32 %v3822, %v3823
    %v3825 = vrot.slane %v3824, 1
    %v3826 = vmin.f32 %v3824, %v3825
    %v3827 = vrot.slane %v3753, 4
    %v3828 = vmin.f32 %v3753, %v3827
    %v3829 = vrot.slane %v3828, 2
    %v3830 = vmin.f32 %v3828, %v3829
    %v3831 = vrot.slane %v3830, 1
    %v3832 = vmin.f32 %v3830, %v3831
    %v3833 = vrot.slane %v3755, 4
    %v3834 = vmin.f32 %v3755, %v3833
    %v3835 = vrot.slane %v3834, 2
    %v3836 = vmin.f32 %v3834, %v3835
    %v3837 = vrot.slane %v3836, 1
    %v3838 = vmin.f32 %v3836, %v3837
    %v3839 = vrot.slane %v3758, 4
    %v3840 = vmin.f32 %v3758, %v3839
    %v3841 = vrot.slane %v3840, 2
    %v3842 = vmin.f32 %v3840, %v3841
    %v3843 = vrot.slane %v3842, 1
    %v3844 = vmin.f32 %v3842, %v3843
    %v3845 = vrot.slane %v3760, 4
    %v3846 = vmin.f32 %v3760, %v3845
    %v3847 = vrot.slane %v3846, 2
    %v3848 = vmin.f32 %v3846, %v3847
    %v3849 = vrot.slane %v3848, 1
    %v3850 = vmin.f32 %v3848, %v3849
    %v3851 = vrot.slane %v3763, 4
    %v3852 = vmin.f32 %v3763, %v3851
    %v3853 = vrot.slane %v3852, 2
    %v3854 = vmin.f32 %v3852, %v3853
    %v3855 = vrot.slane %v3854, 1
    %v3856 = vmin.f32 %v3854, %v3855
    %v3857 = vrot.slane %v3765, 4
    %v3858 = vmin.f32 %v3765, %v3857
    %v3859 = vrot.slane %v3858, 2
    %v3860 = vmin.f32 %v3858, %v3859
    %v3861 = vrot.slane %v3860, 1
    %v3862 = vmin.f32 %v3860, %v3861
    %vm3871 = vcmask 1041409
    %v3872 = vsel %vm3871, %v3778, %v3772
    %vm3873 = vcmask 1042434
    %v3874 = vsel %vm3873, %v3784, %v3872
    %vm3875 = vcmask 1043459
    %v3876 = vsel %vm3875, %v3790, %v3874
    %vm3877 = vcmask 1044484
    %v3878 = vsel %vm3877, %v3796, %v3876
    %vm3879 = vcmask 1045509
    %v3880 = vsel %vm3879, %v3802, %v3878
    %vm3881 = vcmask 1046534
    %v3882 = vsel %vm3881, %v3808, %v3880
    %vm3883 = vcmask 1047559
    %v3884 = vsel %vm3883, %v3814, %v3882
    %v3894 = vsel %vm3871, %v3826, %v3820
    %v3895 = vsel %vm3873, %v3832, %v3894
    %v3896 = vsel %vm3875, %v3838, %v3895
    %v3897 = vsel %vm3877, %v3844, %v3896
    %v3898 = vsel %vm3879, %v3850, %v3897
    %v3899 = vsel %vm3881, %v3856, %v3898
    %v3900 = vsel %vm3883, %v3862, %v3899
    %v3902 = vpack.c.bf16 %v3884, %v3884
    %v3903 = vpack.c.bf16 %v3900, %v3900
    %v3904 = vld [vmem:[%s5 + $0x20] sm:$0xff]
    %v3905 = vld [vmem:[%s5 + $0x28] sm:$0xff]
    %v3906 = vld [vmem:[#allocation5 + $0xa] sm:$0x1]
    %v3907 = vperm.slane %v3906, 0
    %v3910 = vunpack.c.l.b16 %v3904
    %v3911 = vunpack.c.h.b16 %v3904
    %v3912 = vunpack.c.l.b16 %v3905
    %v3913 = vunpack.c.h.b16 %v3905
    %v3914 = vpack.c.b16 %v3912, %v3910
    %v3915 = vpack.c.b16 %v3913, %v3911
    %3918 = vmatpush.bf16.xpose.msra.mxu0 0
    %3919 = vmatpush.bf16.xpose.msra.mxu0 0
    %3920 = vmatpush.bf16.xpose.msra.mxu0 0
    %3921 = vmatpush.bf16.xpose.msra.mxu0 0
    %3922 = vmatpush.bf16.xpose.msra.mxu0 0
    %3923 = vmatpush.bf16.xpose.msra.mxu0 0
    %3924 = vmatpush.bf16.xpose.msra.mxu0 0
    %3925 = vmatpush.bf16.xpose.msra.mxu0 %v3914
    %3926 = vmatmul.bf16.gmra.mxu0 %v3902
    %v3927 = vpop.f32.mrf.mxu0
    %v3928 = vadd.f32 %v3907, %v3927
    %v3929 = vpop.f32.mrf.mxu0
    %3930 = vdwg.mxu0
    %3931 = vmatpush.bf16.xpose.msra.mxu0 0
    %3932 = vmatpush.bf16.xpose.msra.mxu0 0
    %3933 = vmatpush.bf16.xpose.msra.mxu0 0
    %3934 = vmatpush.bf16.xpose.msra.mxu0 0
    %3935 = vmatpush.bf16.xpose.msra.mxu0 0
    %3936 = vmatpush.bf16.xpose.msra.mxu0 0
    %3937 = vmatpush.bf16.xpose.msra.mxu0 0
    %3938 = vmatpush.bf16.xpose.msra.mxu0 %v3915
    %3939 = vmatmul.bf16.gmra.mxu0 %v3903
    %v3940 = vpop.f32.mrf.mxu0
    %v3941 = vadd.f32 %v3928, %v3940
    %v3942 = vpop.f32.mrf.mxu0
    %3943 = vdwg.mxu0
    %v3944 = vld [vmem:[#allocation5 + $0xb] sm:$0x1]
    %v3945 = vld [vmem:[#allocation5 + $0xc] sm:$0x1]
    %vm3946 = vcmask 130048
    %v3947 = vsel %vm3946, %v3941, 0.0
    %3948 = vadd.xlane.f32.xlu0 %v3947
    %v3949 = vpop.xlane.xlu0 %3948
    %v3950 = vrcp.pop 16.0
    %v3951 = vmul.f32 16.0, %v3950
    %v3952 = vsub.f32 1.0, %v3951
    %v3953 = vmul.f32 %v3950, %v3952
    %v3954 = vadd.f32 %v3950, %v3953
    %vm3955 = vweird.f32 %v3950
    %v3956 = vsel %vm3955, %v3950, %v3954
    %v3957 = vmul.f32 %v3949, %v3956
    %v3958 = vsub.f32 %v3941, %v3957
    %v3959 = vmul.f32 %v3958, %v3958
    %v3960 = vsel %vm3946, %v3959, 0.0
    %3961 = vadd.xlane.f32.xlu0 %v3960
    %v3962 = vpop.xlane.xlu0 %3961
    %v3963 = vmul.f32 %v3962, %v3956
    %v3964 = vadd.f32 %v3963, 1e-05
    %v3965 = vrsqrt.pop %v3964
    %v3966 = vmul.f32 %v3965, %v3964
    %v3967 = vmul.f32 %v3966, %v3965
    %v3968 = vmul.f32 0.5, %v3967
    %v3969 = vsub.f32 1.5, %v3968
    %v3970 = vmul.f32 %v3965, %v3969
    %vm3971 = vweird.f32 %v3964
    %vm3972 = vweird.f32 %v3965
    %vm3973 = vmor %vm3971, %vm3972
    %v3974 = vsel %vm3973, %v3965, %v3970
    %v3975 = vmul.f32 %v3958, %v3974
    %v3976 = vperm.slane %v3944, 0
    %v3977 = vmul.f32 %v3975, %v3976
    %v3978 = vperm.slane %v3945, 0
    %v3979 = vadd.f32 %v3977, %v3978
    %vm3980 = vcmp.gt.f32.partialorder %v3979, 0.0
    %v3981 = vmul.f32 %v3979, 0.1
    %v3982 = vsel %vm3980, %v3979, %v3981
    %v3983 = vpack.c.bf16 %v3982, %v3982
    %v3984 = vld [vmem:[%s5 + $0x30] sm:$0xf]
    %v3985 = vld [vmem:[%s5 + $0x38] sm:$0xf]
    %v3986 = vld [vmem:[#allocation5 + $0xd] sm:$0x1]
    %v3987 = vperm.slane %v3986, 0
    %v3990 = vunpack.c.l.b16 %v3984
    %v3991 = vunpack.c.l.b16 %v3985
    %v3992 = vpack.c.b16 %v3991, %v3990
    %v3995 = vsel %vm3946, %v3983, 0
    %3997 = vmatpush.bf16.msra.mxu0 0
    %3998 = vmatpush.bf16.msra.mxu0 0
    %3999 = vmatpush.bf16.msra.mxu0 0
    %4000 = vmatpush.bf16.msra.mxu0 0
    %4001 = vmatpush.bf16.msra.mxu0 0
    %4002 = vmatpush.bf16.msra.mxu0 0
    %4003 = vmatpush.bf16.msra.mxu0 0
    %4004 = vmatpush.bf16.msra.mxu0 %v3992
    %4005 = vmatmul.bf16.gmra.mxu0 %v3995
    %v4006 = vpop.f32.mrf.mxu0
    %v4007 = vadd.f32 %v3987, %v4006
    %v4008 = vpop.f32.mrf.mxu0
    %4009 = vdwg.mxu0
    %4010 = vst [vmem:[#allocation8] sm:$0xff] %v4007
    // Predicated region
    $region38: #{tpu_custom_call.1} parent=1 // pred_check
      _
    $region39: #{tpu_custom_call.1} parent=1 // pred_check_branch
      %4012 = sbr.rel (0) target = $region41
    $region40: #{tpu_custom_call.1} parent=1 // pred_region
      %4014 = vsyncadd [#allocation4], 0
      %s4016 = sshll.u32 [#allocation8], 4
      %s4017 = int_to_ptr.vmem [resolvable:$true] %s4016
      %s4018 = sshll.u32 %s6, 4
      %s4019 = int_to_ptr.hbm [resolvable:$true] %s4018
      %4021 = dma.vmem_to_hbm [thread:$0]  %s4017, 128, %s4019, [#allocation4]
    $region41: #{tpu_custom_call.1} parent=1 // pred_fallthru
      _
    // Predicated region
    $region42: #{tpu_custom_call.1} parent=1 // pred_check
      _
    $region43: #{tpu_custom_call.1} parent=1 // pred_check_branch
      %4023 = sbr.rel (0) target = $region45
    $region44: #{tpu_custom_call.1} parent=1 // pred_region
      %4025 = dma.done [#allocation4], 128
    $region45: #{tpu_custom_call.1} parent=1 // pred_fallthru
      _
    %4026 = vsyncpa [#allocation3], 1
    %4027 = vsyncpa [#allocation6], 1
    %4028 = vsyncpa [#allocation4], 1

</llo_original>
